<compile_context>
chip_gen: v5e
topology: v5e:2x2
jax: 0.10.0
libtpu: 0.0.40
codegen_flags: <defaults>
</compile_context>

<pallas_src>
import jax
import jax.numpy as jnp
from jax.experimental import pallas as pl
from jax.experimental.pallas import tpu as pltpu

VMEM_SPEC = pl.BlockSpec(memory_space=pltpu.MemorySpace.VMEM)


# ----------------------------------------------------------------------------
# Pallas kernels
# ----------------------------------------------------------------------------
def _embed_kernel(xa_ref, nbin_ref, wa_ref, ba_ref, wn_ref, bn_ref,
                  atom_pre_ref, atom_act_ref, nbf_ref):
    pre = jnp.dot(xa_ref[...], wa_ref[...],
                  preferred_element_type=jnp.float32) + ba_ref[...]
    atom_pre_ref[...] = pre
    atom_act_ref[...] = jnp.where(pre >= 0.0, pre, 0.01 * pre)        # leaky_relu
    nb = jnp.dot(nbin_ref[...], wn_ref[...],
                 preferred_element_type=jnp.float32) + bn_ref[...]
    nbf_ref[...] = jnp.where(nb >= 0.0, nb, 0.01 * nb)                # leaky_relu


def _attn_gru_kernel(q_ref, mem_ref, smask_ref, amask_ref, h_ref,
                     walq_ref, walm_ref, bal_ref,
                     watt_ref, batt_ref,
                     bns_ref, bnt_ref,
                     wih_ref, whh_ref, bih_ref, bhh_ref,
                     hout_ref, actout_ref, attw_ref):
    q = q_ref[...]                                   # (M, D)   query rows
    mem = mem_ref[...]                               # (M, N, D) neighbor memory

    # --- align linear (concat expressed as split dot) + leaky_relu ---
    s_q = jnp.sum(q * walq_ref[...], axis=-1, keepdims=True)          # (M, 1)
    s_m = jnp.sum(mem * walm_ref[...], axis=-1)                       # (M, N)
    score = s_q + s_m + bal_ref[...]                                  # (M, N)
    score = jnp.where(score >= 0.0, score, 0.01 * score)

    # --- masked softmax over neighbors ---
    s = score + smask_ref[...]
    s = s - jnp.max(s, axis=-1, keepdims=True)
    e = jnp.exp(s)
    p = e / jnp.sum(e, axis=-1, keepdims=True)
    w = p * amask_ref[...]
    attw_ref[...] = w

    # --- attend linear folded after the weighted reduce ---
    # sum_n w_mn * (mem_mn @ W + b) == (sum_n w_mn * mem_mn) @ W + (sum_n w_mn)*b
    ctx_pre = jnp.sum(w[:, :, None] * mem, axis=1)                    # (M, D)
    wsum = jnp.sum(w, axis=-1, keepdims=True)                         # (M, 1)
    ctx = jnp.dot(ctx_pre, watt_ref[...],
                  preferred_element_type=jnp.float32) + wsum * batt_ref[...]

    # --- ELU(alpha=1) + BatchNorm (inference, as scale/shift; identity for atoms)
    ctx = jnp.where(ctx > 0.0, ctx, jnp.exp(ctx) - 1.0)
    ctx = ctx * bns_ref[...] + bnt_ref[...]

    # --- GRU cell (PyTorch gate order r, z, n; weights pre-split per gate) ---
    h = h_ref[...]
    wih = wih_ref[...]                                # (3, D, D)
    whh = whh_ref[...]                                # (3, D, D)
    bih = bih_ref[...]                                # (3, 1, D)
    bhh = bhh_ref[...]                                # (3, 1, D)
    gi_r = jnp.dot(ctx, wih[0], preferred_element_type=jnp.float32) + bih[0]
    gh_r = jnp.dot(h,   whh[0], preferred_element_type=jnp.float32) + bhh[0]
    gi_z = jnp.dot(ctx, wih[1], preferred_element_type=jnp.float32) + bih[1]
    gh_z = jnp.dot(h,   whh[1], preferred_element_type=jnp.float32) + bhh[1]
    gi_n = jnp.dot(ctx, wih[2], preferred_element_type=jnp.float32) + bih[2]
    gh_n = jnp.dot(h,   whh[2], preferred_element_type=jnp.float32) + bhh[2]
    r = jax.nn.sigmoid(gi_r + gh_r)
    z = jax.nn.sigmoid(gi_z + gh_z)
    n = jnp.tanh(gi_n + r * gh_n)
    h_new = (1.0 - z) * n + z * h

    hout_ref[...] = h_new
    actout_ref[...] = jnp.maximum(h_new, 0.0)


def _tail_kernel(chem_ref, mol_ref,
                 w1_ref, b1_ref, w2_ref, b2_ref, w3_ref, b3_ref,
                 w4_ref, b4_ref, w5_ref, b5_ref,
                 wmo_ref, bmo_ref, wom_ref, woc_ref, bo_ref,
                 x_ref, y_ref):
    # chem-info MLP; BatchNorms already folded into w2..w5 / b2..b5
    c = jnp.dot(chem_ref[...], w1_ref[...], preferred_element_type=jnp.float32) + b1_ref[...]
    c = jnp.maximum(c, 0.0)
    c = jnp.dot(c, w2_ref[...], preferred_element_type=jnp.float32) + b2_ref[...]
    c = jnp.maximum(c, 0.0)
    c = jnp.dot(c, w3_ref[...], preferred_element_type=jnp.float32) + b3_ref[...]
    c = jnp.maximum(c, 0.0)
    c = jnp.dot(c, w4_ref[...], preferred_element_type=jnp.float32) + b4_ref[...]
    c = jnp.maximum(c, 0.0)
    c = jnp.dot(c, w5_ref[...], preferred_element_type=jnp.float32) + b5_ref[...]
    # molecule head + final output (concat expressed as two dots summed) + sigmoid
    mol_pred = jnp.dot(mol_ref[...], wmo_ref[...],
                       preferred_element_type=jnp.float32) + bmo_ref[...]
    x = (jnp.dot(mol_pred, wom_ref[...], preferred_element_type=jnp.float32)
         + jnp.dot(c, woc_ref[...], preferred_element_type=jnp.float32)
         + bo_ref[...])
    x_ref[...] = x
    y_ref[...] = jax.nn.sigmoid(x)


# ----------------------------------------------------------------------------
# Pallas wrappers
# ----------------------------------------------------------------------------
def embed(x_atom_flat, nb_in_flat, p_atom, p_nb):
    Ma = x_atom_flat.shape[0]
    Mn = nb_in_flat.shape[0]
    D = p_atom["w"].shape[1]
    return pl.pallas_call(
        _embed_kernel,
        out_shape=(jax.ShapeDtypeStruct((Ma, D), jnp.float32),
                   jax.ShapeDtypeStruct((Ma, D), jnp.float32),
                   jax.ShapeDtypeStruct((Mn, D), jnp.float32)),
        in_specs=[VMEM_SPEC] * 6,
        out_specs=(VMEM_SPEC,) * 3,
    )(x_atom_flat, nb_in_flat, p_atom["w"], p_atom["b"], p_nb["w"], p_nb["b"])


def attn_gru_step(q, mem, smask, amask, h, p_align, p_attend, p_gru,
                  bn_scale, bn_shift):
    """Fused attention + GRU step.  q,h: (M,D); mem: (M,N,D); masks: (M,N)."""
    M, D = q.shape
    N = mem.shape[1]
    return pl.pallas_call(
        _attn_gru_kernel,
        out_shape=(jax.ShapeDtypeStruct((M, D), jnp.float32),   # new hidden
                   jax.ShapeDtypeStruct((M, D), jnp.float32),   # relu(hidden)
                   jax.ShapeDtypeStruct((M, N), jnp.float32)),  # attention weights
        in_specs=[VMEM_SPEC] * 16,
        out_specs=(VMEM_SPEC,) * 3,
    )(q, mem, smask, amask, h,
      p_align["w_q"], p_align["w_m"], p_align["b"],
      p_attend["w"], p_attend["b"],
      bn_scale, bn_shift,
      p_gru["w_ih"], p_gru["w_hh"], p_gru["b_ih"], p_gru["b_hh"])


def tail(x_chem, mol_feature, prep):
    B = x_chem.shape[0]
    out_dim = prep["out_b"].shape[1]
    args = (x_chem, mol_feature,
            prep["fc1"]["w"], prep["fc1"]["b"],
            prep["fc2"]["w"], prep["fc2"]["b"],
            prep["fc3"]["w"], prep["fc3"]["b"],
            prep["fc4"]["w"], prep["fc4"]["b"],
            prep["fc5"]["w"], prep["fc5"]["b"],
            prep["mol_output"]["w"], prep["mol_output"]["b"],
            prep["out_w_mol"], prep["out_w_chem"], prep["out_b"])
    return pl.pallas_call(
        _tail_kernel,
        out_shape=(jax.ShapeDtypeStruct((B, out_dim), jnp.float32),
                   jax.ShapeDtypeStruct((B, out_dim), jnp.float32)),
        in_specs=[VMEM_SPEC] * len(args),
        out_specs=(VMEM_SPEC, VMEM_SPEC),
    )(*args)


# ----------------------------------------------------------------------------
# Parameters (deterministic synthetic init, same layout as before)
# ----------------------------------------------------------------------------
def init_params(key, cfg):
    D = cfg["fingerprint_dim"]
    keys = iter(jax.random.split(key, 64))

    def lin(k, i, o):
        kw, kb = jax.random.split(k)
        return {"w": 0.1 * jax.random.normal(kw, (i, o), jnp.float32),
                "b": 0.1 * jax.random.normal(kb, (o,), jnp.float32)}

    def gru(k, i, h):
        k1, k2, k3, k4 = jax.random.split(k, 4)
        return {"w_ih": 0.1 * jax.random.normal(k1, (i, 3 * h), jnp.float32),
                "w_hh": 0.1 * jax.random.normal(k2, (h, 3 * h), jnp.float32),
                "b_ih": 0.1 * jax.random.normal(k3, (3 * h,), jnp.float32),
                "b_hh": 0.1 * jax.random.normal(k4, (3 * h,), jnp.float32)}

    def bn(k, n):
        k1, k2 = jax.random.split(k)
        return {"gamma": 1.0 + 0.1 * jax.random.normal(k1, (n,), jnp.float32),
                "beta": 0.1 * jax.random.normal(k2, (n,), jnp.float32),
                "mean": jnp.zeros((n,), jnp.float32),
                "var": jnp.ones((n,), jnp.float32)}

    return {
        "atom_fc": lin(next(keys), cfg["input_feature_dim"], D),
        "neighbor_fc": lin(next(keys), cfg["input_feature_dim"] + cfg["input_bond_dim"], D),
        "gru": [gru(next(keys), D, D) for _ in range(cfg["radius"])],
        "align": [lin(next(keys), 2 * D, 1) for _ in range(cfg["radius"])],
        "attend": [lin(next(keys), D, D) for _ in range(cfg["radius"])],
        "mol_gru": gru(next(keys), D, D),
        "mol_align": lin(next(keys), 2 * D, 1),
        "mol_attend": lin(next(keys), D, D),
        "mol_norm": bn(next(keys), D),
        "mol_output": lin(next(keys), D, cfg["output_units_num"]),
        "fc1": lin(next(keys), cfg["cheminfo_input_dim"], 50), "bn1": bn(next(keys), 50),
        "fc2": lin(next(keys), 50, 40), "bn2": bn(next(keys), 40),
        "fc3": lin(next(keys), 40, 32), "bn3": bn(next(keys), 32),
        "fc4": lin(next(keys), 32, 20), "bn4": bn(next(keys), 20),
        "fc5": lin(next(keys), 20, cfg["cheminfo_output_dim"]),
        "output": lin(next(keys),
                      cfg["output_units_num"] + cfg["cheminfo_output_dim"],
                      cfg["output_dim"]),
    }


def prepare_params(params, cfg, eps=1e-5):
    """Zero-cost parameter re-layout: split GRU gates, split align weights,
    fold inference BatchNorms into the following linear / a scale+shift."""
    D = cfg["fingerprint_dim"]

    def split_gru(g):
        def split_w(w):        # (K, 3D) -> (3, K, D), gate order r, z, n
            return jnp.stack([w[:, 0:D], w[:, D:2 * D], w[:, 2 * D:3 * D]], axis=0)

        def split_b(b):        # (3D,) -> (3, 1, D)
            return jnp.stack([b[0:D], b[D:2 * D], b[2 * D:3 * D]], axis=0).reshape(3, 1, D)

        return {"w_ih": split_w(g["w_ih"]), "w_hh": split_w(g["w_hh"]),
                "b_ih": split_b(g["b_ih"]), "b_hh": split_b(g["b_hh"])}

    def split_align(a):        # align weight (2D, 1): [query part | memory part]
        w = a["w"]
        return {"w_q": w[:D, 0].reshape(1, D),
                "w_m": w[D:, 0].reshape(1, D),
                "b": a["b"].reshape(1, 1)}

    def bias_row(l):
        return {"w": l["w"], "b": l["b"].reshape(1, -1)}

    def bn_scale_shift(p):
        s = p["gamma"] / jnp.sqrt(p["var"] + eps)
        t = p["beta"] - p["mean"] * s
        return s, t

    def fold_bn_into_next(prev_bn, lin):   # bn(h) @ W + b == h @ (s[:,None]*W) + (t@W + b)
        s, t = bn_scale_shift(prev_bn)
        return {"w": s[:, None] * lin["w"],
                "b": (t @ lin["w"] + lin["b"]).reshape(1, -1)}

    mol_s, mol_t = bn_scale_shift(params["mol_norm"])
    nu = cfg["output_units_num"]

    return {
        "atom_fc": bias_row(params["atom_fc"]),
        "neighbor_fc": bias_row(params["neighbor_fc"]),
        "align": [split_align(a) for a in params["align"]],
        "attend": [bias_row(a) for a in params["attend"]],
        "gru": [split_gru(g) for g in params["gru"]],
        "mol_align": split_align(params["mol_align"]),
        "mol_attend": bias_row(params["mol_attend"]),
        "mol_gru": split_gru(params["mol_gru"]),
        "mol_bn_scale": mol_s.reshape(1, D),
        "mol_bn_shift": mol_t.reshape(1, D),
        "mol_output": bias_row(params["mol_output"]),
        "fc1": bias_row(params["fc1"]),
        "fc2": fold_bn_into_next(params["bn1"], params["fc2"]),
        "fc3": fold_bn_into_next(params["bn2"], params["fc3"]),
        "fc4": fold_bn_into_next(params["bn3"], params["fc4"]),
        "fc5": fold_bn_into_next(params["bn4"], params["fc5"]),
        "out_w_mol": params["output"]["w"][:nu],
        "out_w_chem": params["output"]["w"][nu:],
        "out_b": params["output"]["b"].reshape(1, -1),
        "bn_id_scale": jnp.ones((1, D), jnp.float32),
        "bn_id_shift": jnp.zeros((1, D), jnp.float32),
    }


# ----------------------------------------------------------------------------
# Forward pass (mirrors MyModel.forward; dropout = identity / eval mode)
# ----------------------------------------------------------------------------
# TODO(synk): training-mode dropout and batch-statistics BatchNorm are not
# implemented; inference semantics (identity dropout, running-stat BN folded
# into weights) are used instead.
def forward(params, cfg, x_atom, x_bond, x_atom_index, x_bond_index, x_mask, x_chem):
    B, L, Fa = x_atom.shape
    N = x_atom_index.shape[-1]
    D = cfg["fingerprint_dim"]
    prep = prepare_params(params, cfg)
    x_mask3 = x_mask[:, :, None]                                   # (B, L, 1)

    # --- neighbor gathers (plain-JAX glue; tiny at these sizes) ---
    gather = jax.vmap(lambda tab, idx: tab[idx])
    bond_neighbor = gather(x_bond, x_bond_index)                   # (B, L, N, Fb)
    atom_neighbor = gather(x_atom, x_atom_index)                   # (B, L, N, Fa)
    nb_in = jnp.concatenate([atom_neighbor, bond_neighbor], axis=-1)

    # --- fused embedding kernel: atom_fc + neighbor_fc ---
    atom_pre, atom_act, nb_feat = embed(
        x_atom.reshape(B * L, Fa),
        nb_in.reshape(B * L * N, nb_in.shape[-1]),
        prep["atom_fc"], prep["neighbor_fc"])

    atom_feature_viz = [atom_pre.reshape(B, L, D)]                 # pre-activation viz

    pad_id = L - 1
    attend_mask = jnp.where(x_atom_index != pad_id, 1.0, 0.0).astype(jnp.float32)
    softmax_mask = jnp.where(x_atom_index != pad_id, 0.0, -9e8).astype(jnp.float32)
    attend_mask = attend_mask.reshape(B * L, N)
    softmax_mask = softmax_mask.reshape(B * L, N)

    # --- radius loop: one fused attention+GRU kernel per iteration ---
    atom_attention_weight_viz = []
    h = atom_act                                                   # (B*L, D)
    q = atom_act
    mem = nb_feat.reshape(B * L, N, D)
    activated_features = None
    for d in range(cfg["radius"]):
        if d > 0:
            mem = gather(activated_features, x_atom_index).reshape(B * L, N, D)
            q = activated_features.reshape(B * L, D)
        h, act_flat, attw = attn_gru_step(
            q, mem, softmax_mask, attend_mask, h,
            prep["align"][d], prep["attend"][d], prep["gru"][d],
            prep["bn_id_scale"], prep["bn_id_shift"])
        atom_attention_weight_viz.append(attw.reshape(B, L, N, 1))
        activated_features = act_flat.reshape(B, L, D)
        atom_feature_viz.append(activated_features)

    atom_feature = h.reshape(B, L, D)

    # --- molecule-level readout (tiny masked sums: glue) ---
    mol_feature_unbounded_viz = [jnp.sum(atom_feature * x_mask3, axis=-2)]
    mol_feature = jnp.sum(activated_features * x_mask3, axis=-2)   # (B, D)
    activated_features_mol = jnp.maximum(mol_feature, 0.0)
    mol_feature_viz = [mol_feature]
    mol_attention_weight_viz = []
    mol_softmax_mask = jnp.where(x_mask == 0.0, -9e8, 0.0).astype(jnp.float32)

    # --- T loop: same fused attention+GRU kernel (mol_norm folded as scale/shift)
    for _ in range(cfg["T"]):
        mol_feature, activated_features_mol, mol_w = attn_gru_step(
            activated_features_mol, activated_features,
            mol_softmax_mask, x_mask, mol_feature,
            prep["mol_align"], prep["mol_attend"], prep["mol_gru"],
            prep["mol_bn_scale"], prep["mol_bn_shift"])
        mol_attention_weight_viz.append(mol_w[:, :, None])
        mol_feature_unbounded_viz.append(mol_feature)
        mol_feature_viz.append(activated_features_mol)

    # --- fused tail: chem MLP (BN folded) + mol_output + output + sigmoid ---
    x_out, y = tail(x_chem, mol_feature, prep)

    return ((atom_feature_viz, atom_attention_weight_viz, mol_feature_viz,
             mol_feature_unbounded_viz, mol_attention_weight_viz), x_out, y)


# ----------------------------------------------------------------------------
if __name__ == "__main__":
    cfg = dict(cheminfo_input_dim=10, cheminfo_output_dim=8, radius=2, T=2,
               input_feature_dim=16, input_bond_dim=8, fingerprint_dim=32,
               output_units_num=16, p_dropout=0.1, output_dim=2)
    B, L, NB, NBOND = 2, 8, 4, 8

    key = jax.random.PRNGKey(0)
    k = jax.random.split(key, 8)
    params = init_params(k[0], cfg)

    x_atom = jax.random.normal(k[1], (B, L, cfg["input_feature_dim"]), jnp.float32)
    x_bond = jax.random.normal(k[2], (B, NBOND, cfg["input_bond_dim"]), jnp.float32)
    x_atom_index = jax.random.randint(k[3], (B, L, NB), 0, L)
    x_bond_index = jax.random.randint(k[4], (B, L, NB), 0, NBOND)
    x_mask = (jnp.arange(L)[None, :] < jnp.array([[6], [8]])).astype(jnp.float32)
    x_chem = jax.random.normal(k[5], (B, cfg["cheminfo_input_dim"]), jnp.float32)

    @jax.jit
    def run(p, xa, xb, xai, xbi, xm, xc):
        return forward(p, cfg, xa, xb, xai, xbi, xm, xc)

    viz, x_out, y = run(params, x_atom, x_bond, x_atom_index, x_bond_index,
                        x_mask, x_chem)
    jax.block_until_ready(y)
    assert x_out.shape == (B, cfg["output_dim"]) and y.shape == (B, cfg["output_dim"])
    assert len(viz[0]) == cfg["radius"] + 1 and len(viz[1]) == cfg["radius"]
    assert len(viz[2]) == cfg["T"] + 1 and len(viz[4]) == cfg["T"]
    print("KERNEL_OK")
</pallas_src>

<mosaic_0001>
module attributes {stable_mosaic.version = 11 : i64} {
  func.func @_embed_kernel(%arg0: memref<16x16xf32, #tpu.memory_space<vmem>>, %arg1: memref<64x24xf32, #tpu.memory_space<vmem>>, %arg2: memref<16x32xf32, #tpu.memory_space<vmem>>, %arg3: memref<1x32xf32, #tpu.memory_space<vmem>>, %arg4: memref<24x32xf32, #tpu.memory_space<vmem>>, %arg5: memref<1x32xf32, #tpu.memory_space<vmem>>, %arg6: memref<16x32xf32, #tpu.memory_space<vmem>>, %arg7: memref<16x32xf32, #tpu.memory_space<vmem>>, %arg8: memref<64x32xf32, #tpu.memory_space<vmem>>) attributes {dimension_semantics = [], scalar_prefetch = 0 : i64, scratch_operands = 0 : i64, tpu.core_type = #tpu.core_type<tc>} {
    %c0 = arith.constant 0 : index
    %c0_0 = arith.constant 0 : index
    %0 = vector.load %arg0[%c0, %c0_0] : memref<16x16xf32, #tpu.memory_space<vmem>>, vector<16x16xf32>
    %c0_1 = arith.constant 0 : index
    %c0_2 = arith.constant 0 : index
    %1 = vector.load %arg2[%c0_1, %c0_2] : memref<16x32xf32, #tpu.memory_space<vmem>>, vector<16x32xf32>
    %cst = arith.constant dense<0.000000e+00> : vector<16x32xf32>
    %2 = tpu.matmul %0, %1, %cst {dimension_numbers = #tpu.dot_dimension_numbers<[1], [0], [0], [1], [0, 0, 1, 1], [], []>} : vector<16x16xf32>, vector<16x32xf32>, vector<16x32xf32> -> vector<16x32xf32>
    %c0_3 = arith.constant 0 : index
    %c0_4 = arith.constant 0 : index
    %3 = vector.load %arg3[%c0_3, %c0_4] : memref<1x32xf32, #tpu.memory_space<vmem>>, vector<1x32xf32>
    %4 = vector.broadcast %3 : vector<1x32xf32> to vector<16x32xf32>
    %5 = arith.addf %2, %4 : vector<16x32xf32>
    %c0_5 = arith.constant 0 : index
    %c0_6 = arith.constant 0 : index
    %6 = vector.load %arg6[%c0_5, %c0_6] : memref<16x32xf32, #tpu.memory_space<vmem>>, vector<16x32xf32>
    tpu.vector_store %arg6[%c0_5, %c0_6], %5 {strides = array<i32>} : memref<16x32xf32, #tpu.memory_space<vmem>>, vector<16x32xf32>,
    %cst_7 = arith.constant 0.000000e+00 : f32
    %7 = vector.broadcast %cst_7 : f32 to vector<16x32xf32>
    %8 = arith.cmpf oge, %5, %7 : vector<16x32xf32>
    %cst_8 = arith.constant 0.00999999977 : f32
    %9 = vector.broadcast %cst_8 : f32 to vector<16x32xf32>
    %10 = arith.mulf %9, %5 : vector<16x32xf32>
    %11 = arith.select %8, %5, %10 : vector<16x32xi1>, vector<16x32xf32>
    %c0_9 = arith.constant 0 : index
    %c0_10 = arith.constant 0 : index
    %12 = vector.load %arg7[%c0_9, %c0_10] : memref<16x32xf32, #tpu.memory_space<vmem>>, vector<16x32xf32>
    tpu.vector_store %arg7[%c0_9, %c0_10], %11 {strides = array<i32>} : memref<16x32xf32, #tpu.memory_space<vmem>>, vector<16x32xf32>,
    %c0_11 = arith.constant 0 : index
    %c0_12 = arith.constant 0 : index
    %13 = vector.load %arg1[%c0_11, %c0_12] : memref<64x24xf32, #tpu.memory_space<vmem>>, vector<64x24xf32>
    %c0_13 = arith.constant 0 : index
    %c0_14 = arith.constant 0 : index
    %14 = vector.load %arg4[%c0_13, %c0_14] : memref<24x32xf32, #tpu.memory_space<vmem>>, vector<24x32xf32>
    %cst_15 = arith.constant dense<0.000000e+00> : vector<64x32xf32>
    %15 = tpu.matmul %13, %14, %cst_15 {dimension_numbers = #tpu.dot_dimension_numbers<[1], [0], [0], [1], [0, 0, 1, 1], [], []>} : vector<64x24xf32>, vector<24x32xf32>, vector<64x32xf32> -> vector<64x32xf32>
    %c0_16 = arith.constant 0 : index
    %c0_17 = arith.constant 0 : index
    %16 = vector.load %arg5[%c0_16, %c0_17] : memref<1x32xf32, #tpu.memory_space<vmem>>, vector<1x32xf32>
    %17 = vector.broadcast %16 : vector<1x32xf32> to vector<64x32xf32>
    %18 = arith.addf %15, %17 : vector<64x32xf32>
    %cst_18 = arith.constant 0.000000e+00 : f32
    %19 = vector.broadcast %cst_18 : f32 to vector<64x32xf32>
    %20 = arith.cmpf oge, %18, %19 : vector<64x32xf32>
    %cst_19 = arith.constant 0.00999999977 : f32
    %21 = vector.broadcast %cst_19 : f32 to vector<64x32xf32>
    %22 = arith.mulf %21, %18 : vector<64x32xf32>
    %23 = arith.select %20, %18, %22 : vector<64x32xi1>, vector<64x32xf32>
    %c0_20 = arith.constant 0 : index
    %c0_21 = arith.constant 0 : index
    %24 = vector.load %arg8[%c0_20, %c0_21] : memref<64x32xf32, #tpu.memory_space<vmem>>, vector<64x32xf32>
    tpu.vector_store %arg8[%c0_20, %c0_21], %23 {strides = array<i32>} : memref<64x32xf32, #tpu.memory_space<vmem>>, vector<64x32xf32>,
    return
  }
}

module attributes {stable_mosaic.version = 11 : i64} {
  func.func @_attn_gru_kernel(%arg0: memref<16x32xf32, #tpu.memory_space<vmem>>, %arg1: memref<16x4x32xf32, #tpu.memory_space<vmem>>, %arg2: memref<16x4xf32, #tpu.memory_space<vmem>>, %arg3: memref<16x4xf32, #tpu.memory_space<vmem>>, %arg4: memref<16x32xf32, #tpu.memory_space<vmem>>, %arg5: memref<1x32xf32, #tpu.memory_space<vmem>>, %arg6: memref<1x32xf32, #tpu.memory_space<vmem>>, %arg7: memref<1x1xf32, #tpu.memory_space<vmem>>, %arg8: memref<32x32xf32, #tpu.memory_space<vmem>>, %arg9: memref<1x32xf32, #tpu.memory_space<vmem>>, %arg10: memref<1x32xf32, #tpu.memory_space<vmem>>, %arg11: memref<1x32xf32, #tpu.memory_space<vmem>>, %arg12: memref<3x32x32xf32, #tpu.memory_space<vmem>>, %arg13: memref<3x32x32xf32, #tpu.memory_space<vmem>>, %arg14: memref<3x1x32xf32, #tpu.memory_space<vmem>>, %arg15: memref<3x1x32xf32, #tpu.memory_space<vmem>>, %arg16: memref<16x32xf32, #tpu.memory_space<vmem>>, %arg17: memref<16x32xf32, #tpu.memory_space<vmem>>, %arg18: memref<16x4xf32, #tpu.memory_space<vmem>>) attributes {dimension_semantics = [], scalar_prefetch = 0 : i64, scratch_operands = 0 : i64, tpu.core_type = #tpu.core_type<tc>} {
    %c0 = arith.constant 0 : index
    %c0_0 = arith.constant 0 : index
    %0 = vector.load %arg0[%c0, %c0_0] : memref<16x32xf32, #tpu.memory_space<vmem>>, vector<16x32xf32>
    %c0_1 = arith.constant 0 : index
    %c0_2 = arith.constant 0 : index
    %c0_3 = arith.constant 0 : index
    %1 = vector.load %arg1[%c0_1, %c0_2, %c0_3] : memref<16x4x32xf32, #tpu.memory_space<vmem>>, vector<16x4x32xf32>
    %c0_4 = arith.constant 0 : index
    %c0_5 = arith.constant 0 : index
    %2 = vector.load %arg5[%c0_4, %c0_5] : memref<1x32xf32, #tpu.memory_space<vmem>>, vector<1x32xf32>
    %3 = vector.broadcast %2 : vector<1x32xf32> to vector<16x32xf32>
    %4 = arith.mulf %0, %3 : vector<16x32xf32>
    %cst = arith.constant dense<0.000000e+00> : vector<16xf32>
    %5 = vector.multi_reduction <add>, %4, %cst [1] : vector<16x32xf32> to vector<16xf32>
    %6 = vector.shape_cast %5 : vector<16xf32> to vector<16x1xf32>
    %c0_6 = arith.constant 0 : index
    %c0_7 = arith.constant 0 : index
    %7 = vector.load %arg6[%c0_6, %c0_7] : memref<1x32xf32, #tpu.memory_space<vmem>>, vector<1x32xf32>
    %8 = vector.shape_cast %7 : vector<1x32xf32> to vector<1x1x32xf32>
    %9 = vector.broadcast %8 : vector<1x1x32xf32> to vector<16x4x32xf32>
    %10 = arith.mulf %1, %9 : vector<16x4x32xf32>
    %cst_8 = arith.constant dense<0.000000e+00> : vector<16x4xf32>
    %11 = vector.multi_reduction <add>, %10, %cst_8 [2] : vector<16x4x32xf32> to vector<16x4xf32>
    %12 = vector.broadcast %6 : vector<16x1xf32> to vector<16x4xf32>
    %13 = arith.addf %12, %11 : vector<16x4xf32>
    %c0_9 = arith.constant 0 : index
    %c0_10 = arith.constant 0 : index
    %14 = vector.load %arg7[%c0_9, %c0_10] : memref<1x1xf32, #tpu.memory_space<vmem>>, vector<1x1xf32>
    %15 = vector.broadcast %14 : vector<1x1xf32> to vector<16x4xf32>
    %16 = arith.addf %13, %15 : vector<16x4xf32>
    %cst_11 = arith.constant 0.000000e+00 : f32
    %17 = vector.broadcast %cst_11 : f32 to vector<16x4xf32>
    %18 = arith.cmpf oge, %16, %17 : vector<16x4xf32>
    %cst_12 = arith.constant 0.00999999977 : f32
    %19 = vector.broadcast %cst_12 : f32 to vector<16x4xf32>
    %20 = arith.mulf %19, %16 : vector<16x4xf32>
    %21 = arith.select %18, %16, %20 : vector<16x4xi1>, vector<16x4xf32>
    %c0_13 = arith.constant 0 : index
    %c0_14 = arith.constant 0 : index
    %22 = vector.load %arg2[%c0_13, %c0_14] : memref<16x4xf32, #tpu.memory_space<vmem>>, vector<16x4xf32>
    %23 = arith.addf %21, %22 : vector<16x4xf32>
    %cst_15 = arith.constant dense<0xFF800000> : vector<16xf32>
    %24 = vector.multi_reduction <maximumf>, %23, %cst_15 [1] : vector<16x4xf32> to vector<16xf32>
    %25 = vector.shape_cast %24 : vector<16xf32> to vector<16x1xf32>
    %26 = vector.broadcast %25 : vector<16x1xf32> to vector<16x4xf32>
    %27 = arith.subf %23, %26 : vector<16x4xf32>
    %28 = math.exp %27 : vector<16x4xf32>
    %cst_16 = arith.constant dense<0.000000e+00> : vector<16xf32>
    %29 = vector.multi_reduction <add>, %28, %cst_16 [1] : vector<16x4xf32> to vector<16xf32>
    %30 = vector.shape_cast %29 : vector<16xf32> to vector<16x1xf32>
    %31 = vector.broadcast %30 : vector<16x1xf32> to vector<16x4xf32>
    %32 = arith.divf %28, %31 : vector<16x4xf32>
    %c0_17 = arith.constant 0 : index
    %c0_18 = arith.constant 0 : index
    %33 = vector.load %arg3[%c0_17, %c0_18] : memref<16x4xf32, #tpu.memory_space<vmem>>, vector<16x4xf32>
    %34 = arith.mulf %32, %33 : vector<16x4xf32>
    %c0_19 = arith.constant 0 : index
    %c0_20 = arith.constant 0 : index
    %35 = vector.load %arg18[%c0_19, %c0_20] : memref<16x4xf32, #tpu.memory_space<vmem>>, vector<16x4xf32>
    tpu.vector_store %arg18[%c0_19, %c0_20], %34 {strides = array<i32>} : memref<16x4xf32, #tpu.memory_space<vmem>>, vector<16x4xf32>,
    %36 = vector.shape_cast %34 : vector<16x4xf32> to vector<16x4x1xf32>
    %37 = vector.broadcast %36 : vector<16x4x1xf32> to vector<16x4x32xf32>
    %38 = arith.mulf %37, %1 : vector<16x4x32xf32>
    %cst_21 = arith.constant dense<0.000000e+00> : vector<16x32xf32>
    %39 = vector.multi_reduction <add>, %38, %cst_21 [1] : vector<16x4x32xf32> to vector<16x32xf32>
    %cst_22 = arith.constant dense<0.000000e+00> : vector<16xf32>
    %40 = vector.multi_reduction <add>, %34, %cst_22 [1] : vector<16x4xf32> to vector<16xf32>
    %41 = vector.shape_cast %40 : vector<16xf32> to vector<16x1xf32>
    %c0_23 = arith.constant 0 : index
    %c0_24 = arith.constant 0 : index
    %42 = vector.load %arg8[%c0_23, %c0_24] : memref<32x32xf32, #tpu.memory_space<vmem>>, vector<32x32xf32>
    %cst_25 = arith.constant dense<0.000000e+00> : vector<16x32xf32>
    %43 = tpu.matmul %39, %42, %cst_25 {dimension_numbers = #tpu.dot_dimension_numbers<[1], [0], [0], [1], [0, 0, 1, 1], [], []>} : vector<16x32xf32>, vector<32x32xf32>, vector<16x32xf32> -> vector<16x32xf32>
    %c0_26 = arith.constant 0 : index
    %c0_27 = arith.constant 0 : index
    %44 = vector.load %arg9[%c0_26, %c0_27] : memref<1x32xf32, #tpu.memory_space<vmem>>, vector<1x32xf32>
    %45 = vector.broadcast %41 : vector<16x1xf32> to vector<16x32xf32>
    %46 = vector.broadcast %44 : vector<1x32xf32> to vector<16x32xf32>
    %47 = arith.mulf %45, %46 : vector<16x32xf32>
    %48 = arith.addf %43, %47 : vector<16x32xf32>
    %cst_28 = arith.constant 0.000000e+00 : f32
    %49 = vector.broadcast %cst_28 : f32 to vector<16x32xf32>
    %50 = arith.cmpf ogt, %48, %49 : vector<16x32xf32>
    %51 = math.exp %48 : vector<16x32xf32>
    %cst_29 = arith.constant 1.000000e+00 : f32
    %52 = vector.broadcast %cst_29 : f32 to vector<16x32xf32>
    %53 = arith.subf %51, %52 : vector<16x32xf32>
    %54 = arith.select %50, %48, %53 : vector<16x32xi1>, vector<16x32xf32>
    %c0_30 = arith.constant 0 : index
    %c0_31 = arith.constant 0 : index
    %55 = vector.load %arg10[%c0_30, %c0_31] : memref<1x32xf32, #tpu.memory_space<vmem>>, vector<1x32xf32>
    %56 = vector.broadcast %55 : vector<1x32xf32> to vector<16x32xf32>
    %57 = arith.mulf %54, %56 : vector<16x32xf32>
    %c0_32 = arith.constant 0 : index
    %c0_33 = arith.constant 0 : index
    %58 = vector.load %arg11[%c0_32, %c0_33] : memref<1x32xf32, #tpu.memory_space<vmem>>, vector<1x32xf32>
    %59 = vector.broadcast %58 : vector<1x32xf32> to vector<16x32xf32>
    %60 = arith.addf %57, %59 : vector<16x32xf32>
    %c0_34 = arith.constant 0 : index
    %c0_35 = arith.constant 0 : index
    %61 = vector.load %arg4[%c0_34, %c0_35] : memref<16x32xf32, #tpu.memory_space<vmem>>, vector<16x32xf32>
    %c0_36 = arith.constant 0 : index
    %c0_37 = arith.constant 0 : index
    %c0_38 = arith.constant 0 : index
    %62 = vector.load %arg12[%c0_36, %c0_37, %c0_38] : memref<3x32x32xf32, #tpu.memory_space<vmem>>, vector<3x32x32xf32>
    %c0_39 = arith.constant 0 : index
    %c0_40 = arith.constant 0 : index
    %c0_41 = arith.constant 0 : index
    %63 = vector.load %arg13[%c0_39, %c0_40, %c0_41] : memref<3x32x32xf32, #tpu.memory_space<vmem>>, vector<3x32x32xf32>
    %c0_42 = arith.constant 0 : index
    %c0_43 = arith.constant 0 : index
    %c0_44 = arith.constant 0 : index
    %64 = vector.load %arg14[%c0_42, %c0_43, %c0_44] : memref<3x1x32xf32, #tpu.memory_space<vmem>>, vector<3x1x32xf32>
    %c0_45 = arith.constant 0 : index
    %c0_46 = arith.constant 0 : index
    %c0_47 = arith.constant 0 : index
    %65 = vector.load %arg15[%c0_45, %c0_46, %c0_47] : memref<3x1x32xf32, #tpu.memory_space<vmem>>, vector<3x1x32xf32>
    %66 = vector.extract_strided_slice %62 {offsets = [0, 0, 0], sizes = [1, 32, 32], strides = [1, 1, 1]} : vector<3x32x32xf32> to vector<1x32x32xf32>
    %67 = vector.shape_cast %66 : vector<1x32x32xf32> to vector<32x32xf32>
    %cst_48 = arith.constant dense<0.000000e+00> : vector<16x32xf32>
    %68 = tpu.matmul %60, %67, %cst_48 {dimension_numbers = #tpu.dot_dimension_numbers<[1], [0], [0], [1], [0, 0, 1, 1], [], []>} : vector<16x32xf32>, vector<32x32xf32>, vector<16x32xf32> -> vector<16x32xf32>
    %69 = vector.extract_strided_slice %64 {offsets = [0, 0, 0], sizes = [1, 1, 32], strides = [1, 1, 1]} : vector<3x1x32xf32> to vector<1x1x32xf32>
    %70 = vector.shape_cast %69 : vector<1x1x32xf32> to vector<1x32xf32>
    %71 = vector.broadcast %70 : vector<1x32xf32> to vector<16x32xf32>
    %72 = arith.addf %68, %71 : vector<16x32xf32>
    %73 = vector.extract_strided_slice %63 {offsets = [0, 0, 0], sizes = [1, 32, 32], strides = [1, 1, 1]} : vector<3x32x32xf32> to vector<1x32x32xf32>
    %74 = vector.shape_cast %73 : vector<1x32x32xf32> to vector<32x32xf32>
    %cst_49 = arith.constant dense<0.000000e+00> : vector<16x32xf32>
    %75 = tpu.matmul %61, %74, %cst_49 {dimension_numbers = #tpu.dot_dimension_numbers<[1], [0], [0], [1], [0, 0, 1, 1], [], []>} : vector<16x32xf32>, vector<32x32xf32>, vector<16x32xf32> -> vector<16x32xf32>
    %76 = vector.extract_strided_slice %65 {offsets = [0, 0, 0], sizes = [1, 1, 32], strides = [1, 1, 1]} : vector<3x1x32xf32> to vector<1x1x32xf32>
    %77 = vector.shape_cast %76 : vector<1x1x32xf32> to vector<1x32xf32>
    %78 = vector.broadcast %77 : vector<1x32xf32> to vector<16x32xf32>
    %79 = arith.addf %75, %78 : vector<16x32xf32>
    %80 = vector.extract_strided_slice %62 {offsets = [1, 0, 0], sizes = [1, 32, 32], strides = [1, 1, 1]} : vector<3x32x32xf32> to vector<1x32x32xf32>
    %81 = vector.shape_cast %80 : vector<1x32x32xf32> to vector<32x32xf32>
    %cst_50 = arith.constant dense<0.000000e+00> : vector<16x32xf32>
    %82 = tpu.matmul %60, %81, %cst_50 {dimension_numbers = #tpu.dot_dimension_numbers<[1], [0], [0], [1], [0, 0, 1, 1], [], []>} : vector<16x32xf32>, vector<32x32xf32>, vector<16x32xf32> -> vector<16x32xf32>
    %83 = vector.extract_strided_slice %64 {offsets = [1, 0, 0], sizes = [1, 1, 32], strides = [1, 1, 1]} : vector<3x1x32xf32> to vector<1x1x32xf32>
    %84 = vector.shape_cast %83 : vector<1x1x32xf32> to vector<1x32xf32>
    %85 = vector.broadcast %84 : vector<1x32xf32> to vector<16x32xf32>
    %86 = arith.addf %82, %85 : vector<16x32xf32>
    %87 = vector.extract_strided_slice %63 {offsets = [1, 0, 0], sizes = [1, 32, 32], strides = [1, 1, 1]} : vector<3x32x32xf32> to vector<1x32x32xf32>
    %88 = vector.shape_cast %87 : vector<1x32x32xf32> to vector<32x32xf32>
    %cst_51 = arith.constant dense<0.000000e+00> : vector<16x32xf32>
    %89 = tpu.matmul %61, %88, %cst_51 {dimension_numbers = #tpu.dot_dimension_numbers<[1], [0], [0], [1], [0, 0, 1, 1], [], []>} : vector<16x32xf32>, vector<32x32xf32>, vector<16x32xf32> -> vector<16x32xf32>
    %90 = vector.extract_strided_slice %65 {offsets = [1, 0, 0], sizes = [1, 1, 32], strides = [1, 1, 1]} : vector<3x1x32xf32> to vector<1x1x32xf32>
    %91 = vector.shape_cast %90 : vector<1x1x32xf32> to vector<1x32xf32>
    %92 = vector.broadcast %91 : vector<1x32xf32> to vector<16x32xf32>
    %93 = arith.addf %89, %92 : vector<16x32xf32>
    %94 = vector.extract_strided_slice %62 {offsets = [2, 0, 0], sizes = [1, 32, 32], strides = [1, 1, 1]} : vector<3x32x32xf32> to vector<1x32x32xf32>
    %95 = vector.shape_cast %94 : vector<1x32x32xf32> to vector<32x32xf32>
    %cst_52 = arith.constant dense<0.000000e+00> : vector<16x32xf32>
    %96 = tpu.matmul %60, %95, %cst_52 {dimension_numbers = #tpu.dot_dimension_numbers<[1], [0], [0], [1], [0, 0, 1, 1], [], []>} : vector<16x32xf32>, vector<32x32xf32>, vector<16x32xf32> -> vector<16x32xf32>
    %97 = vector.extract_strided_slice %64 {offsets = [2, 0, 0], sizes = [1, 1, 32], strides = [1, 1, 1]} : vector<3x1x32xf32> to vector<1x1x32xf32>
    %98 = vector.shape_cast %97 : vector<1x1x32xf32> to vector<1x32xf32>
    %99 = vector.broadcast %98 : vector<1x32xf32> to vector<16x32xf32>
    %100 = arith.addf %96, %99 : vector<16x32xf32>
    %101 = vector.extract_strided_slice %63 {offsets = [2, 0, 0], sizes = [1, 32, 32], strides = [1, 1, 1]} : vector<3x32x32xf32> to vector<1x32x32xf32>
    %102 = vector.shape_cast %101 : vector<1x32x32xf32> to vector<32x32xf32>
    %cst_53 = arith.constant dense<0.000000e+00> : vector<16x32xf32>
    %103 = tpu.matmul %61, %102, %cst_53 {dimension_numbers = #tpu.dot_dimension_numbers<[1], [0], [0], [1], [0, 0, 1, 1], [], []>} : vector<16x32xf32>, vector<32x32xf32>, vector<16x32xf32> -> vector<16x32xf32>
    %104 = vector.extract_strided_slice %65 {offsets = [2, 0, 0], sizes = [1, 1, 32], strides = [1, 1, 1]} : vector<3x1x32xf32> to vector<1x1x32xf32>
    %105 = vector.shape_cast %104 : vector<1x1x32xf32> to vector<1x32xf32>
    %106 = vector.broadcast %105 : vector<1x32xf32> to vector<16x32xf32>
    %107 = arith.addf %103, %106 : vector<16x32xf32>
    %108 = arith.addf %72, %79 : vector<16x32xf32>
    %109 = arith.negf %108 : vector<16x32xf32>
    %110 = math.exp %109 : vector<16x32xf32>
    %cst_54 = arith.constant 1.000000e+00 : f32
    %111 = vector.broadcast %cst_54 : f32 to vector<16x32xf32>
    %112 = arith.addf %111, %110 : vector<16x32xf32>
    %113 = arith.divf %111, %112 : vector<16x32xf32>
    %114 = arith.addf %86, %93 : vector<16x32xf32>
    %115 = arith.negf %114 : vector<16x32xf32>
    %116 = math.exp %115 : vector<16x32xf32>
    %cst_55 = arith.constant 1.000000e+00 : f32
    %117 = vector.broadcast %cst_55 : f32 to vector<16x32xf32>
    %118 = arith.addf %117, %116 : vector<16x32xf32>
    %119 = arith.divf %117, %118 : vector<16x32xf32>
    %120 = arith.mulf %113, %107 : vector<16x32xf32>
    %121 = arith.addf %100, %120 : vector<16x32xf32>
    %122 = math.tanh %121 : vector<16x32xf32>
    %cst_56 = arith.constant 1.000000e+00 : f32
    %123 = vector.broadcast %cst_56 : f32 to vector<16x32xf32>
    %124 = arith.subf %123, %119 : vector<16x32xf32>
    %125 = arith.mulf %124, %122 : vector<16x32xf32>
    %126 = arith.mulf %119, %61 : vector<16x32xf32>
    %127 = arith.addf %125, %126 : vector<16x32xf32>
    %c0_57 = arith.constant 0 : index
    %c0_58 = arith.constant 0 : index
    %128 = vector.load %arg16[%c0_57, %c0_58] : memref<16x32xf32, #tpu.memory_space<vmem>>, vector<16x32xf32>
    tpu.vector_store %arg16[%c0_57, %c0_58], %127 {strides = array<i32>} : memref<16x32xf32, #tpu.memory_space<vmem>>, vector<16x32xf32>,
    %cst_59 = arith.constant 0.000000e+00 : f32
    %129 = vector.broadcast %cst_59 : f32 to vector<16x32xf32>
    %130 = arith.maximumf %127, %129 : vector<16x32xf32>
    %c0_60 = arith.constant 0 : index
    %c0_61 = arith.constant 0 : index
    %131 = vector.load %arg17[%c0_60, %c0_61] : memref<16x32xf32, #tpu.memory_space<vmem>>, vector<16x32xf32>
    tpu.vector_store %arg17[%c0_60, %c0_61], %130 {strides = array<i32>} : memref<16x32xf32, #tpu.memory_space<vmem>>, vector<16x32xf32>,
    return
  }
}

module attributes {stable_mosaic.version = 11 : i64} {
  func.func @_attn_gru_kernel(%arg0: memref<2x32xf32, #tpu.memory_space<vmem>>, %arg1: memref<2x8x32xf32, #tpu.memory_space<vmem>>, %arg2: memref<2x8xf32, #tpu.memory_space<vmem>>, %arg3: memref<2x8xf32, #tpu.memory_space<vmem>>, %arg4: memref<2x32xf32, #tpu.memory_space<vmem>>, %arg5: memref<1x32xf32, #tpu.memory_space<vmem>>, %arg6: memref<1x32xf32, #tpu.memory_space<vmem>>, %arg7: memref<1x1xf32, #tpu.memory_space<vmem>>, %arg8: memref<32x32xf32, #tpu.memory_space<vmem>>, %arg9: memref<1x32xf32, #tpu.memory_space<vmem>>, %arg10: memref<1x32xf32, #tpu.memory_space<vmem>>, %arg11: memref<1x32xf32, #tpu.memory_space<vmem>>, %arg12: memref<3x32x32xf32, #tpu.memory_space<vmem>>, %arg13: memref<3x32x32xf32, #tpu.memory_space<vmem>>, %arg14: memref<3x1x32xf32, #tpu.memory_space<vmem>>, %arg15: memref<3x1x32xf32, #tpu.memory_space<vmem>>, %arg16: memref<2x32xf32, #tpu.memory_space<vmem>>, %arg17: memref<2x32xf32, #tpu.memory_space<vmem>>, %arg18: memref<2x8xf32, #tpu.memory_space<vmem>>) attributes {dimension_semantics = [], scalar_prefetch = 0 : i64, scratch_operands = 0 : i64, tpu.core_type = #tpu.core_type<tc>} {
    %c0 = arith.constant 0 : index
    %c0_0 = arith.constant 0 : index
    %0 = vector.load %arg0[%c0, %c0_0] : memref<2x32xf32, #tpu.memory_space<vmem>>, vector<2x32xf32>
    %c0_1 = arith.constant 0 : index
    %c0_2 = arith.constant 0 : index
    %c0_3 = arith.constant 0 : index
    %1 = vector.load %arg1[%c0_1, %c0_2, %c0_3] : memref<2x8x32xf32, #tpu.memory_space<vmem>>, vector<2x8x32xf32>
    %c0_4 = arith.constant 0 : index
    %c0_5 = arith.constant 0 : index
    %2 = vector.load %arg5[%c0_4, %c0_5] : memref<1x32xf32, #tpu.memory_space<vmem>>, vector<1x32xf32>
    %3 = vector.broadcast %2 : vector<1x32xf32> to vector<2x32xf32>
    %4 = arith.mulf %0, %3 : vector<2x32xf32>
    %cst = arith.constant dense<0.000000e+00> : vector<2xf32>
    %5 = vector.multi_reduction <add>, %4, %cst [1] : vector<2x32xf32> to vector<2xf32>
    %6 = vector.shape_cast %5 : vector<2xf32> to vector<2x1xf32>
    %c0_6 = arith.constant 0 : index
    %c0_7 = arith.constant 0 : index
    %7 = vector.load %arg6[%c0_6, %c0_7] : memref<1x32xf32, #tpu.memory_space<vmem>>, vector<1x32xf32>
    %8 = vector.shape_cast %7 : vector<1x32xf32> to vector<1x1x32xf32>
    %9 = vector.broadcast %8 : vector<1x1x32xf32> to vector<2x8x32xf32>
    %10 = arith.mulf %1, %9 : vector<2x8x32xf32>
    %cst_8 = arith.constant dense<0.000000e+00> : vector<2x8xf32>
    %11 = vector.multi_reduction <add>, %10, %cst_8 [2] : vector<2x8x32xf32> to vector<2x8xf32>
    %12 = vector.broadcast %6 : vector<2x1xf32> to vector<2x8xf32>
    %13 = arith.addf %12, %11 : vector<2x8xf32>
    %c0_9 = arith.constant 0 : index
    %c0_10 = arith.constant 0 : index
    %14 = vector.load %arg7[%c0_9, %c0_10] : memref<1x1xf32, #tpu.memory_space<vmem>>, vector<1x1xf32>
    %15 = vector.broadcast %14 : vector<1x1xf32> to vector<2x8xf32>
    %16 = arith.addf %13, %15 : vector<2x8xf32>
    %cst_11 = arith.constant 0.000000e+00 : f32
    %17 = vector.broadcast %cst_11 : f32 to vector<2x8xf32>
    %18 = arith.cmpf oge, %16, %17 : vector<2x8xf32>
    %cst_12 = arith.constant 0.00999999977 : f32
    %19 = vector.broadcast %cst_12 : f32 to vector<2x8xf32>
    %20 = arith.mulf %19, %16 : vector<2x8xf32>
    %21 = arith.select %18, %16, %20 : vector<2x8xi1>, vector<2x8xf32>
    %c0_13 = arith.constant 0 : index
    %c0_14 = arith.constant 0 : index
    %22 = vector.load %arg2[%c0_13, %c0_14] : memref<2x8xf32, #tpu.memory_space<vmem>>, vector<2x8xf32>
    %23 = arith.addf %21, %22 : vector<2x8xf32>
    %cst_15 = arith.constant dense<0xFF800000> : vector<2xf32>
    %24 = vector.multi_reduction <maximumf>, %23, %cst_15 [1] : vector<2x8xf32> to vector<2xf32>
    %25 = vector.shape_cast %24 : vector<2xf32> to vector<2x1xf32>
    %26 = vector.broadcast %25 : vector<2x1xf32> to vector<2x8xf32>
    %27 = arith.subf %23, %26 : vector<2x8xf32>
    %28 = math.exp %27 : vector<2x8xf32>
    %cst_16 = arith.constant dense<0.000000e+00> : vector<2xf32>
    %29 = vector.multi_reduction <add>, %28, %cst_16 [1] : vector<2x8xf32> to vector<2xf32>
    %30 = vector.shape_cast %29 : vector<2xf32> to vector<2x1xf32>
    %31 = vector.broadcast %30 : vector<2x1xf32> to vector<2x8xf32>
    %32 = arith.divf %28, %31 : vector<2x8xf32>
    %c0_17 = arith.constant 0 : index
    %c0_18 = arith.constant 0 : index
    %33 = vector.load %arg3[%c0_17, %c0_18] : memref<2x8xf32, #tpu.memory_space<vmem>>, vector<2x8xf32>
    %34 = arith.mulf %32, %33 : vector<2x8xf32>
    %c0_19 = arith.constant 0 : index
    %c0_20 = arith.constant 0 : index
    %35 = vector.load %arg18[%c0_19, %c0_20] : memref<2x8xf32, #tpu.memory_space<vmem>>, vector<2x8xf32>
    tpu.vector_store %arg18[%c0_19, %c0_20], %34 {strides = array<i32>} : memref<2x8xf32, #tpu.memory_space<vmem>>, vector<2x8xf32>,
    %36 = vector.shape_cast %34 : vector<2x8xf32> to vector<2x8x1xf32>
    %37 = vector.broadcast %36 : vector<2x8x1xf32> to vector<2x8x32xf32>
    %38 = arith.mulf %37, %1 : vector<2x8x32xf32>
    %cst_21 = arith.constant dense<0.000000e+00> : vector<2x32xf32>
    %39 = vector.multi_reduction <add>, %38, %cst_21 [1] : vector<2x8x32xf32> to vector<2x32xf32>
    %cst_22 = arith.constant dense<0.000000e+00> : vector<2xf32>
    %40 = vector.multi_reduction <add>, %34, %cst_22 [1] : vector<2x8xf32> to vector<2xf32>
    %41 = vector.shape_cast %40 : vector<2xf32> to vector<2x1xf32>
    %c0_23 = arith.constant 0 : index
    %c0_24 = arith.constant 0 : index
    %42 = vector.load %arg8[%c0_23, %c0_24] : memref<32x32xf32, #tpu.memory_space<vmem>>, vector<32x32xf32>
    %cst_25 = arith.constant dense<0.000000e+00> : vector<2x32xf32>
    %43 = tpu.matmul %39, %42, %cst_25 {dimension_numbers = #tpu.dot_dimension_numbers<[1], [0], [0], [1], [0, 0, 1, 1], [], []>} : vector<2x32xf32>, vector<32x32xf32>, vector<2x32xf32> -> vector<2x32xf32>
    %c0_26 = arith.constant 0 : index
    %c0_27 = arith.constant 0 : index
    %44 = vector.load %arg9[%c0_26, %c0_27] : memref<1x32xf32, #tpu.memory_space<vmem>>, vector<1x32xf32>
    %45 = vector.broadcast %41 : vector<2x1xf32> to vector<2x32xf32>
    %46 = vector.broadcast %44 : vector<1x32xf32> to vector<2x32xf32>
    %47 = arith.mulf %45, %46 : vector<2x32xf32>
    %48 = arith.addf %43, %47 : vector<2x32xf32>
    %cst_28 = arith.constant 0.000000e+00 : f32
    %49 = vector.broadcast %cst_28 : f32 to vector<2x32xf32>
    %50 = arith.cmpf ogt, %48, %49 : vector<2x32xf32>
    %51 = math.exp %48 : vector<2x32xf32>
    %cst_29 = arith.constant 1.000000e+00 : f32
    %52 = vector.broadcast %cst_29 : f32 to vector<2x32xf32>
    %53 = arith.subf %51, %52 : vector<2x32xf32>
    %54 = arith.select %50, %48, %53 : vector<2x32xi1>, vector<2x32xf32>
    %c0_30 = arith.constant 0 : index
    %c0_31 = arith.constant 0 : index
    %55 = vector.load %arg10[%c0_30, %c0_31] : memref<1x32xf32, #tpu.memory_space<vmem>>, vector<1x32xf32>
    %56 = vector.broadcast %55 : vector<1x32xf32> to vector<2x32xf32>
    %57 = arith.mulf %54, %56 : vector<2x32xf32>
    %c0_32 = arith.constant 0 : index
    %c0_33 = arith.constant 0 : index
    %58 = vector.load %arg11[%c0_32, %c0_33] : memref<1x32xf32, #tpu.memory_space<vmem>>, vector<1x32xf32>
    %59 = vector.broadcast %58 : vector<1x32xf32> to vector<2x32xf32>
    %60 = arith.addf %57, %59 : vector<2x32xf32>
    %c0_34 = arith.constant 0 : index
    %c0_35 = arith.constant 0 : index
    %61 = vector.load %arg4[%c0_34, %c0_35] : memref<2x32xf32, #tpu.memory_space<vmem>>, vector<2x32xf32>
    %c0_36 = arith.constant 0 : index
    %c0_37 = arith.constant 0 : index
    %c0_38 = arith.constant 0 : index
    %62 = vector.load %arg12[%c0_36, %c0_37, %c0_38] : memref<3x32x32xf32, #tpu.memory_space<vmem>>, vector<3x32x32xf32>
    %c0_39 = arith.constant 0 : index
    %c0_40 = arith.constant 0 : index
    %c0_41 = arith.constant 0 : index
    %63 = vector.load %arg13[%c0_39, %c0_40, %c0_41] : memref<3x32x32xf32, #tpu.memory_space<vmem>>, vector<3x32x32xf32>
    %c0_42 = arith.constant 0 : index
    %c0_43 = arith.constant 0 : index
    %c0_44 = arith.constant 0 : index
    %64 = vector.load %arg14[%c0_42, %c0_43, %c0_44] : memref<3x1x32xf32, #tpu.memory_space<vmem>>, vector<3x1x32xf32>
    %c0_45 = arith.constant 0 : index
    %c0_46 = arith.constant 0 : index
    %c0_47 = arith.constant 0 : index
    %65 = vector.load %arg15[%c0_45, %c0_46, %c0_47] : memref<3x1x32xf32, #tpu.memory_space<vmem>>, vector<3x1x32xf32>
    %66 = vector.extract_strided_slice %62 {offsets = [0, 0, 0], sizes = [1, 32, 32], strides = [1, 1, 1]} : vector<3x32x32xf32> to vector<1x32x32xf32>
    %67 = vector.shape_cast %66 : vector<1x32x32xf32> to vector<32x32xf32>
    %cst_48 = arith.constant dense<0.000000e+00> : vector<2x32xf32>
    %68 = tpu.matmul %60, %67, %cst_48 {dimension_numbers = #tpu.dot_dimension_numbers<[1], [0], [0], [1], [0, 0, 1, 1], [], []>} : vector<2x32xf32>, vector<32x32xf32>, vector<2x32xf32> -> vector<2x32xf32>
    %69 = vector.extract_strided_slice %64 {offsets = [0, 0, 0], sizes = [1, 1, 32], strides = [1, 1, 1]} : vector<3x1x32xf32> to vector<1x1x32xf32>
    %70 = vector.shape_cast %69 : vector<1x1x32xf32> to vector<1x32xf32>
    %71 = vector.broadcast %70 : vector<1x32xf32> to vector<2x32xf32>
    %72 = arith.addf %68, %71 : vector<2x32xf32>
    %73 = vector.extract_strided_slice %63 {offsets = [0, 0, 0], sizes = [1, 32, 32], strides = [1, 1, 1]} : vector<3x32x32xf32> to vector<1x32x32xf32>
    %74 = vector.shape_cast %73 : vector<1x32x32xf32> to vector<32x32xf32>
    %cst_49 = arith.constant dense<0.000000e+00> : vector<2x32xf32>
    %75 = tpu.matmul %61, %74, %cst_49 {dimension_numbers = #tpu.dot_dimension_numbers<[1], [0], [0], [1], [0, 0, 1, 1], [], []>} : vector<2x32xf32>, vector<32x32xf32>, vector<2x32xf32> -> vector<2x32xf32>
    %76 = vector.extract_strided_slice %65 {offsets = [0, 0, 0], sizes = [1, 1, 32], strides = [1, 1, 1]} : vector<3x1x32xf32> to vector<1x1x32xf32>
    %77 = vector.shape_cast %76 : vector<1x1x32xf32> to vector<1x32xf32>
    %78 = vector.broadcast %77 : vector<1x32xf32> to vector<2x32xf32>
    %79 = arith.addf %75, %78 : vector<2x32xf32>
    %80 = vector.extract_strided_slice %62 {offsets = [1, 0, 0], sizes = [1, 32, 32], strides = [1, 1, 1]} : vector<3x32x32xf32> to vector<1x32x32xf32>
    %81 = vector.shape_cast %80 : vector<1x32x32xf32> to vector<32x32xf32>
    %cst_50 = arith.constant dense<0.000000e+00> : vector<2x32xf32>
    %82 = tpu.matmul %60, %81, %cst_50 {dimension_numbers = #tpu.dot_dimension_numbers<[1], [0], [0], [1], [0, 0, 1, 1], [], []>} : vector<2x32xf32>, vector<32x32xf32>, vector<2x32xf32> -> vector<2x32xf32>
    %83 = vector.extract_strided_slice %64 {offsets = [1, 0, 0], sizes = [1, 1, 32], strides = [1, 1, 1]} : vector<3x1x32xf32> to vector<1x1x32xf32>
    %84 = vector.shape_cast %83 : vector<1x1x32xf32> to vector<1x32xf32>
    %85 = vector.broadcast %84 : vector<1x32xf32> to vector<2x32xf32>
    %86 = arith.addf %82, %85 : vector<2x32xf32>
    %87 = vector.extract_strided_slice %63 {offsets = [1, 0, 0], sizes = [1, 32, 32], strides = [1, 1, 1]} : vector<3x32x32xf32> to vector<1x32x32xf32>
    %88 = vector.shape_cast %87 : vector<1x32x32xf32> to vector<32x32xf32>
    %cst_51 = arith.constant dense<0.000000e+00> : vector<2x32xf32>
    %89 = tpu.matmul %61, %88, %cst_51 {dimension_numbers = #tpu.dot_dimension_numbers<[1], [0], [0], [1], [0, 0, 1, 1], [], []>} : vector<2x32xf32>, vector<32x32xf32>, vector<2x32xf32> -> vector<2x32xf32>
    %90 = vector.extract_strided_slice %65 {offsets = [1, 0, 0], sizes = [1, 1, 32], strides = [1, 1, 1]} : vector<3x1x32xf32> to vector<1x1x32xf32>
    %91 = vector.shape_cast %90 : vector<1x1x32xf32> to vector<1x32xf32>
    %92 = vector.broadcast %91 : vector<1x32xf32> to vector<2x32xf32>
    %93 = arith.addf %89, %92 : vector<2x32xf32>
    %94 = vector.extract_strided_slice %62 {offsets = [2, 0, 0], sizes = [1, 32, 32], strides = [1, 1, 1]} : vector<3x32x32xf32> to vector<1x32x32xf32>
    %95 = vector.shape_cast %94 : vector<1x32x32xf32> to vector<32x32xf32>
    %cst_52 = arith.constant dense<0.000000e+00> : vector<2x32xf32>
    %96 = tpu.matmul %60, %95, %cst_52 {dimension_numbers = #tpu.dot_dimension_numbers<[1], [0], [0], [1], [0, 0, 1, 1], [], []>} : vector<2x32xf32>, vector<32x32xf32>, vector<2x32xf32> -> vector<2x32xf32>
    %97 = vector.extract_strided_slice %64 {offsets = [2, 0, 0], sizes = [1, 1, 32], strides = [1, 1, 1]} : vector<3x1x32xf32> to vector<1x1x32xf32>
    %98 = vector.shape_cast %97 : vector<1x1x32xf32> to vector<1x32xf32>
    %99 = vector.broadcast %98 : vector<1x32xf32> to vector<2x32xf32>
    %100 = arith.addf %96, %99 : vector<2x32xf32>
    %101 = vector.extract_strided_slice %63 {offsets = [2, 0, 0], sizes = [1, 32, 32], strides = [1, 1, 1]} : vector<3x32x32xf32> to vector<1x32x32xf32>
    %102 = vector.shape_cast %101 : vector<1x32x32xf32> to vector<32x32xf32>
    %cst_53 = arith.constant dense<0.000000e+00> : vector<2x32xf32>
    %103 = tpu.matmul %61, %102, %cst_53 {dimension_numbers = #tpu.dot_dimension_numbers<[1], [0], [0], [1], [0, 0, 1, 1], [], []>} : vector<2x32xf32>, vector<32x32xf32>, vector<2x32xf32> -> vector<2x32xf32>
    %104 = vector.extract_strided_slice %65 {offsets = [2, 0, 0], sizes = [1, 1, 32], strides = [1, 1, 1]} : vector<3x1x32xf32> to vector<1x1x32xf32>
    %105 = vector.shape_cast %104 : vector<1x1x32xf32> to vector<1x32xf32>
    %106 = vector.broadcast %105 : vector<1x32xf32> to vector<2x32xf32>
    %107 = arith.addf %103, %106 : vector<2x32xf32>
    %108 = arith.addf %72, %79 : vector<2x32xf32>
    %109 = arith.negf %108 : vector<2x32xf32>
    %110 = math.exp %109 : vector<2x32xf32>
    %cst_54 = arith.constant 1.000000e+00 : f32
    %111 = vector.broadcast %cst_54 : f32 to vector<2x32xf32>
    %112 = arith.addf %111, %110 : vector<2x32xf32>
    %113 = arith.divf %111, %112 : vector<2x32xf32>
    %114 = arith.addf %86, %93 : vector<2x32xf32>
    %115 = arith.negf %114 : vector<2x32xf32>
    %116 = math.exp %115 : vector<2x32xf32>
    %cst_55 = arith.constant 1.000000e+00 : f32
    %117 = vector.broadcast %cst_55 : f32 to vector<2x32xf32>
    %118 = arith.addf %117, %116 : vector<2x32xf32>
    %119 = arith.divf %117, %118 : vector<2x32xf32>
    %120 = arith.mulf %113, %107 : vector<2x32xf32>
    %121 = arith.addf %100, %120 : vector<2x32xf32>
    %122 = math.tanh %121 : vector<2x32xf32>
    %cst_56 = arith.constant 1.000000e+00 : f32
    %123 = vector.broadcast %cst_56 : f32 to vector<2x32xf32>
    %124 = arith.subf %123, %119 : vector<2x32xf32>
    %125 = arith.mulf %124, %122 : vector<2x32xf32>
    %126 = arith.mulf %119, %61 : vector<2x32xf32>
    %127 = arith.addf %125, %126 : vector<2x32xf32>
    %c0_57 = arith.constant 0 : index
    %c0_58 = arith.constant 0 : index
    %128 = vector.load %arg16[%c0_57, %c0_58] : memref<2x32xf32, #tpu.memory_space<vmem>>, vector<2x32xf32>
    tpu.vector_store %arg16[%c0_57, %c0_58], %127 {strides = array<i32>} : memref<2x32xf32, #tpu.memory_space<vmem>>, vector<2x32xf32>,
    %cst_59 = arith.constant 0.000000e+00 : f32
    %129 = vector.broadcast %cst_59 : f32 to vector<2x32xf32>
    %130 = arith.maximumf %127, %129 : vector<2x32xf32>
    %c0_60 = arith.constant 0 : index
    %c0_61 = arith.constant 0 : index
    %131 = vector.load %arg17[%c0_60, %c0_61] : memref<2x32xf32, #tpu.memory_space<vmem>>, vector<2x32xf32>
    tpu.vector_store %arg17[%c0_60, %c0_61], %130 {strides = array<i32>} : memref<2x32xf32, #tpu.memory_space<vmem>>, vector<2x32xf32>,
    return
  }
}

module attributes {stable_mosaic.version = 11 : i64} {
  func.func @_attn_gru_kernel(%arg0: memref<2x32xf32, #tpu.memory_space<vmem>>, %arg1: memref<2x8x32xf32, #tpu.memory_space<vmem>>, %arg2: memref<2x8xf32, #tpu.memory_space<vmem>>, %arg3: memref<2x8xf32, #tpu.memory_space<vmem>>, %arg4: memref<2x32xf32, #tpu.memory_space<vmem>>, %arg5: memref<1x32xf32, #tpu.memory_space<vmem>>, %arg6: memref<1x32xf32, #tpu.memory_space<vmem>>, %arg7: memref<1x1xf32, #tpu.memory_space<vmem>>, %arg8: memref<32x32xf32, #tpu.memory_space<vmem>>, %arg9: memref<1x32xf32, #tpu.memory_space<vmem>>, %arg10: memref<1x32xf32, #tpu.memory_space<vmem>>, %arg11: memref<1x32xf32, #tpu.memory_space<vmem>>, %arg12: memref<3x32x32xf32, #tpu.memory_space<vmem>>, %arg13: memref<3x32x32xf32, #tpu.memory_space<vmem>>, %arg14: memref<3x1x32xf32, #tpu.memory_space<vmem>>, %arg15: memref<3x1x32xf32, #tpu.memory_space<vmem>>, %arg16: memref<2x32xf32, #tpu.memory_space<vmem>>, %arg17: memref<2x32xf32, #tpu.memory_space<vmem>>, %arg18: memref<2x8xf32, #tpu.memory_space<vmem>>) attributes {dimension_semantics = [], scalar_prefetch = 0 : i64, scratch_operands = 0 : i64, tpu.core_type = #tpu.core_type<tc>} {
    %c0 = arith.constant 0 : index
    %c0_0 = arith.constant 0 : index
    %0 = vector.load %arg0[%c0, %c0_0] : memref<2x32xf32, #tpu.memory_space<vmem>>, vector<2x32xf32>
    %c0_1 = arith.constant 0 : index
    %c0_2 = arith.constant 0 : index
    %c0_3 = arith.constant 0 : index
    %1 = vector.load %arg1[%c0_1, %c0_2, %c0_3] : memref<2x8x32xf32, #tpu.memory_space<vmem>>, vector<2x8x32xf32>
    %c0_4 = arith.constant 0 : index
    %c0_5 = arith.constant 0 : index
    %2 = vector.load %arg5[%c0_4, %c0_5] : memref<1x32xf32, #tpu.memory_space<vmem>>, vector<1x32xf32>
    %3 = vector.broadcast %2 : vector<1x32xf32> to vector<2x32xf32>
    %4 = arith.mulf %0, %3 : vector<2x32xf32>
    %cst = arith.constant dense<0.000000e+00> : vector<2xf32>
    %5 = vector.multi_reduction <add>, %4, %cst [1] : vector<2x32xf32> to vector<2xf32>
    %6 = vector.shape_cast %5 : vector<2xf32> to vector<2x1xf32>
    %c0_6 = arith.constant 0 : index
    %c0_7 = arith.constant 0 : index
    %7 = vector.load %arg6[%c0_6, %c0_7] : memref<1x32xf32, #tpu.memory_space<vmem>>, vector<1x32xf32>
    %8 = vector.shape_cast %7 : vector<1x32xf32> to vector<1x1x32xf32>
    %9 = vector.broadcast %8 : vector<1x1x32xf32> to vector<2x8x32xf32>
    %10 = arith.mulf %1, %9 : vector<2x8x32xf32>
    %cst_8 = arith.constant dense<0.000000e+00> : vector<2x8xf32>
    %11 = vector.multi_reduction <add>, %10, %cst_8 [2] : vector<2x8x32xf32> to vector<2x8xf32>
    %12 = vector.broadcast %6 : vector<2x1xf32> to vector<2x8xf32>
    %13 = arith.addf %12, %11 : vector<2x8xf32>
    %c0_9 = arith.constant 0 : index
    %c0_10 = arith.constant 0 : index
    %14 = vector.load %arg7[%c0_9, %c0_10] : memref<1x1xf32, #tpu.memory_space<vmem>>, vector<1x1xf32>
    %15 = vector.broadcast %14 : vector<1x1xf32> to vector<2x8xf32>
    %16 = arith.addf %13, %15 : vector<2x8xf32>
    %cst_11 = arith.constant 0.000000e+00 : f32
    %17 = vector.broadcast %cst_11 : f32 to vector<2x8xf32>
    %18 = arith.cmpf oge, %16, %17 : vector<2x8xf32>
    %cst_12 = arith.constant 0.00999999977 : f32
    %19 = vector.broadcast %cst_12 : f32 to vector<2x8xf32>
    %20 = arith.mulf %19, %16 : vector<2x8xf32>
    %21 = arith.select %18, %16, %20 : vector<2x8xi1>, vector<2x8xf32>
    %c0_13 = arith.constant 0 : index
    %c0_14 = arith.constant 0 : index
    %22 = vector.load %arg2[%c0_13, %c0_14] : memref<2x8xf32, #tpu.memory_space<vmem>>, vector<2x8xf32>
    %23 = arith.addf %21, %22 : vector<2x8xf32>
    %cst_15 = arith.constant dense<0xFF800000> : vector<2xf32>
    %24 = vector.multi_reduction <maximumf>, %23, %cst_15 [1] : vector<2x8xf32> to vector<2xf32>
    %25 = vector.shape_cast %24 : vector<2xf32> to vector<2x1xf32>
    %26 = vector.broadcast %25 : vector<2x1xf32> to vector<2x8xf32>
    %27 = arith.subf %23, %26 : vector<2x8xf32>
    %28 = math.exp %27 : vector<2x8xf32>
    %cst_16 = arith.constant dense<0.000000e+00> : vector<2xf32>
    %29 = vector.multi_reduction <add>, %28, %cst_16 [1] : vector<2x8xf32> to vector<2xf32>
    %30 = vector.shape_cast %29 : vector<2xf32> to vector<2x1xf32>
    %31 = vector.broadcast %30 : vector<2x1xf32> to vector<2x8xf32>
    %32 = arith.divf %28, %31 : vector<2x8xf32>
    %c0_17 = arith.constant 0 : index
    %c0_18 = arith.constant 0 : index
    %33 = vector.load %arg3[%c0_17, %c0_18] : memref<2x8xf32, #tpu.memory_space<vmem>>, vector<2x8xf32>
    %34 = arith.mulf %32, %33 : vector<2x8xf32>
    %c0_19 = arith.constant 0 : index
    %c0_20 = arith.constant 0 : index
    %35 = vector.load %arg18[%c0_19, %c0_20] : memref<2x8xf32, #tpu.memory_space<vmem>>, vector<2x8xf32>
    tpu.vector_store %arg18[%c0_19, %c0_20], %34 {strides = array<i32>} : memref<2x8xf32, #tpu.memory_space<vmem>>, vector<2x8xf32>,
    %36 = vector.shape_cast %34 : vector<2x8xf32> to vector<2x8x1xf32>
    %37 = vector.broadcast %36 : vector<2x8x1xf32> to vector<2x8x32xf32>
    %38 = arith.mulf %37, %1 : vector<2x8x32xf32>
    %cst_21 = arith.constant dense<0.000000e+00> : vector<2x32xf32>
    %39 = vector.multi_reduction <add>, %38, %cst_21 [1] : vector<2x8x32xf32> to vector<2x32xf32>
    %cst_22 = arith.constant dense<0.000000e+00> : vector<2xf32>
    %40 = vector.multi_reduction <add>, %34, %cst_22 [1] : vector<2x8xf32> to vector<2xf32>
    %41 = vector.shape_cast %40 : vector<2xf32> to vector<2x1xf32>
    %c0_23 = arith.constant 0 : index
    %c0_24 = arith.constant 0 : index
    %42 = vector.load %arg8[%c0_23, %c0_24] : memref<32x32xf32, #tpu.memory_space<vmem>>, vector<32x32xf32>
    %cst_25 = arith.constant dense<0.000000e+00> : vector<2x32xf32>
    %43 = tpu.matmul %39, %42, %cst_25 {dimension_numbers = #tpu.dot_dimension_numbers<[1], [0], [0], [1], [0, 0, 1, 1], [], []>} : vector<2x32xf32>, vector<32x32xf32>, vector<2x32xf32> -> vector<2x32xf32>
    %c0_26 = arith.constant 0 : index
    %c0_27 = arith.constant 0 : index
    %44 = vector.load %arg9[%c0_26, %c0_27] : memref<1x32xf32, #tpu.memory_space<vmem>>, vector<1x32xf32>
    %45 = vector.broadcast %41 : vector<2x1xf32> to vector<2x32xf32>
    %46 = vector.broadcast %44 : vector<1x32xf32> to vector<2x32xf32>
    %47 = arith.mulf %45, %46 : vector<2x32xf32>
    %48 = arith.addf %43, %47 : vector<2x32xf32>
    %cst_28 = arith.constant 0.000000e+00 : f32
    %49 = vector.broadcast %cst_28 : f32 to vector<2x32xf32>
    %50 = arith.cmpf ogt, %48, %49 : vector<2x32xf32>
    %51 = math.exp %48 : vector<2x32xf32>
    %cst_29 = arith.constant 1.000000e+00 : f32
    %52 = vector.broadcast %cst_29 : f32 to vector<2x32xf32>
    %53 = arith.subf %51, %52 : vector<2x32xf32>
    %54 = arith.select %50, %48, %53 : vector<2x32xi1>, vector<2x32xf32>
    %c0_30 = arith.constant 0 : index
    %c0_31 = arith.constant 0 : index
    %55 = vector.load %arg10[%c0_30, %c0_31] : memref<1x32xf32, #tpu.memory_space<vmem>>, vector<1x32xf32>
    %56 = vector.broadcast %55 : vector<1x32xf32> to vector<2x32xf32>
    %57 = arith.mulf %54, %56 : vector<2x32xf32>
    %c0_32 = arith.constant 0 : index
    %c0_33 = arith.constant 0 : index
    %58 = vector.load %arg11[%c0_32, %c0_33] : memref<1x32xf32, #tpu.memory_space<vmem>>, vector<1x32xf32>
    %59 = vector.broadcast %58 : vector<1x32xf32> to vector<2x32xf32>
    %60 = arith.addf %57, %59 : vector<2x32xf32>
    %c0_34 = arith.constant 0 : index
    %c0_35 = arith.constant 0 : index
    %61 = vector.load %arg4[%c0_34, %c0_35] : memref<2x32xf32, #tpu.memory_space<vmem>>, vector<2x32xf32>
    %c0_36 = arith.constant 0 : index
    %c0_37 = arith.constant 0 : index
    %c0_38 = arith.constant 0 : index
    %62 = vector.load %arg12[%c0_36, %c0_37, %c0_38] : memref<3x32x32xf32, #tpu.memory_space<vmem>>, vector<3x32x32xf32>
    %c0_39 = arith.constant 0 : index
    %c0_40 = arith.constant 0 : index
    %c0_41 = arith.constant 0 : index
    %63 = vector.load %arg13[%c0_39, %c0_40, %c0_41] : memref<3x32x32xf32, #tpu.memory_space<vmem>>, vector<3x32x32xf32>
    %c0_42 = arith.constant 0 : index
    %c0_43 = arith.constant 0 : index
    %c0_44 = arith.constant 0 : index
    %64 = vector.load %arg14[%c0_42, %c0_43, %c0_44] : memref<3x1x32xf32, #tpu.memory_space<vmem>>, vector<3x1x32xf32>
    %c0_45 = arith.constant 0 : index
    %c0_46 = arith.constant 0 : index
    %c0_47 = arith.constant 0 : index
    %65 = vector.load %arg15[%c0_45, %c0_46, %c0_47] : memref<3x1x32xf32, #tpu.memory_space<vmem>>, vector<3x1x32xf32>
    %66 = vector.extract_strided_slice %62 {offsets = [0, 0, 0], sizes = [1, 32, 32], strides = [1, 1, 1]} : vector<3x32x32xf32> to vector<1x32x32xf32>
    %67 = vector.shape_cast %66 : vector<1x32x32xf32> to vector<32x32xf32>
    %cst_48 = arith.constant dense<0.000000e+00> : vector<2x32xf32>
    %68 = tpu.matmul %60, %67, %cst_48 {dimension_numbers = #tpu.dot_dimension_numbers<[1], [0], [0], [1], [0, 0, 1, 1], [], []>} : vector<2x32xf32>, vector<32x32xf32>, vector<2x32xf32> -> vector<2x32xf32>
    %69 = vector.extract_strided_slice %64 {offsets = [0, 0, 0], sizes = [1, 1, 32], strides = [1, 1, 1]} : vector<3x1x32xf32> to vector<1x1x32xf32>
    %70 = vector.shape_cast %69 : vector<1x1x32xf32> to vector<1x32xf32>
    %71 = vector.broadcast %70 : vector<1x32xf32> to vector<2x32xf32>
    %72 = arith.addf %68, %71 : vector<2x32xf32>
    %73 = vector.extract_strided_slice %63 {offsets = [0, 0, 0], sizes = [1, 32, 32], strides = [1, 1, 1]} : vector<3x32x32xf32> to vector<1x32x32xf32>
    %74 = vector.shape_cast %73 : vector<1x32x32xf32> to vector<32x32xf32>
    %cst_49 = arith.constant dense<0.000000e+00> : vector<2x32xf32>
    %75 = tpu.matmul %61, %74, %cst_49 {dimension_numbers = #tpu.dot_dimension_numbers<[1], [0], [0], [1], [0, 0, 1, 1], [], []>} : vector<2x32xf32>, vector<32x32xf32>, vector<2x32xf32> -> vector<2x32xf32>
    %76 = vector.extract_strided_slice %65 {offsets = [0, 0, 0], sizes = [1, 1, 32], strides = [1, 1, 1]} : vector<3x1x32xf32> to vector<1x1x32xf32>
    %77 = vector.shape_cast %76 : vector<1x1x32xf32> to vector<1x32xf32>
    %78 = vector.broadcast %77 : vector<1x32xf32> to vector<2x32xf32>
    %79 = arith.addf %75, %78 : vector<2x32xf32>
    %80 = vector.extract_strided_slice %62 {offsets = [1, 0, 0], sizes = [1, 32, 32], strides = [1, 1, 1]} : vector<3x32x32xf32> to vector<1x32x32xf32>
    %81 = vector.shape_cast %80 : vector<1x32x32xf32> to vector<32x32xf32>
    %cst_50 = arith.constant dense<0.000000e+00> : vector<2x32xf32>
    %82 = tpu.matmul %60, %81, %cst_50 {dimension_numbers = #tpu.dot_dimension_numbers<[1], [0], [0], [1], [0, 0, 1, 1], [], []>} : vector<2x32xf32>, vector<32x32xf32>, vector<2x32xf32> -> vector<2x32xf32>
    %83 = vector.extract_strided_slice %64 {offsets = [1, 0, 0], sizes = [1, 1, 32], strides = [1, 1, 1]} : vector<3x1x32xf32> to vector<1x1x32xf32>
    %84 = vector.shape_cast %83 : vector<1x1x32xf32> to vector<1x32xf32>
    %85 = vector.broadcast %84 : vector<1x32xf32> to vector<2x32xf32>
    %86 = arith.addf %82, %85 : vector<2x32xf32>
    %87 = vector.extract_strided_slice %63 {offsets = [1, 0, 0], sizes = [1, 32, 32], strides = [1, 1, 1]} : vector<3x32x32xf32> to vector<1x32x32xf32>
    %88 = vector.shape_cast %87 : vector<1x32x32xf32> to vector<32x32xf32>
    %cst_51 = arith.constant dense<0.000000e+00> : vector<2x32xf32>
    %89 = tpu.matmul %61, %88, %cst_51 {dimension_numbers = #tpu.dot_dimension_numbers<[1], [0], [0], [1], [0, 0, 1, 1], [], []>} : vector<2x32xf32>, vector<32x32xf32>, vector<2x32xf32> -> vector<2x32xf32>
    %90 = vector.extract_strided_slice %65 {offsets = [1, 0, 0], sizes = [1, 1, 32], strides = [1, 1, 1]} : vector<3x1x32xf32> to vector<1x1x32xf32>
    %91 = vector.shape_cast %90 : vector<1x1x32xf32> to vector<1x32xf32>
    %92 = vector.broadcast %91 : vector<1x32xf32> to vector<2x32xf32>
    %93 = arith.addf %89, %92 : vector<2x32xf32>
    %94 = vector.extract_strided_slice %62 {offsets = [2, 0, 0], sizes = [1, 32, 32], strides = [1, 1, 1]} : vector<3x32x32xf32> to vector<1x32x32xf32>
    %95 = vector.shape_cast %94 : vector<1x32x32xf32> to vector<32x32xf32>
    %cst_52 = arith.constant dense<0.000000e+00> : vector<2x32xf32>
    %96 = tpu.matmul %60, %95, %cst_52 {dimension_numbers = #tpu.dot_dimension_numbers<[1], [0], [0], [1], [0, 0, 1, 1], [], []>} : vector<2x32xf32>, vector<32x32xf32>, vector<2x32xf32> -> vector<2x32xf32>
    %97 = vector.extract_strided_slice %64 {offsets = [2, 0, 0], sizes = [1, 1, 32], strides = [1, 1, 1]} : vector<3x1x32xf32> to vector<1x1x32xf32>
    %98 = vector.shape_cast %97 : vector<1x1x32xf32> to vector<1x32xf32>
    %99 = vector.broadcast %98 : vector<1x32xf32> to vector<2x32xf32>
    %100 = arith.addf %96, %99 : vector<2x32xf32>
    %101 = vector.extract_strided_slice %63 {offsets = [2, 0, 0], sizes = [1, 32, 32], strides = [1, 1, 1]} : vector<3x32x32xf32> to vector<1x32x32xf32>
    %102 = vector.shape_cast %101 : vector<1x32x32xf32> to vector<32x32xf32>
    %cst_53 = arith.constant dense<0.000000e+00> : vector<2x32xf32>
    %103 = tpu.matmul %61, %102, %cst_53 {dimension_numbers = #tpu.dot_dimension_numbers<[1], [0], [0], [1], [0, 0, 1, 1], [], []>} : vector<2x32xf32>, vector<32x32xf32>, vector<2x32xf32> -> vector<2x32xf32>
    %104 = vector.extract_strided_slice %65 {offsets = [2, 0, 0], sizes = [1, 1, 32], strides = [1, 1, 1]} : vector<3x1x32xf32> to vector<1x1x32xf32>
    %105 = vector.shape_cast %104 : vector<1x1x32xf32> to vector<1x32xf32>
    %106 = vector.broadcast %105 : vector<1x32xf32> to vector<2x32xf32>
    %107 = arith.addf %103, %106 : vector<2x32xf32>
    %108 = arith.addf %72, %79 : vector<2x32xf32>
    %109 = arith.negf %108 : vector<2x32xf32>
    %110 = math.exp %109 : vector<2x32xf32>
    %cst_54 = arith.constant 1.000000e+00 : f32
    %111 = vector.broadcast %cst_54 : f32 to vector<2x32xf32>
    %112 = arith.addf %111, %110 : vector<2x32xf32>
    %113 = arith.divf %111, %112 : vector<2x32xf32>
    %114 = arith.addf %86, %93 : vector<2x32xf32>
    %115 = arith.negf %114 : vector<2x32xf32>
    %116 = math.exp %115 : vector<2x32xf32>
    %cst_55 = arith.constant 1.000000e+00 : f32
    %117 = vector.broadcast %cst_55 : f32 to vector<2x32xf32>
    %118 = arith.addf %117, %116 : vector<2x32xf32>
    %119 = arith.divf %117, %118 : vector<2x32xf32>
    %120 = arith.mulf %113, %107 : vector<2x32xf32>
    %121 = arith.addf %100, %120 : vector<2x32xf32>
    %122 = math.tanh %121 : vector<2x32xf32>
    %cst_56 = arith.constant 1.000000e+00 : f32
    %123 = vector.broadcast %cst_56 : f32 to vector<2x32xf32>
    %124 = arith.subf %123, %119 : vector<2x32xf32>
    %125 = arith.mulf %124, %122 : vector<2x32xf32>
    %126 = arith.mulf %119, %61 : vector<2x32xf32>
    %127 = arith.addf %125, %126 : vector<2x32xf32>
    %c0_57 = arith.constant 0 : index
    %c0_58 = arith.constant 0 : index
    %128 = vector.load %arg16[%c0_57, %c0_58] : memref<2x32xf32, #tpu.memory_space<vmem>>, vector<2x32xf32>
    tpu.vector_store %arg16[%c0_57, %c0_58], %127 {strides = array<i32>} : memref<2x32xf32, #tpu.memory_space<vmem>>, vector<2x32xf32>,
    %cst_59 = arith.constant 0.000000e+00 : f32
    %129 = vector.broadcast %cst_59 : f32 to vector<2x32xf32>
    %130 = arith.maximumf %127, %129 : vector<2x32xf32>
    %c0_60 = arith.constant 0 : index
    %c0_61 = arith.constant 0 : index
    %131 = vector.load %arg17[%c0_60, %c0_61] : memref<2x32xf32, #tpu.memory_space<vmem>>, vector<2x32xf32>
    tpu.vector_store %arg17[%c0_60, %c0_61], %130 {strides = array<i32>} : memref<2x32xf32, #tpu.memory_space<vmem>>, vector<2x32xf32>,
    return
  }
}

module attributes {stable_mosaic.version = 11 : i64} {
  func.func @_tail_kernel(%arg0: memref<2x10xf32, #tpu.memory_space<vmem>>, %arg1: memref<2x32xf32, #tpu.memory_space<vmem>>, %arg2: memref<10x50xf32, #tpu.memory_space<vmem>>, %arg3: memref<1x50xf32, #tpu.memory_space<vmem>>, %arg4: memref<50x40xf32, #tpu.memory_space<vmem>>, %arg5: memref<1x40xf32, #tpu.memory_space<vmem>>, %arg6: memref<40x32xf32, #tpu.memory_space<vmem>>, %arg7: memref<1x32xf32, #tpu.memory_space<vmem>>, %arg8: memref<32x20xf32, #tpu.memory_space<vmem>>, %arg9: memref<1x20xf32, #tpu.memory_space<vmem>>, %arg10: memref<20x8xf32, #tpu.memory_space<vmem>>, %arg11: memref<1x8xf32, #tpu.memory_space<vmem>>, %arg12: memref<32x16xf32, #tpu.memory_space<vmem>>, %arg13: memref<1x16xf32, #tpu.memory_space<vmem>>, %arg14: memref<16x2xf32, #tpu.memory_space<vmem>>, %arg15: memref<8x2xf32, #tpu.memory_space<vmem>>, %arg16: memref<1x2xf32, #tpu.memory_space<vmem>>, %arg17: memref<2x2xf32, #tpu.memory_space<vmem>>, %arg18: memref<2x2xf32, #tpu.memory_space<vmem>>) attributes {dimension_semantics = [], scalar_prefetch = 0 : i64, scratch_operands = 0 : i64, tpu.core_type = #tpu.core_type<tc>} {
    %c0 = arith.constant 0 : index
    %c0_0 = arith.constant 0 : index
    %0 = vector.load %arg0[%c0, %c0_0] : memref<2x10xf32, #tpu.memory_space<vmem>>, vector<2x10xf32>
    %c0_1 = arith.constant 0 : index
    %c0_2 = arith.constant 0 : index
    %1 = vector.load %arg2[%c0_1, %c0_2] : memref<10x50xf32, #tpu.memory_space<vmem>>, vector<10x50xf32>
    %cst = arith.constant dense<0.000000e+00> : vector<2x50xf32>
    %2 = tpu.matmul %0, %1, %cst {dimension_numbers = #tpu.dot_dimension_numbers<[1], [0], [0], [1], [0, 0, 1, 1], [], []>} : vector<2x10xf32>, vector<10x50xf32>, vector<2x50xf32> -> vector<2x50xf32>
    %c0_3 = arith.constant 0 : index
    %c0_4 = arith.constant 0 : index
    %3 = vector.load %arg3[%c0_3, %c0_4] : memref<1x50xf32, #tpu.memory_space<vmem>>, vector<1x50xf32>
    %4 = vector.broadcast %3 : vector<1x50xf32> to vector<2x50xf32>
    %5 = arith.addf %2, %4 : vector<2x50xf32>
    %cst_5 = arith.constant 0.000000e+00 : f32
    %6 = vector.broadcast %cst_5 : f32 to vector<2x50xf32>
    %7 = arith.maximumf %5, %6 : vector<2x50xf32>
    %c0_6 = arith.constant 0 : index
    %c0_7 = arith.constant 0 : index
    %8 = vector.load %arg4[%c0_6, %c0_7] : memref<50x40xf32, #tpu.memory_space<vmem>>, vector<50x40xf32>
    %cst_8 = arith.constant dense<0.000000e+00> : vector<2x40xf32>
    %9 = tpu.matmul %7, %8, %cst_8 {dimension_numbers = #tpu.dot_dimension_numbers<[1], [0], [0], [1], [0, 0, 1, 1], [], []>} : vector<2x50xf32>, vector<50x40xf32>, vector<2x40xf32> -> vector<2x40xf32>
    %c0_9 = arith.constant 0 : index
    %c0_10 = arith.constant 0 : index
    %10 = vector.load %arg5[%c0_9, %c0_10] : memref<1x40xf32, #tpu.memory_space<vmem>>, vector<1x40xf32>
    %11 = vector.broadcast %10 : vector<1x40xf32> to vector<2x40xf32>
    %12 = arith.addf %9, %11 : vector<2x40xf32>
    %cst_11 = arith.constant 0.000000e+00 : f32
    %13 = vector.broadcast %cst_11 : f32 to vector<2x40xf32>
    %14 = arith.maximumf %12, %13 : vector<2x40xf32>
    %c0_12 = arith.constant 0 : index
    %c0_13 = arith.constant 0 : index
    %15 = vector.load %arg6[%c0_12, %c0_13] : memref<40x32xf32, #tpu.memory_space<vmem>>, vector<40x32xf32>
    %cst_14 = arith.constant dense<0.000000e+00> : vector<2x32xf32>
    %16 = tpu.matmul %14, %15, %cst_14 {dimension_numbers = #tpu.dot_dimension_numbers<[1], [0], [0], [1], [0, 0, 1, 1], [], []>} : vector<2x40xf32>, vector<40x32xf32>, vector<2x32xf32> -> vector<2x32xf32>
    %c0_15 = arith.constant 0 : index
    %c0_16 = arith.constant 0 : index
    %17 = vector.load %arg7[%c0_15, %c0_16] : memref<1x32xf32, #tpu.memory_space<vmem>>, vector<1x32xf32>
    %18 = vector.broadcast %17 : vector<1x32xf32> to vector<2x32xf32>
    %19 = arith.addf %16, %18 : vector<2x32xf32>
    %cst_17 = arith.constant 0.000000e+00 : f32
    %20 = vector.broadcast %cst_17 : f32 to vector<2x32xf32>
    %21 = arith.maximumf %19, %20 : vector<2x32xf32>
    %c0_18 = arith.constant 0 : index
    %c0_19 = arith.constant 0 : index
    %22 = vector.load %arg8[%c0_18, %c0_19] : memref<32x20xf32, #tpu.memory_space<vmem>>, vector<32x20xf32>
    %cst_20 = arith.constant dense<0.000000e+00> : vector<2x20xf32>
    %23 = tpu.matmul %21, %22, %cst_20 {dimension_numbers = #tpu.dot_dimension_numbers<[1], [0], [0], [1], [0, 0, 1, 1], [], []>} : vector<2x32xf32>, vector<32x20xf32>, vector<2x20xf32> -> vector<2x20xf32>
    %c0_21 = arith.constant 0 : index
    %c0_22 = arith.constant 0 : index
    %24 = vector.load %arg9[%c0_21, %c0_22] : memref<1x20xf32, #tpu.memory_space<vmem>>, vector<1x20xf32>
    %25 = vector.broadcast %24 : vector<1x20xf32> to vector<2x20xf32>
    %26 = arith.addf %23, %25 : vector<2x20xf32>
    %cst_23 = arith.constant 0.000000e+00 : f32
    %27 = vector.broadcast %cst_23 : f32 to vector<2x20xf32>
    %28 = arith.maximumf %26, %27 : vector<2x20xf32>
    %c0_24 = arith.constant 0 : index
    %c0_25 = arith.constant 0 : index
    %29 = vector.load %arg10[%c0_24, %c0_25] : memref<20x8xf32, #tpu.memory_space<vmem>>, vector<20x8xf32>
    %cst_26 = arith.constant dense<0.000000e+00> : vector<2x8xf32>
    %30 = tpu.matmul %28, %29, %cst_26 {dimension_numbers = #tpu.dot_dimension_numbers<[1], [0], [0], [1], [0, 0, 1, 1], [], []>} : vector<2x20xf32>, vector<20x8xf32>, vector<2x8xf32> -> vector<2x8xf32>
    %c0_27 = arith.constant 0 : index
    %c0_28 = arith.constant 0 : index
    %31 = vector.load %arg11[%c0_27, %c0_28] : memref<1x8xf32, #tpu.memory_space<vmem>>, vector<1x8xf32>
    %32 = vector.broadcast %31 : vector<1x8xf32> to vector<2x8xf32>
    %33 = arith.addf %30, %32 : vector<2x8xf32>
    %c0_29 = arith.constant 0 : index
    %c0_30 = arith.constant 0 : index
    %34 = vector.load %arg1[%c0_29, %c0_30] : memref<2x32xf32, #tpu.memory_space<vmem>>, vector<2x32xf32>
    %c0_31 = arith.constant 0 : index
    %c0_32 = arith.constant 0 : index
    %35 = vector.load %arg12[%c0_31, %c0_32] : memref<32x16xf32, #tpu.memory_space<vmem>>, vector<32x16xf32>
    %cst_33 = arith.constant dense<0.000000e+00> : vector<2x16xf32>
    %36 = tpu.matmul %34, %35, %cst_33 {dimension_numbers = #tpu.dot_dimension_numbers<[1], [0], [0], [1], [0, 0, 1, 1], [], []>} : vector<2x32xf32>, vector<32x16xf32>, vector<2x16xf32> -> vector<2x16xf32>
    %c0_34 = arith.constant 0 : index
    %c0_35 = arith.constant 0 : index
    %37 = vector.load %arg13[%c0_34, %c0_35] : memref<1x16xf32, #tpu.memory_space<vmem>>, vector<1x16xf32>
    %38 = vector.broadcast %37 : vector<1x16xf32> to vector<2x16xf32>
    %39 = arith.addf %36, %38 : vector<2x16xf32>
    %c0_36 = arith.constant 0 : index
    %c0_37 = arith.constant 0 : index
    %40 = vector.load %arg14[%c0_36, %c0_37] : memref<16x2xf32, #tpu.memory_space<vmem>>, vector<16x2xf32>
    %cst_38 = arith.constant dense<0.000000e+00> : vector<2x2xf32>
    %41 = tpu.matmul %39, %40, %cst_38 {dimension_numbers = #tpu.dot_dimension_numbers<[1], [0], [0], [1], [0, 0, 1, 1], [], []>} : vector<2x16xf32>, vector<16x2xf32>, vector<2x2xf32> -> vector<2x2xf32>
    %c0_39 = arith.constant 0 : index
    %c0_40 = arith.constant 0 : index
    %42 = vector.load %arg15[%c0_39, %c0_40] : memref<8x2xf32, #tpu.memory_space<vmem>>, vector<8x2xf32>
    %cst_41 = arith.constant dense<0.000000e+00> : vector<2x2xf32>
    %43 = tpu.matmul %33, %42, %cst_41 {dimension_numbers = #tpu.dot_dimension_numbers<[1], [0], [0], [1], [0, 0, 1, 1], [], []>} : vector<2x8xf32>, vector<8x2xf32>, vector<2x2xf32> -> vector<2x2xf32>
    %44 = arith.addf %41, %43 : vector<2x2xf32>
    %c0_42 = arith.constant 0 : index
    %c0_43 = arith.constant 0 : index
    %45 = vector.load %arg16[%c0_42, %c0_43] : memref<1x2xf32, #tpu.memory_space<vmem>>, vector<1x2xf32>
    %46 = vector.broadcast %45 : vector<1x2xf32> to vector<2x2xf32>
    %47 = arith.addf %44, %46 : vector<2x2xf32>
    %c0_44 = arith.constant 0 : index
    %c0_45 = arith.constant 0 : index
    %48 = vector.load %arg17[%c0_44, %c0_45] : memref<2x2xf32, #tpu.memory_space<vmem>>, vector<2x2xf32>
    tpu.vector_store %arg17[%c0_44, %c0_45], %47 {strides = array<i32>} : memref<2x2xf32, #tpu.memory_space<vmem>>, vector<2x2xf32>,
    %49 = arith.negf %47 : vector<2x2xf32>
    %50 = math.exp %49 : vector<2x2xf32>
    %cst_46 = arith.constant 1.000000e+00 : f32
    %51 = vector.broadcast %cst_46 : f32 to vector<2x2xf32>
    %52 = arith.addf %51, %50 : vector<2x2xf32>
    %53 = arith.divf %51, %52 : vector<2x2xf32>
    %c0_47 = arith.constant 0 : index
    %c0_48 = arith.constant 0 : index
    %54 = vector.load %arg18[%c0_47, %c0_48] : memref<2x2xf32, #tpu.memory_space<vmem>>, vector<2x2xf32>
    tpu.vector_store %arg18[%c0_47, %c0_48], %53 {strides = array<i32>} : memref<2x2xf32, #tpu.memory_space<vmem>>, vector<2x2xf32>,
    return
  }
}

</mosaic_0001>

<llo_original>
// kernel: run.6
$region0: #{run.6}
  #allocation0 [shape = 'u32[]', space=smem, size = 0x4, offset = 0x4, fixed_abs, tag = 'smem constant byte address 0x4 - core index']
  #allocation1 [shape = 'u32[72,128]{1,0:T(1,128)}', space=vmem, size = 0x9000, scoped, tag = 'internal scratch']
  %s0 = inlined_call_operand.vmem [shape: f32[16,16], index: 0, kind: input, shape index: {}]
  %s1 = inlined_call_operand.vmem [shape: f32[64,24], index: 1, kind: input, shape index: {}]
  %s2 = inlined_call_operand.vmem [shape: f32[16,32], index: 2, kind: input, shape index: {}]
  %s3 = inlined_call_operand.vmem [shape: f32[1,32], index: 3, kind: input, shape index: {}]
  %s4 = inlined_call_operand.vmem [shape: f32[24,32], index: 4, kind: input, shape index: {}]
  %s5 = inlined_call_operand.vmem [shape: f32[1,32], index: 5, kind: input, shape index: {}]
  %s6 = inlined_call_operand.hbm [shape: f32[16,32], index: 6, kind: output, shape index: {0}]
  %s7 = inlined_call_operand.vmem [shape: f32[16,32], index: 7, kind: output, shape index: {1}]
  %s8 = inlined_call_operand.vmem [shape: f32[64,32], index: 8, kind: output, shape index: {2}]
  %9 = xla_tuple %s6, %s7, %s8
  %s10 = sld [smem:[#allocation0]]
  $region50: #{run.6} parent=0
    _
  %s12 = ssub.s32 1, %s10
  %s13 = scalar_select 0, %s12, %s10
  $region1: #{run.6} parent=0
    #allocation2 [shape = 'u8[8192]{0}', space=vmem, size = 0x2000, scoped, tag = 'output window, operand 0, single buffered']
    #allocation3 [shape = 's32[1]{0}', space=sflag, size = 0x4, scoped, tag = 'scoped memory for run.6']
    %14 = vsyncpa [#allocation3], 0
    // Predicated region
    $region2: #{run.6} parent=1 // pred_check
      _
    $region3: #{run.6} parent=1 // pred_check_branch
      %16 = sbr.rel (0) target = $region5
    $region4: #{run.6} parent=1 // pred_region
      _
    $region5: #{run.6} parent=1 // pred_fallthru
      _
    // Predicated region
    $region6: #{run.6} parent=1 // pred_check
      _
    $region7: #{run.6} parent=1 // pred_check_branch
      %18 = sbr.rel (0) target = $region9
    $region8: #{run.6} parent=1 // pred_region
      _
    $region9: #{run.6} parent=1 // pred_fallthru
      _
    // Predicated region
    $region10: #{run.6} parent=1 // pred_check
      _
    $region11: #{run.6} parent=1 // pred_check_branch
      %20 = sbr.rel (0) target = $region13
    $region12: #{run.6} parent=1 // pred_region
      _
    $region13: #{run.6} parent=1 // pred_fallthru
      _
    // Predicated region
    $region14: #{run.6} parent=1 // pred_check
      _
    $region15: #{run.6} parent=1 // pred_check_branch
      %22 = sbr.rel (0) target = $region17
    $region16: #{run.6} parent=1 // pred_region
      _
    $region17: #{run.6} parent=1 // pred_fallthru
      _
    // Predicated region
    $region18: #{run.6} parent=1 // pred_check
      _
    $region19: #{run.6} parent=1 // pred_check_branch
      %24 = sbr.rel (0) target = $region21
    $region20: #{run.6} parent=1 // pred_region
      _
    $region21: #{run.6} parent=1 // pred_fallthru
      _
    // Predicated region
    $region22: #{run.6} parent=1 // pred_check
      _
    $region23: #{run.6} parent=1 // pred_check_branch
      %26 = sbr.rel (0) target = $region25
    $region24: #{run.6} parent=1 // pred_region
      _
    $region25: #{run.6} parent=1 // pred_fallthru
      _
    %v27 = vld [vmem:[%s0] sm:$0xff]
    %v28 = vld [vmem:[%s0 + $0x8] sm:$0xff]
    %v29 = vld [vmem:[%s2] sm:$0xff]
    %v30 = vld [vmem:[%s2 + $0x8] sm:$0xff]
    %v31 = vld [vmem:[%s3] sm:$0x1]
    %v33 = vperm.slane %v31, 0
    %vm35 = vcmask 130048
    %v37 = vsel %vm35, %v27, 0
    %v40 = vsel %vm35, %v28, 0
    %42 = vmatpush.msra.mxu0 0.0
    %43 = vmatpush.msra.mxu0 0.0
    %44 = vmatpush.msra.mxu0 0.0
    %45 = vmatpush.msra.mxu0 0.0
    %46 = vmatpush.msra.mxu0 0.0
    %47 = vmatpush.msra.mxu0 0.0
    %48 = vmatpush.msra.mxu0 0.0
    %49 = vmatpush.msra.mxu0 0.0
    %50 = vmatpush.msra.mxu0 0.0
    %51 = vmatpush.msra.mxu0 0.0
    %52 = vmatpush.msra.mxu0 0.0
    %53 = vmatpush.msra.mxu0 0.0
    %54 = vmatpush.msra.mxu0 0.0
    %55 = vmatpush.msra.mxu0 0.0
    %56 = vmatpush.msra.mxu0 %v30
    %57 = vmatpush.msra.mxu0 %v29
    %58 = vmatmul.f32.gmra.mxu0 %v37
    %v59 = vpop.f32.mrf.mxu0
    %v60 = vadd.f32 %v33, %v59
    %61 = vmatmul.f32.gmra.mxu0 %v40
    %v62 = vpop.f32.mrf.mxu0
    %v63 = vadd.f32 %v33, %v62
    %64 = vdwg.mxu0
    %vm65 = vcmask 261120
    %66 = vst.msk [vmem:[#allocation2] sm:$0xff] %vm65, %v60
    %67 = vst.msk [vmem:[#allocation2 + $0x8] sm:$0xff] %vm65, %v63
    %vm68 = vcmp.ge.f32.partialorder %v60, 0.0
    %vm69 = vcmp.ge.f32.partialorder %v63, 0.0
    %v70 = vmul.f32 %v60, 0.01
    %v71 = vmul.f32 %v63, 0.01
    %v72 = vsel %vm68, %v60, %v70
    %v73 = vsel %vm69, %v63, %v71
    %74 = vst.msk [vmem:[%s7] sm:$0xff] %vm65, %v72
    %75 = vst.msk [vmem:[%s7 + $0x8] sm:$0xff] %vm65, %v73
    %v76 = vld [vmem:[%s1] sm:$0xff]
    %v77 = vld [vmem:[%s1 + $0x8] sm:$0xff]
    %v78 = vld [vmem:[%s1 + $0x10] sm:$0xff]
    %v79 = vld [vmem:[%s1 + $0x18] sm:$0xff]
    %v80 = vld [vmem:[%s1 + $0x20] sm:$0xff]
    %v81 = vld [vmem:[%s1 + $0x28] sm:$0xff]
    %v82 = vld [vmem:[%s1 + $0x30] sm:$0xff]
    %v83 = vld [vmem:[%s1 + $0x38] sm:$0xff]
    %v84 = vld [vmem:[%s4] sm:$0xff]
    %v85 = vld [vmem:[%s4 + $0x8] sm:$0xff]
    %v86 = vld [vmem:[%s4 + $0x10] sm:$0xff]
    %v87 = vld [vmem:[%s5] sm:$0x1]
    %v89 = vperm.slane %v87, 0
    %vm91 = vcmask 195584
    %v93 = vsel %vm91, %v76, 0
    %v96 = vsel %vm91, %v77, 0
    %v99 = vsel %vm91, %v78, 0
    %v102 = vsel %vm91, %v79, 0
    %v105 = vsel %vm91, %v80, 0
    %v108 = vsel %vm91, %v81, 0
    %v111 = vsel %vm91, %v82, 0
    %v114 = vsel %vm91, %v83, 0
    %116 = vmatpush.msra.mxu0 0.0
    %117 = vmatpush.msra.mxu0 0.0
    %118 = vmatpush.msra.mxu0 0.0
    %119 = vmatpush.msra.mxu0 0.0
    %120 = vmatpush.msra.mxu0 0.0
    %121 = vmatpush.msra.mxu0 0.0
    %122 = vmatpush.msra.mxu0 0.0
    %123 = vmatpush.msra.mxu0 0.0
    %124 = vmatpush.msra.mxu0 0.0
    %125 = vmatpush.msra.mxu0 0.0
    %126 = vmatpush.msra.mxu0 0.0
    %127 = vmatpush.msra.mxu0 0.0
    %128 = vmatpush.msra.mxu0 0.0
    %129 = vmatpush.msra.mxu0 %v86
    %130 = vmatpush.msra.mxu0 %v85
    %131 = vmatpush.msra.mxu0 %v84
    %132 = vmatmul.f32.gmra.mxu0 %v93
    %v133 = vpop.f32.mrf.mxu0
    %v134 = vadd.f32 %v89, %v133
    %135 = vmatmul.f32.gmra.mxu0 %v96
    %v136 = vpop.f32.mrf.mxu0
    %v137 = vadd.f32 %v89, %v136
    %138 = vmatmul.f32.gmra.mxu0 %v99
    %v139 = vpop.f32.mrf.mxu0
    %v140 = vadd.f32 %v89, %v139
    %141 = vmatmul.f32.gmra.mxu0 %v102
    %v142 = vpop.f32.mrf.mxu0
    %v143 = vadd.f32 %v89, %v142
    %144 = vmatmul.f32.gmra.mxu0 %v105
    %v145 = vpop.f32.mrf.mxu0
    %v146 = vadd.f32 %v89, %v145
    %147 = vmatmul.f32.gmra.mxu0 %v108
    %v148 = vpop.f32.mrf.mxu0
    %v149 = vadd.f32 %v89, %v148
    %150 = vmatmul.f32.gmra.mxu0 %v111
    %v151 = vpop.f32.mrf.mxu0
    %v152 = vadd.f32 %v89, %v151
    %153 = vmatmul.f32.gmra.mxu0 %v114
    %v154 = vpop.f32.mrf.mxu0
    %v155 = vadd.f32 %v89, %v154
    %156 = vdwg.mxu0
    %vm157 = vcmp.ge.f32.partialorder %v134, 0.0
    %vm158 = vcmp.ge.f32.partialorder %v137, 0.0
    %vm159 = vcmp.ge.f32.partialorder %v140, 0.0
    %vm160 = vcmp.ge.f32.partialorder %v143, 0.0
    %vm161 = vcmp.ge.f32.partialorder %v146, 0.0
    %vm162 = vcmp.ge.f32.partialorder %v149, 0.0
    %vm163 = vcmp.ge.f32.partialorder %v152, 0.0
    %vm164 = vcmp.ge.f32.partialorder %v155, 0.0
    %v165 = vmul.f32 %v134, 0.01
    %v166 = vmul.f32 %v137, 0.01
    %v167 = vmul.f32 %v140, 0.01
    %v168 = vmul.f32 %v143, 0.01
    %v169 = vmul.f32 %v146, 0.01
    %v170 = vmul.f32 %v149, 0.01
    %v171 = vmul.f32 %v152, 0.01
    %v172 = vmul.f32 %v155, 0.01
    %v173 = vsel %vm157, %v134, %v165
    %v174 = vsel %vm158, %v137, %v166
    %v175 = vsel %vm159, %v140, %v167
    %v176 = vsel %vm160, %v143, %v168
    %v177 = vsel %vm161, %v146, %v169
    %v178 = vsel %vm162, %v149, %v170
    %v179 = vsel %vm163, %v152, %v171
    %v180 = vsel %vm164, %v155, %v172
    %181 = vst.msk [vmem:[%s8] sm:$0xff] %vm65, %v173
    %182 = vst.msk [vmem:[%s8 + $0x8] sm:$0xff] %vm65, %v174
    %183 = vst.msk [vmem:[%s8 + $0x10] sm:$0xff] %vm65, %v175
    %184 = vst.msk [vmem:[%s8 + $0x18] sm:$0xff] %vm65, %v176
    %185 = vst.msk [vmem:[%s8 + $0x20] sm:$0xff] %vm65, %v177
    %186 = vst.msk [vmem:[%s8 + $0x28] sm:$0xff] %vm65, %v178
    %187 = vst.msk [vmem:[%s8 + $0x30] sm:$0xff] %vm65, %v179
    %188 = vst.msk [vmem:[%s8 + $0x38] sm:$0xff] %vm65, %v180
    // Predicated region
    $region26: #{run.6} parent=1 // pred_check
      _
    $region27: #{run.6} parent=1 // pred_check_branch
      %190 = sbr.rel (0) target = $region29
    $region28: #{run.6} parent=1 // pred_region
      %192 = vsyncadd [#allocation3], 0
      %s193 = sshll.u32 [#allocation2], 4
      %s194 = int_to_ptr.vmem [resolvable:$true] %s193
      %s195 = sshll.u32 %s6, 4
      %s196 = int_to_ptr.hbm [resolvable:$true] %s195
      %201 = dma.vmem_to_hbm [thread:$0]  %s194, 256, %s196, [#allocation3], 128, 128, 8
    $region29: #{run.6} parent=1 // pred_fallthru
      _
    // Predicated region
    $region30: #{run.6} parent=1 // pred_check
      _
    $region31: #{run.6} parent=1 // pred_check_branch
      %203 = sbr.rel (0) target = $region33
    $region32: #{run.6} parent=1 // pred_region
      _
    $region33: #{run.6} parent=1 // pred_fallthru
      _
    // Predicated region
    $region34: #{run.6} parent=1 // pred_check
      _
    $region35: #{run.6} parent=1 // pred_check_branch
      %205 = sbr.rel (0) target = $region37
    $region36: #{run.6} parent=1 // pred_region
      _
    $region37: #{run.6} parent=1 // pred_fallthru
      _
    // Predicated region
    $region38: #{run.6} parent=1 // pred_check
      _
    $region39: #{run.6} parent=1 // pred_check_branch
      %207 = sbr.rel (0) target = $region41
    $region40: #{run.6} parent=1 // pred_region
      %209 = dma.done [#allocation3], 256
    $region41: #{run.6} parent=1 // pred_fallthru
      _
    // Predicated region
    $region42: #{run.6} parent=1 // pred_check
      _
    $region43: #{run.6} parent=1 // pred_check_branch
      %211 = sbr.rel (0) target = $region45
    $region44: #{run.6} parent=1 // pred_region
      _
    $region45: #{run.6} parent=1 // pred_fallthru
      _
    // Predicated region
    $region46: #{run.6} parent=1 // pred_check
      _
    $region47: #{run.6} parent=1 // pred_check_branch
      %213 = sbr.rel (0) target = $region49
    $region48: #{run.6} parent=1 // pred_region
      _
    $region49: #{run.6} parent=1 // pred_fallthru
      _
    %214 = vsyncpa [#allocation3], 1

// kernel: run.7
$region0: #{run.7}
  #allocation0 [shape = 'u32[]', space=smem, size = 0x4, offset = 0x4, fixed_abs, tag = 'smem constant byte address 0x4 - core index']
  #allocation1 [shape = 'u32[72,128]{1,0:T(1,128)}', space=vmem, size = 0x9000, scoped, tag = 'internal scratch']
  #allocation2 [shape = 'f32[1,1]{1,0:T(1,128)S(1)}', space=vmem, size = 0x200, scoped, tag = 'scoped memory for run.7']
  %s0 = inlined_call_operand.vmem [shape: f32[16,32], index: 0, kind: input, shape index: {}, may-alias: {0,4}]
  %s1 = inlined_call_operand.vmem [shape: f32[16,4,32], index: 1, kind: input, shape index: {}]
  %s2 = inlined_call_operand.vmem [shape: f32[16,4], index: 2, kind: input, shape index: {}]
  %s3 = inlined_call_operand.vmem [shape: f32[16,4], index: 3, kind: input, shape index: {}]
  %s4 = inlined_call_operand.vmem [shape: f32[16,32], index: 4, kind: input, shape index: {}, may-alias: {0,4}]
  %s5 = inlined_call_operand.vmem [shape: f32[1,32], index: 5, kind: input, shape index: {}]
  %s6 = inlined_call_operand.vmem [shape: f32[1,32], index: 6, kind: input, shape index: {}]
  %s7 = inlined_call_operand.<no memory space> [shape: f32[1,1], index: 7, kind: input, shape index: {}]
  %s8 = inlined_call_operand.vmem [shape: f32[32,32], index: 8, kind: input, shape index: {}]
  %s9 = inlined_call_operand.vmem [shape: f32[1,32], index: 9, kind: input, shape index: {}]
  %s10 = inlined_call_operand.vmem [shape: f32[1,32], index: 10, kind: input, shape index: {}]
  %s11 = inlined_call_operand.vmem [shape: f32[1,32], index: 11, kind: input, shape index: {}]
  %s12 = inlined_call_operand.vmem [shape: f32[3,32,32], index: 12, kind: input, shape index: {}]
  %s13 = inlined_call_operand.vmem [shape: f32[3,32,32], index: 13, kind: input, shape index: {}]
  %s14 = inlined_call_operand.vmem [shape: f32[3,1,32], index: 14, kind: input, shape index: {}]
  %s15 = inlined_call_operand.vmem [shape: f32[3,1,32], index: 15, kind: input, shape index: {}]
  %s16 = inlined_call_operand.vmem [shape: f32[16,32], index: 16, kind: output, shape index: {0}]
  %s17 = inlined_call_operand.vmem [shape: f32[16,32], index: 17, kind: output, shape index: {1}]
  %s18 = inlined_call_operand.vmem [shape: f32[16,4], index: 18, kind: output, shape index: {2}]
  %19 = xla_tuple %s16, %s17, %s18
  %s20 = sld [smem:[#allocation0]]
  $region90: #{run.7} parent=0
    _
  %s22 = ssub.s32 1, %s20
  %s23 = scalar_select 0, %s22, %s20
  %v24 = vstv %s7
  %25 = vst [vmem:[#allocation2] sm:$0x1] %v24
  // Predicated region
  $region2: #{run.7} parent=0 // pred_check
    _
  $region3: #{run.7} parent=0 // pred_check_branch
    %27 = sbr.rel (0) target = $region5
  $region4: #{run.7} parent=0 // pred_region
    _
  $region5: #{run.7} parent=0 // pred_fallthru
    _
  // Predicated region
  $region6: #{run.7} parent=0 // pred_check
    _
  $region7: #{run.7} parent=0 // pred_check_branch
    %29 = sbr.rel (0) target = $region9
  $region8: #{run.7} parent=0 // pred_region
    _
  $region9: #{run.7} parent=0 // pred_fallthru
    _
  // Predicated region
  $region10: #{run.7} parent=0 // pred_check
    _
  $region11: #{run.7} parent=0 // pred_check_branch
    %31 = sbr.rel (0) target = $region13
  $region12: #{run.7} parent=0 // pred_region
    _
  $region13: #{run.7} parent=0 // pred_fallthru
    _
  // Predicated region
  $region14: #{run.7} parent=0 // pred_check
    _
  $region15: #{run.7} parent=0 // pred_check_branch
    %33 = sbr.rel (0) target = $region17
  $region16: #{run.7} parent=0 // pred_region
    _
  $region17: #{run.7} parent=0 // pred_fallthru
    _
  // Predicated region
  $region18: #{run.7} parent=0 // pred_check
    _
  $region19: #{run.7} parent=0 // pred_check_branch
    %35 = sbr.rel (0) target = $region21
  $region20: #{run.7} parent=0 // pred_region
    _
  $region21: #{run.7} parent=0 // pred_fallthru
    _
  // Predicated region
  $region22: #{run.7} parent=0 // pred_check
    _
  $region23: #{run.7} parent=0 // pred_check_branch
    %37 = sbr.rel (0) target = $region25
  $region24: #{run.7} parent=0 // pred_region
    _
  $region25: #{run.7} parent=0 // pred_fallthru
    _
  // Predicated region
  $region26: #{run.7} parent=0 // pred_check
    _
  $region27: #{run.7} parent=0 // pred_check_branch
    %39 = sbr.rel (0) target = $region29
  $region28: #{run.7} parent=0 // pred_region
    _
  $region29: #{run.7} parent=0 // pred_fallthru
    _
  // Predicated region
  $region30: #{run.7} parent=0 // pred_check
    _
  $region31: #{run.7} parent=0 // pred_check_branch
    %41 = sbr.rel (0) target = $region33
  $region32: #{run.7} parent=0 // pred_region
    _
  $region33: #{run.7} parent=0 // pred_fallthru
    _
  // Predicated region
  $region34: #{run.7} parent=0 // pred_check
    _
  $region35: #{run.7} parent=0 // pred_check_branch
    %43 = sbr.rel (0) target = $region37
  $region36: #{run.7} parent=0 // pred_region
    _
  $region37: #{run.7} parent=0 // pred_fallthru
    _
  // Predicated region
  $region38: #{run.7} parent=0 // pred_check
    _
  $region39: #{run.7} parent=0 // pred_check_branch
    %45 = sbr.rel (0) target = $region41
  $region40: #{run.7} parent=0 // pred_region
    _
  $region41: #{run.7} parent=0 // pred_fallthru
    _
  // Predicated region
  $region42: #{run.7} parent=0 // pred_check
    _
  $region43: #{run.7} parent=0 // pred_check_branch
    %47 = sbr.rel (0) target = $region45
  $region44: #{run.7} parent=0 // pred_region
    _
  $region45: #{run.7} parent=0 // pred_fallthru
    _
  // Predicated region
  $region46: #{run.7} parent=0 // pred_check
    _
  $region47: #{run.7} parent=0 // pred_check_branch
    %49 = sbr.rel (0) target = $region49
  $region48: #{run.7} parent=0 // pred_region
    _
  $region49: #{run.7} parent=0 // pred_fallthru
    _
  // Predicated region
  $region50: #{run.7} parent=0 // pred_check
    _
  $region51: #{run.7} parent=0 // pred_check_branch
    %51 = sbr.rel (0) target = $region53
  $region52: #{run.7} parent=0 // pred_region
    _
  $region53: #{run.7} parent=0 // pred_fallthru
    _
  // Predicated region
  $region54: #{run.7} parent=0 // pred_check
    _
  $region55: #{run.7} parent=0 // pred_check_branch
    %53 = sbr.rel (0) target = $region57
  $region56: #{run.7} parent=0 // pred_region
    _
  $region57: #{run.7} parent=0 // pred_fallthru
    _
  // Predicated region
  $region58: #{run.7} parent=0 // pred_check
    _
  $region59: #{run.7} parent=0 // pred_check_branch
    %55 = sbr.rel (0) target = $region61
  $region60: #{run.7} parent=0 // pred_region
    _
  $region61: #{run.7} parent=0 // pred_fallthru
    _
  // Predicated region
  $region62: #{run.7} parent=0 // pred_check
    _
  $region63: #{run.7} parent=0 // pred_check_branch
    %57 = sbr.rel (0) target = $region65
  $region64: #{run.7} parent=0 // pred_region
    _
  $region65: #{run.7} parent=0 // pred_fallthru
    _
  %v58 = vld [vmem:[%s0] sm:$0xff]
  %v59 = vld [vmem:[%s0 + $0x8] sm:$0xff]
  %v60 = vld [vmem:[%s1] sm:$0xf]
  %v61 = vld [vmem:[%s1 + $0x4] sm:$0xf]
  %v62 = vld [vmem:[%s1 + $0x8] sm:$0xf]
  %v63 = vld [vmem:[%s1 + $0xc] sm:$0xf]
  %v64 = vld [vmem:[%s1 + $0x10] sm:$0xf]
  %v65 = vld [vmem:[%s1 + $0x14] sm:$0xf]
  %v66 = vld [vmem:[%s1 + $0x18] sm:$0xf]
  %v67 = vld [vmem:[%s1 + $0x1c] sm:$0xf]
  %v68 = vld [vmem:[%s1 + $0x20] sm:$0xf]
  %v69 = vld [vmem:[%s1 + $0x24] sm:$0xf]
  %v70 = vld [vmem:[%s1 + $0x28] sm:$0xf]
  %v71 = vld [vmem:[%s1 + $0x2c] sm:$0xf]
  %v72 = vld [vmem:[%s1 + $0x30] sm:$0xf]
  %v73 = vld [vmem:[%s1 + $0x34] sm:$0xf]
  %v74 = vld [vmem:[%s1 + $0x38] sm:$0xf]
  %v75 = vld [vmem:[%s1 + $0x3c] sm:$0xf]
  %v76 = vld [vmem:[%s5] sm:$0x1]
  %v78 = vperm.slane %v76, 0
  %v80 = vmul.f32 %v58, %v78
  %v81 = vmul.f32 %v59, %v78
  %vm82 = vcmask 261120
  %v83 = vsel %vm82, %v80, 0.0
  %84 = vadd.xlane.f32.xlu0 %v83
  %v85 = vpop.xlane.xlu0 %84
  %v86 = vsel %vm82, %v81, 0.0
  %87 = vadd.xlane.f32.xlu0 %v86
  %v88 = vpop.xlane.xlu0 %87
  %v89 = vld [vmem:[%s6] sm:$0x1]
  %v91 = vperm.slane %v89, 0
  %v93 = vmul.f32 %v60, %v91
  %v94 = vmul.f32 %v61, %v91
  %v95 = vmul.f32 %v62, %v91
  %v96 = vmul.f32 %v63, %v91
  %v97 = vmul.f32 %v64, %v91
  %v98 = vmul.f32 %v65, %v91
  %v99 = vmul.f32 %v66, %v91
  %v100 = vmul.f32 %v67, %v91
  %v101 = vmul.f32 %v68, %v91
  %v102 = vmul.f32 %v69, %v91
  %v103 = vmul.f32 %v70, %v91
  %v104 = vmul.f32 %v71, %v91
  %v105 = vmul.f32 %v72, %v91
  %v106 = vmul.f32 %v73, %v91
  %v107 = vmul.f32 %v74, %v91
  %v108 = vmul.f32 %v75, %v91
  %vm109 = vcmask 257024
  %v110 = vsel %vm109, %v93, 0.0
  %111 = vadd.xlane.f32.xlu0 %v110
  %v112 = vpop.xlane.xlu0 %111
  %v113 = vsel %vm109, %v94, 0.0
  %114 = vadd.xlane.f32.xlu0 %v113
  %v115 = vpop.xlane.xlu0 %114
  %v116 = vsel %vm109, %v95, 0.0
  %117 = vadd.xlane.f32.xlu0 %v116
  %v118 = vpop.xlane.xlu0 %117
  %v119 = vsel %vm109, %v96, 0.0
  %120 = vadd.xlane.f32.xlu0 %v119
  %v121 = vpop.xlane.xlu0 %120
  %v122 = vsel %vm109, %v97, 0.0
  %123 = vadd.xlane.f32.xlu0 %v122
  %v124 = vpop.xlane.xlu0 %123
  %v125 = vsel %vm109, %v98, 0.0
  %126 = vadd.xlane.f32.xlu0 %v125
  %v127 = vpop.xlane.xlu0 %126
  %v128 = vsel %vm109, %v99, 0.0
  %129 = vadd.xlane.f32.xlu0 %v128
  %v130 = vpop.xlane.xlu0 %129
  %v131 = vsel %vm109, %v100, 0.0
  %132 = vadd.xlane.f32.xlu0 %v131
  %v133 = vpop.xlane.xlu0 %132
  %v134 = vsel %vm109, %v101, 0.0
  %135 = vadd.xlane.f32.xlu0 %v134
  %v136 = vpop.xlane.xlu0 %135
  %v137 = vsel %vm109, %v102, 0.0
  %138 = vadd.xlane.f32.xlu0 %v137
  %v139 = vpop.xlane.xlu0 %138
  %v140 = vsel %vm109, %v103, 0.0
  %141 = vadd.xlane.f32.xlu0 %v140
  %v142 = vpop.xlane.xlu0 %141
  %v143 = vsel %vm109, %v104, 0.0
  %144 = vadd.xlane.f32.xlu0 %v143
  %v145 = vpop.xlane.xlu0 %144
  %v146 = vsel %vm109, %v105, 0.0
  %147 = vadd.xlane.f32.xlu0 %v146
  %v148 = vpop.xlane.xlu0 %147
  %v149 = vsel %vm109, %v106, 0.0
  %150 = vadd.xlane.f32.xlu0 %v149
  %v151 = vpop.xlane.xlu0 %150
  %v152 = vsel %vm109, %v107, 0.0
  %153 = vadd.xlane.f32.xlu0 %v152
  %v154 = vpop.xlane.xlu0 %153
  %v155 = vsel %vm109, %v108, 0.0
  %156 = vadd.xlane.f32.xlu0 %v155
  %v157 = vpop.xlane.xlu0 %156
  %v174 = vlaneseq
  %v175 = vand.u32 %v174, 127
  %v176 = vperm.slane %v112, %v175
  %v177 = vperm.slane %v115, %v175
  %v178 = vperm.slane %v118, %v175
  %v179 = vperm.slane %v121, %v175
  %v180 = vperm.slane %v124, %v175
  %v181 = vperm.slane %v127, %v175
  %v182 = vperm.slane %v130, %v175
  %v183 = vperm.slane %v133, %v175
  %v184 = vperm.slane %v136, %v175
  %v185 = vperm.slane %v139, %v175
  %v186 = vperm.slane %v142, %v175
  %v187 = vperm.slane %v145, %v175
  %v188 = vperm.slane %v148, %v175
  %v189 = vperm.slane %v151, %v175
  %v190 = vperm.slane %v154, %v175
  %v191 = vperm.slane %v157, %v175
  %vm192 = vcmask 1041409
  %v193 = vsel %vm192, %v177, %v176
  %vm194 = vcmask 1042434
  %v195 = vsel %vm194, %v178, %v193
  %vm196 = vcmask 1043459
  %v197 = vsel %vm196, %v179, %v195
  %vm198 = vcmask 1044484
  %v199 = vsel %vm198, %v180, %v197
  %vm200 = vcmask 1045509
  %v201 = vsel %vm200, %v181, %v199
  %vm202 = vcmask 1046534
  %v203 = vsel %vm202, %v182, %v201
  %vm204 = vcmask 1047559
  %v205 = vsel %vm204, %v183, %v203
  %v206 = vsel %vm192, %v185, %v184
  %v207 = vsel %vm194, %v186, %v206
  %v208 = vsel %vm196, %v187, %v207
  %v209 = vsel %vm198, %v188, %v208
  %v210 = vsel %vm200, %v189, %v209
  %v211 = vsel %vm202, %v190, %v210
  %v212 = vsel %vm204, %v191, %v211
  %v215 = vadd.f32 %v85, %v205
  %v216 = vadd.f32 %v88, %v212
  %v217 = vld [vmem:[#allocation2] sm:$0x1]
  %v219 = vperm.slane %v217, 0
  %220 = vset.pattern.permute.xlu0 0
  %221 = vperm.xlu0 %220, %v219
  %v222 = vpop.permute.xlu0 %221
  %v224 = vadd.f32 %v215, %v222
  %v225 = vadd.f32 %v216, %v222
  %vm226 = vcmp.ge.f32.partialorder %v224, 0.0
  %vm227 = vcmp.ge.f32.partialorder %v225, 0.0
  %v228 = vmul.f32 %v224, 0.01
  %v229 = vmul.f32 %v225, 0.01
  %v230 = vsel %vm226, %v224, %v228
  %v231 = vsel %vm227, %v225, %v229
  %v232 = vld [vmem:[%s2] sm:$0xff]
  %v233 = vld [vmem:[%s2 + $0x8] sm:$0xff]
  %v234 = vadd.f32 %v230, %v232
  %v235 = vadd.f32 %v231, %v233
  %vm236 = vcmask 31744
  %v237 = vsel %vm236, %v234, -inf
  %238 = vmax.xlane.f32.xlu0 %v237
  %v239 = vpop.xlane.xlu0 %238
  %v240 = vsel %vm236, %v235, -inf
  %241 = vmax.xlane.f32.xlu0 %v240
  %v242 = vpop.xlane.xlu0 %241
  %v243 = vsub.f32 %v234, %v239
  %v244 = vsub.f32 %v235, %v242
  %v245 = vmul.f32 %v243, 1.442695
  %v246 = vpow.pop %v245
  %v247 = vmul.f32 %v244, 1.442695
  %v248 = vpow.pop %v247
  %v249 = vsel %vm236, %v246, 0.0
  %250 = vadd.xlane.f32.xlu0 %v249
  %v251 = vpop.xlane.xlu0 %250
  %v252 = vsel %vm236, %v248, 0.0
  %253 = vadd.xlane.f32.xlu0 %v252
  %v254 = vpop.xlane.xlu0 %253
  %v255 = vrcp.pop %v251
  %v256 = vmul.f32 %v251, %v255
  %v257 = vsub.f32 1.0, %v256
  %v258 = vmul.f32 %v255, %v257
  %v259 = vadd.f32 %v255, %v258
  %vm260 = vweird.f32 %v251
  %vm261 = vweird.f32 %v255
  %vm262 = vmor %vm260, %vm261
  %v263 = vsel %vm262, %v255, %v259
  %v264 = vand.u32 2147483647, %v251
  %vm265 = vcmp.eq.f32.partialorder %v264, 8.507059e+37
  %v266 = vand.u32 %v251, 2147483648
  %v267 = vor.u32 1.1754944e-38, %v266
  %v268 = vsel %vm265, %v267, %v263
  %v269 = vmul.f32 %v246, %v268
  %v270 = vrcp.pop %v254
  %v271 = vmul.f32 %v254, %v270
  %v272 = vsub.f32 1.0, %v271
  %v273 = vmul.f32 %v270, %v272
  %v274 = vadd.f32 %v270, %v273
  %vm275 = vweird.f32 %v254
  %vm276 = vweird.f32 %v270
  %vm277 = vmor %vm275, %vm276
  %v278 = vsel %vm277, %v270, %v274
  %v279 = vand.u32 2147483647, %v254
  %vm280 = vcmp.eq.f32.partialorder %v279, 8.507059e+37
  %v281 = vand.u32 %v254, 2147483648
  %v282 = vor.u32 1.1754944e-38, %v281
  %v283 = vsel %vm280, %v282, %v278
  %v284 = vmul.f32 %v248, %v283
  %v285 = vld [vmem:[%s3] sm:$0xff]
  %v286 = vld [vmem:[%s3 + $0x8] sm:$0xff]
  %v287 = vmul.f32 %v269, %v285
  %v288 = vmul.f32 %v284, %v286
  %289 = vst.msk [vmem:[%s18] sm:$0xff] %vm236, %v287
  %290 = vst.msk [vmem:[%s18 + $0x8] sm:$0xff] %vm236, %v288
  %v291 = vperm.slane %v287, 0
  %v292 = vlaneseq
  %v293 = vshrl.u32 %v292, 7
  %295 = vset.pattern.permute.xlu0 %v293
  %296 = vperm.xlu0 %295, %v291
  %v297 = vpop.permute.xlu0 %296
  %v298 = vperm.slane %v287, 1
  %v299 = vlaneseq
  %v300 = vshrl.u32 %v299, 7
  %302 = vset.pattern.permute.xlu0 %v300
  %303 = vperm.xlu0 %302, %v298
  %v304 = vpop.permute.xlu0 %303
  %v305 = vperm.slane %v287, 2
  %v306 = vlaneseq
  %v307 = vshrl.u32 %v306, 7
  %309 = vset.pattern.permute.xlu0 %v307
  %310 = vperm.xlu0 %309, %v305
  %v311 = vpop.permute.xlu0 %310
  %v312 = vperm.slane %v287, 3
  %v313 = vlaneseq
  %v314 = vshrl.u32 %v313, 7
  %316 = vset.pattern.permute.xlu0 %v314
  %317 = vperm.xlu0 %316, %v312
  %v318 = vpop.permute.xlu0 %317
  %v319 = vperm.slane %v287, 4
  %v320 = vlaneseq
  %v321 = vshrl.u32 %v320, 7
  %323 = vset.pattern.permute.xlu0 %v321
  %324 = vperm.xlu0 %323, %v319
  %v325 = vpop.permute.xlu0 %324
  %v326 = vperm.slane %v287, 5
  %v327 = vlaneseq
  %v328 = vshrl.u32 %v327, 7
  %330 = vset.pattern.permute.xlu0 %v328
  %331 = vperm.xlu0 %330, %v326
  %v332 = vpop.permute.xlu0 %331
  %v333 = vperm.slane %v287, 6
  %v334 = vlaneseq
  %v335 = vshrl.u32 %v334, 7
  %337 = vset.pattern.permute.xlu0 %v335
  %338 = vperm.xlu0 %337, %v333
  %v339 = vpop.permute.xlu0 %338
  %v340 = vperm.slane %v287, 7
  %v341 = vlaneseq
  %v342 = vshrl.u32 %v341, 7
  %344 = vset.pattern.permute.xlu0 %v342
  %345 = vperm.xlu0 %344, %v340
  %v346 = vpop.permute.xlu0 %345
  %v347 = vperm.slane %v288, 0
  %v348 = vlaneseq
  %v349 = vshrl.u32 %v348, 7
  %351 = vset.pattern.permute.xlu0 %v349
  %352 = vperm.xlu0 %351, %v347
  %v353 = vpop.permute.xlu0 %352
  %v354 = vperm.slane %v288, 1
  %v355 = vlaneseq
  %v356 = vshrl.u32 %v355, 7
  %358 = vset.pattern.permute.xlu0 %v356
  %359 = vperm.xlu0 %358, %v354
  %v360 = vpop.permute.xlu0 %359
  %v361 = vperm.slane %v288, 2
  %v362 = vlaneseq
  %v363 = vshrl.u32 %v362, 7
  %365 = vset.pattern.permute.xlu0 %v363
  %366 = vperm.xlu0 %365, %v361
  %v367 = vpop.permute.xlu0 %366
  %v368 = vperm.slane %v288, 3
  %v369 = vlaneseq
  %v370 = vshrl.u32 %v369, 7
  %372 = vset.pattern.permute.xlu0 %v370
  %373 = vperm.xlu0 %372, %v368
  %v374 = vpop.permute.xlu0 %373
  %v375 = vperm.slane %v288, 4
  %v376 = vlaneseq
  %v377 = vshrl.u32 %v376, 7
  %379 = vset.pattern.permute.xlu0 %v377
  %380 = vperm.xlu0 %379, %v375
  %v381 = vpop.permute.xlu0 %380
  %v382 = vperm.slane %v288, 5
  %v383 = vlaneseq
  %v384 = vshrl.u32 %v383, 7
  %386 = vset.pattern.permute.xlu0 %v384
  %387 = vperm.xlu0 %386, %v382
  %v388 = vpop.permute.xlu0 %387
  %v389 = vperm.slane %v288, 6
  %v390 = vlaneseq
  %v391 = vshrl.u32 %v390, 7
  %393 = vset.pattern.permute.xlu0 %v391
  %394 = vperm.xlu0 %393, %v389
  %v395 = vpop.permute.xlu0 %394
  %v396 = vperm.slane %v288, 7
  %v397 = vlaneseq
  %v398 = vshrl.u32 %v397, 7
  %400 = vset.pattern.permute.xlu0 %v398
  %401 = vperm.xlu0 %400, %v396
  %v402 = vpop.permute.xlu0 %401
  %v403 = vmul.f32 %v297, %v60
  %v404 = vmul.f32 %v304, %v61
  %v405 = vmul.f32 %v311, %v62
  %v406 = vmul.f32 %v318, %v63
  %v407 = vmul.f32 %v325, %v64
  %v408 = vmul.f32 %v332, %v65
  %v409 = vmul.f32 %v339, %v66
  %v410 = vmul.f32 %v346, %v67
  %v411 = vmul.f32 %v353, %v68
  %v412 = vmul.f32 %v360, %v69
  %v413 = vmul.f32 %v367, %v70
  %v414 = vmul.f32 %v374, %v71
  %v415 = vmul.f32 %v381, %v72
  %v416 = vmul.f32 %v388, %v73
  %v417 = vmul.f32 %v395, %v74
  %v418 = vmul.f32 %v402, %v75
  %v419 = vsel %vm109, %v403, 0.0
  %v420 = vrot.slane %v419, 4
  %v421 = vadd.f32 %v419, %v420
  %v422 = vrot.slane %v421, 2
  %v423 = vadd.f32 %v421, %v422
  %v424 = vrot.slane %v423, 1
  %v425 = vadd.f32 %v423, %v424
  %v426 = vsel %vm109, %v404, 0.0
  %v427 = vrot.slane %v426, 4
  %v428 = vadd.f32 %v426, %v427
  %v429 = vrot.slane %v428, 2
  %v430 = vadd.f32 %v428, %v429
  %v431 = vrot.slane %v430, 1
  %v432 = vadd.f32 %v430, %v431
  %v433 = vsel %vm109, %v405, 0.0
  %v434 = vrot.slane %v433, 4
  %v435 = vadd.f32 %v433, %v434
  %v436 = vrot.slane %v435, 2
  %v437 = vadd.f32 %v435, %v436
  %v438 = vrot.slane %v437, 1
  %v439 = vadd.f32 %v437, %v438
  %v440 = vsel %vm109, %v406, 0.0
  %v441 = vrot.slane %v440, 4
  %v442 = vadd.f32 %v440, %v441
  %v443 = vrot.slane %v442, 2
  %v444 = vadd.f32 %v442, %v443
  %v445 = vrot.slane %v444, 1
  %v446 = vadd.f32 %v444, %v445
  %v447 = vsel %vm109, %v407, 0.0
  %v448 = vrot.slane %v447, 4
  %v449 = vadd.f32 %v447, %v448
  %v450 = vrot.slane %v449, 2
  %v451 = vadd.f32 %v449, %v450
  %v452 = vrot.slane %v451, 1
  %v453 = vadd.f32 %v451, %v452
  %v454 = vsel %vm109, %v408, 0.0
  %v455 = vrot.slane %v454, 4
  %v456 = vadd.f32 %v454, %v455
  %v457 = vrot.slane %v456, 2
  %v458 = vadd.f32 %v456, %v457
  %v459 = vrot.slane %v458, 1
  %v460 = vadd.f32 %v458, %v459
  %v461 = vsel %vm109, %v409, 0.0
  %v462 = vrot.slane %v461, 4
  %v463 = vadd.f32 %v461, %v462
  %v464 = vrot.slane %v463, 2
  %v465 = vadd.f32 %v463, %v464
  %v466 = vrot.slane %v465, 1
  %v467 = vadd.f32 %v465, %v466
  %v468 = vsel %vm109, %v410, 0.0
  %v469 = vrot.slane %v468, 4
  %v470 = vadd.f32 %v468, %v469
  %v471 = vrot.slane %v470, 2
  %v472 = vadd.f32 %v470, %v471
  %v473 = vrot.slane %v472, 1
  %v474 = vadd.f32 %v472, %v473
  %v475 = vsel %vm109, %v411, 0.0
  %v476 = vrot.slane %v475, 4
  %v477 = vadd.f32 %v475, %v476
  %v478 = vrot.slane %v477, 2
  %v479 = vadd.f32 %v477, %v478
  %v480 = vrot.slane %v479, 1
  %v481 = vadd.f32 %v479, %v480
  %v482 = vsel %vm109, %v412, 0.0
  %v483 = vrot.slane %v482, 4
  %v484 = vadd.f32 %v482, %v483
  %v485 = vrot.slane %v484, 2
  %v486 = vadd.f32 %v484, %v485
  %v487 = vrot.slane %v486, 1
  %v488 = vadd.f32 %v486, %v487
  %v489 = vsel %vm109, %v413, 0.0
  %v490 = vrot.slane %v489, 4
  %v491 = vadd.f32 %v489, %v490
  %v492 = vrot.slane %v491, 2
  %v493 = vadd.f32 %v491, %v492
  %v494 = vrot.slane %v493, 1
  %v495 = vadd.f32 %v493, %v494
  %v496 = vsel %vm109, %v414, 0.0
  %v497 = vrot.slane %v496, 4
  %v498 = vadd.f32 %v496, %v497
  %v499 = vrot.slane %v498, 2
  %v500 = vadd.f32 %v498, %v499
  %v501 = vrot.slane %v500, 1
  %v502 = vadd.f32 %v500, %v501
  %v503 = vsel %vm109, %v415, 0.0
  %v504 = vrot.slane %v503, 4
  %v505 = vadd.f32 %v503, %v504
  %v506 = vrot.slane %v505, 2
  %v507 = vadd.f32 %v505, %v506
  %v508 = vrot.slane %v507, 1
  %v509 = vadd.f32 %v507, %v508
  %v510 = vsel %vm109, %v416, 0.0
  %v511 = vrot.slane %v510, 4
  %v512 = vadd.f32 %v510, %v511
  %v513 = vrot.slane %v512, 2
  %v514 = vadd.f32 %v512, %v513
  %v515 = vrot.slane %v514, 1
  %v516 = vadd.f32 %v514, %v515
  %v517 = vsel %vm109, %v417, 0.0
  %v518 = vrot.slane %v517, 4
  %v519 = vadd.f32 %v517, %v518
  %v520 = vrot.slane %v519, 2
  %v521 = vadd.f32 %v519, %v520
  %v522 = vrot.slane %v521, 1
  %v523 = vadd.f32 %v521, %v522
  %v524 = vsel %vm109, %v418, 0.0
  %v525 = vrot.slane %v524, 4
  %v526 = vadd.f32 %v524, %v525
  %v527 = vrot.slane %v526, 2
  %v528 = vadd.f32 %v526, %v527
  %v529 = vrot.slane %v528, 1
  %v530 = vadd.f32 %v528, %v529
  %v531 = vsel %vm236, %v287, 0.0
  %532 = vadd.xlane.f32.xlu0 %v531
  %v533 = vpop.xlane.xlu0 %532
  %v534 = vsel %vm236, %v288, 0.0
  %535 = vadd.xlane.f32.xlu0 %v534
  %v536 = vpop.xlane.xlu0 %535
  %v537 = vld [vmem:[%s8] sm:$0xff]
  %v538 = vld [vmem:[%s8 + $0x8] sm:$0xff]
  %v539 = vld [vmem:[%s8 + $0x10] sm:$0xff]
  %v540 = vld [vmem:[%s8 + $0x18] sm:$0xff]
  %v541 = vld [vmem:[%s9] sm:$0x1]
  %v543 = vperm.slane %v541, 0
  %v545 = vmul.f32 %v533, %v543
  %v546 = vmul.f32 %v536, %v543
  %v563 = vsel %vm192, %v432, %v425
  %v564 = vsel %vm194, %v439, %v563
  %v565 = vsel %vm196, %v446, %v564
  %v566 = vsel %vm198, %v453, %v565
  %v567 = vsel %vm200, %v460, %v566
  %v568 = vsel %vm202, %v467, %v567
  %v569 = vsel %vm204, %v474, %v568
  %v570 = vsel %vm192, %v488, %v481
  %v571 = vsel %vm194, %v495, %v570
  %v572 = vsel %vm196, %v502, %v571
  %v573 = vsel %vm198, %v509, %v572
  %v574 = vsel %vm200, %v516, %v573
  %v575 = vsel %vm202, %v523, %v574
  %v576 = vsel %vm204, %v530, %v575
  %v577 = vsel %vm82, %v569, 0
  %v579 = vsel %vm82, %v576, 0
  %581 = vmatpush.msra.mxu0 0.0
  %582 = vmatpush.msra.mxu0 0.0
  %583 = vmatpush.msra.mxu0 0.0
  %584 = vmatpush.msra.mxu0 0.0
  %585 = vmatpush.msra.mxu0 0.0
  %586 = vmatpush.msra.mxu0 0.0
  %587 = vmatpush.msra.mxu0 0.0
  %588 = vmatpush.msra.mxu0 0.0
  %589 = vmatpush.msra.mxu0 0.0
  %590 = vmatpush.msra.mxu0 0.0
  %591 = vmatpush.msra.mxu0 0.0
  %592 = vmatpush.msra.mxu0 0.0
  %593 = vmatpush.msra.mxu0 %v540
  %594 = vmatpush.msra.mxu0 %v539
  %595 = vmatpush.msra.mxu0 %v538
  %596 = vmatpush.msra.mxu0 %v537
  %597 = vmatmul.f32.gmra.mxu0 %v577
  %v598 = vpop.f32.mrf.mxu0
  %v599 = vadd.f32 %v545, %v598
  %600 = vmatmul.f32.gmra.mxu0 %v579
  %v601 = vpop.f32.mrf.mxu0
  %v602 = vadd.f32 %v546, %v601
  %603 = vdwg.mxu0
  %vm604 = vcmp.gt.f32.partialorder %v599, 0.0
  %vm605 = vcmp.gt.f32.partialorder %v602, 0.0
  %v606 = vmul.f32 %v599, 1.442695
  %v607 = vpow.pop %v606
  %v608 = vmul.f32 %v602, 1.442695
  %v609 = vpow.pop %v608
  %v610 = vsub.f32 %v607, 1.0
  %v611 = vsub.f32 %v609, 1.0
  %v612 = vsel %vm604, %v599, %v610
  %v613 = vsel %vm605, %v602, %v611
  %v614 = vld [vmem:[%s10] sm:$0x1]
  %v616 = vperm.slane %v614, 0
  %v618 = vmul.f32 %v612, %v616
  %v619 = vmul.f32 %v613, %v616
  %v620 = vld [vmem:[%s11] sm:$0x1]
  %v622 = vperm.slane %v620, 0
  %v624 = vadd.f32 %v618, %v622
  %v625 = vadd.f32 %v619, %v622
  %v626 = vld [vmem:[%s4] sm:$0xff]
  %v627 = vld [vmem:[%s4 + $0x8] sm:$0xff]
  %v628 = vld [vmem:[%s12] sm:$0xff]
  %v629 = vld [vmem:[%s12 + $0x8] sm:$0xff]
  %v630 = vld [vmem:[%s12 + $0x10] sm:$0xff]
  %v631 = vld [vmem:[%s12 + $0x18] sm:$0xff]
  %v632 = vld [vmem:[%s12 + $0x20] sm:$0xff]
  %v633 = vld [vmem:[%s12 + $0x28] sm:$0xff]
  %v634 = vld [vmem:[%s12 + $0x30] sm:$0xff]
  %v635 = vld [vmem:[%s12 + $0x38] sm:$0xff]
  %v636 = vld [vmem:[%s12 + $0x40] sm:$0xff]
  %v637 = vld [vmem:[%s12 + $0x48] sm:$0xff]
  %v638 = vld [vmem:[%s12 + $0x50] sm:$0xff]
  %v639 = vld [vmem:[%s12 + $0x58] sm:$0xff]
  %v640 = vld [vmem:[%s13] sm:$0xff]
  %v641 = vld [vmem:[%s13 + $0x8] sm:$0xff]
  %v642 = vld [vmem:[%s13 + $0x10] sm:$0xff]
  %v643 = vld [vmem:[%s13 + $0x18] sm:$0xff]
  %v644 = vld [vmem:[%s13 + $0x20] sm:$0xff]
  %v645 = vld [vmem:[%s13 + $0x28] sm:$0xff]
  %v646 = vld [vmem:[%s13 + $0x30] sm:$0xff]
  %v647 = vld [vmem:[%s13 + $0x38] sm:$0xff]
  %v648 = vld [vmem:[%s13 + $0x40] sm:$0xff]
  %v649 = vld [vmem:[%s13 + $0x48] sm:$0xff]
  %v650 = vld [vmem:[%s13 + $0x50] sm:$0xff]
  %v651 = vld [vmem:[%s13 + $0x58] sm:$0xff]
  %v652 = vld [vmem:[%s14] sm:$0x1]
  %v653 = vld [vmem:[%s14 + $0x1] sm:$0x1]
  %v654 = vld [vmem:[%s14 + $0x2] sm:$0x1]
  %v655 = vld [vmem:[%s15] sm:$0x1]
  %v656 = vld [vmem:[%s15 + $0x1] sm:$0x1]
  %v657 = vld [vmem:[%s15 + $0x2] sm:$0x1]
  %v659 = vperm.slane %v652, 0
  %v662 = vsel %vm82, %v624, 0
  %v665 = vsel %vm82, %v625, 0
  %667 = vmatpush.msra.mxu0 0.0
  %668 = vmatpush.msra.mxu0 0.0
  %669 = vmatpush.msra.mxu0 0.0
  %670 = vmatpush.msra.mxu0 0.0
  %671 = vmatpush.msra.mxu0 0.0
  %672 = vmatpush.msra.mxu0 0.0
  %673 = vmatpush.msra.mxu0 0.0
  %674 = vmatpush.msra.mxu0 0.0
  %675 = vmatpush.msra.mxu0 0.0
  %676 = vmatpush.msra.mxu0 0.0
  %677 = vmatpush.msra.mxu0 0.0
  %678 = vmatpush.msra.mxu0 0.0
  %679 = vmatpush.msra.mxu0 %v631
  %680 = vmatpush.msra.mxu0 %v630
  %681 = vmatpush.msra.mxu0 %v629
  %682 = vmatpush.msra.mxu0 %v628
  %683 = vmatmul.f32.gmra.mxu0 %v662
  %v684 = vpop.f32.mrf.mxu0
  %v685 = vadd.f32 %v659, %v684
  %686 = vmatmul.f32.gmra.mxu0 %v665
  %v687 = vpop.f32.mrf.mxu0
  %v688 = vadd.f32 %v659, %v687
  %689 = vdwg.mxu0
  %v691 = vperm.slane %v655, 0
  %v694 = vsel %vm82, %v626, 0
  %v697 = vsel %vm82, %v627, 0
  %699 = vmatpush.msra.mxu0 0.0
  %700 = vmatpush.msra.mxu0 0.0
  %701 = vmatpush.msra.mxu0 0.0
  %702 = vmatpush.msra.mxu0 0.0
  %703 = vmatpush.msra.mxu0 0.0
  %704 = vmatpush.msra.mxu0 0.0
  %705 = vmatpush.msra.mxu0 0.0
  %706 = vmatpush.msra.mxu0 0.0
  %707 = vmatpush.msra.mxu0 0.0
  %708 = vmatpush.msra.mxu0 0.0
  %709 = vmatpush.msra.mxu0 0.0
  %710 = vmatpush.msra.mxu0 0.0
  %711 = vmatpush.msra.mxu0 %v643
  %712 = vmatpush.msra.mxu0 %v642
  %713 = vmatpush.msra.mxu0 %v641
  %714 = vmatpush.msra.mxu0 %v640
  %715 = vmatmul.f32.gmra.mxu0 %v694
  %v716 = vpop.f32.mrf.mxu0
  %v717 = vadd.f32 %v691, %v716
  %718 = vmatmul.f32.gmra.mxu0 %v697
  %v719 = vpop.f32.mrf.mxu0
  %v720 = vadd.f32 %v691, %v719
  %721 = vdwg.mxu0
  %v723 = vperm.slane %v653, 0
  %725 = vmatpush.msra.mxu0 0.0
  %726 = vmatpush.msra.mxu0 0.0
  %727 = vmatpush.msra.mxu0 0.0
  %728 = vmatpush.msra.mxu0 0.0
  %729 = vmatpush.msra.mxu0 0.0
  %730 = vmatpush.msra.mxu0 0.0
  %731 = vmatpush.msra.mxu0 0.0
  %732 = vmatpush.msra.mxu0 0.0
  %733 = vmatpush.msra.mxu0 0.0
  %734 = vmatpush.msra.mxu0 0.0
  %735 = vmatpush.msra.mxu0 0.0
  %736 = vmatpush.msra.mxu0 0.0
  %737 = vmatpush.msra.mxu0 %v635
  %738 = vmatpush.msra.mxu0 %v634
  %739 = vmatpush.msra.mxu0 %v633
  %740 = vmatpush.msra.mxu0 %v632
  %741 = vmatmul.f32.gmra.mxu0 %v662
  %v742 = vpop.f32.mrf.mxu0
  %v743 = vadd.f32 %v723, %v742
  %744 = vmatmul.f32.gmra.mxu0 %v665
  %v745 = vpop.f32.mrf.mxu0
  %v746 = vadd.f32 %v723, %v745
  %747 = vdwg.mxu0
  %v749 = vperm.slane %v656, 0
  %751 = vmatpush.msra.mxu0 0.0
  %752 = vmatpush.msra.mxu0 0.0
  %753 = vmatpush.msra.mxu0 0.0
  %754 = vmatpush.msra.mxu0 0.0
  %755 = vmatpush.msra.mxu0 0.0
  %756 = vmatpush.msra.mxu0 0.0
  %757 = vmatpush.msra.mxu0 0.0
  %758 = vmatpush.msra.mxu0 0.0
  %759 = vmatpush.msra.mxu0 0.0
  %760 = vmatpush.msra.mxu0 0.0
  %761 = vmatpush.msra.mxu0 0.0
  %762 = vmatpush.msra.mxu0 0.0
  %763 = vmatpush.msra.mxu0 %v647
  %764 = vmatpush.msra.mxu0 %v646
  %765 = vmatpush.msra.mxu0 %v645
  %766 = vmatpush.msra.mxu0 %v644
  %767 = vmatmul.f32.gmra.mxu0 %v694
  %v768 = vpop.f32.mrf.mxu0
  %v769 = vadd.f32 %v749, %v768
  %770 = vmatmul.f32.gmra.mxu0 %v697
  %v771 = vpop.f32.mrf.mxu0
  %v772 = vadd.f32 %v749, %v771
  %773 = vdwg.mxu0
  %v775 = vperm.slane %v654, 0
  %777 = vmatpush.msra.mxu0 0.0
  %778 = vmatpush.msra.mxu0 0.0
  %779 = vmatpush.msra.mxu0 0.0
  %780 = vmatpush.msra.mxu0 0.0
  %781 = vmatpush.msra.mxu0 0.0
  %782 = vmatpush.msra.mxu0 0.0
  %783 = vmatpush.msra.mxu0 0.0
  %784 = vmatpush.msra.mxu0 0.0
  %785 = vmatpush.msra.mxu0 0.0
  %786 = vmatpush.msra.mxu0 0.0
  %787 = vmatpush.msra.mxu0 0.0
  %788 = vmatpush.msra.mxu0 0.0
  %789 = vmatpush.msra.mxu0 %v639
  %790 = vmatpush.msra.mxu0 %v638
  %791 = vmatpush.msra.mxu0 %v637
  %792 = vmatpush.msra.mxu0 %v636
  %793 = vmatmul.f32.gmra.mxu0 %v662
  %v794 = vpop.f32.mrf.mxu0
  %v795 = vadd.f32 %v775, %v794
  %796 = vmatmul.f32.gmra.mxu0 %v665
  %v797 = vpop.f32.mrf.mxu0
  %v798 = vadd.f32 %v775, %v797
  %799 = vdwg.mxu0
  %v801 = vperm.slane %v657, 0
  %803 = vmatpush.msra.mxu0 0.0
  %804 = vmatpush.msra.mxu0 0.0
  %805 = vmatpush.msra.mxu0 0.0
  %806 = vmatpush.msra.mxu0 0.0
  %807 = vmatpush.msra.mxu0 0.0
  %808 = vmatpush.msra.mxu0 0.0
  %809 = vmatpush.msra.mxu0 0.0
  %810 = vmatpush.msra.mxu0 0.0
  %811 = vmatpush.msra.mxu0 0.0
  %812 = vmatpush.msra.mxu0 0.0
  %813 = vmatpush.msra.mxu0 0.0
  %814 = vmatpush.msra.mxu0 0.0
  %815 = vmatpush.msra.mxu0 %v651
  %816 = vmatpush.msra.mxu0 %v650
  %817 = vmatpush.msra.mxu0 %v649
  %818 = vmatpush.msra.mxu0 %v648
  %819 = vmatmul.f32.gmra.mxu0 %v694
  %v820 = vpop.f32.mrf.mxu0
  %v821 = vadd.f32 %v801, %v820
  %822 = vmatmul.f32.gmra.mxu0 %v697
  %v823 = vpop.f32.mrf.mxu0
  %v824 = vadd.f32 %v801, %v823
  %825 = vdwg.mxu0
  %v826 = vadd.f32 %v685, %v717
  %v827 = vadd.f32 %v688, %v720
  %v828 = vxor.u32 %v826, 2147483648
  %v829 = vxor.u32 %v827, 2147483648
  %v830 = vmul.f32 %v828, 1.442695
  %v831 = vpow.pop %v830
  %v832 = vmul.f32 %v829, 1.442695
  %v833 = vpow.pop %v832
  %v834 = vadd.f32 %v831, 1.0
  %v835 = vadd.f32 %v833, 1.0
  %v836 = vrcp.pop %v834
  %v837 = vmul.f32 %v834, %v836
  %v838 = vsub.f32 1.0, %v837
  %v839 = vmul.f32 %v836, %v838
  %v840 = vadd.f32 %v836, %v839
  %vm841 = vweird.f32 %v834
  %vm842 = vweird.f32 %v836
  %vm843 = vmor %vm841, %vm842
  %v844 = vsel %vm843, %v836, %v840
  %v845 = vand.u32 2147483647, %v834
  %vm846 = vcmp.eq.f32.partialorder %v845, 8.507059e+37
  %v847 = vand.u32 %v834, 2147483648
  %v848 = vor.u32 1.1754944e-38, %v847
  %v849 = vsel %vm846, %v848, %v844
  %v850 = vmul.f32 1.0, %v849
  %v851 = vrcp.pop %v835
  %v852 = vmul.f32 %v835, %v851
  %v853 = vsub.f32 1.0, %v852
  %v854 = vmul.f32 %v851, %v853
  %v855 = vadd.f32 %v851, %v854
  %vm856 = vweird.f32 %v835
  %vm857 = vweird.f32 %v851
  %vm858 = vmor %vm856, %vm857
  %v859 = vsel %vm858, %v851, %v855
  %v860 = vand.u32 2147483647, %v835
  %vm861 = vcmp.eq.f32.partialorder %v860, 8.507059e+37
  %v862 = vand.u32 %v835, 2147483648
  %v863 = vor.u32 1.1754944e-38, %v862
  %v864 = vsel %vm861, %v863, %v859
  %v865 = vmul.f32 1.0, %v864
  %v866 = vadd.f32 %v743, %v769
  %v867 = vadd.f32 %v746, %v772
  %v868 = vxor.u32 %v866, 2147483648
  %v869 = vxor.u32 %v867, 2147483648
  %v870 = vmul.f32 %v868, 1.442695
  %v871 = vpow.pop %v870
  %v872 = vmul.f32 %v869, 1.442695
  %v873 = vpow.pop %v872
  %v874 = vadd.f32 %v871, 1.0
  %v875 = vadd.f32 %v873, 1.0
  %v876 = vrcp.pop %v874
  %v877 = vmul.f32 %v874, %v876
  %v878 = vsub.f32 1.0, %v877
  %v879 = vmul.f32 %v876, %v878
  %v880 = vadd.f32 %v876, %v879
  %vm881 = vweird.f32 %v874
  %vm882 = vweird.f32 %v876
  %vm883 = vmor %vm881, %vm882
  %v884 = vsel %vm883, %v876, %v880
  %v885 = vand.u32 2147483647, %v874
  %vm886 = vcmp.eq.f32.partialorder %v885, 8.507059e+37
  %v887 = vand.u32 %v874, 2147483648
  %v888 = vor.u32 1.1754944e-38, %v887
  %v889 = vsel %vm886, %v888, %v884
  %v890 = vmul.f32 1.0, %v889
  %v891 = vrcp.pop %v875
  %v892 = vmul.f32 %v875, %v891
  %v893 = vsub.f32 1.0, %v892
  %v894 = vmul.f32 %v891, %v893
  %v895 = vadd.f32 %v891, %v894
  %vm896 = vweird.f32 %v875
  %vm897 = vweird.f32 %v891
  %vm898 = vmor %vm896, %vm897
  %v899 = vsel %vm898, %v891, %v895
  %v900 = vand.u32 2147483647, %v875
  %vm901 = vcmp.eq.f32.partialorder %v900, 8.507059e+37
  %v902 = vand.u32 %v875, 2147483648
  %v903 = vor.u32 1.1754944e-38, %v902
  %v904 = vsel %vm901, %v903, %v899
  %v905 = vmul.f32 1.0, %v904
  %v906 = vmul.f32 %v850, %v821
  %v907 = vmul.f32 %v865, %v824
  %v908 = vadd.f32 %v795, %v906
  %v909 = vadd.f32 %v798, %v907
  %v910 = vtanh.pop %v908
  %v911 = vtanh.pop %v909
  %v912 = vsub.f32 1.0, %v890
  %v913 = vsub.f32 1.0, %v905
  %v914 = vmul.f32 %v912, %v910
  %v915 = vmul.f32 %v913, %v911
  %v916 = vmul.f32 %v890, %v626
  %v917 = vmul.f32 %v905, %v627
  %v918 = vadd.f32 %v914, %v916
  %v919 = vadd.f32 %v915, %v917
  %920 = vst.msk [vmem:[%s16] sm:$0xff] %vm82, %v918
  %921 = vst.msk [vmem:[%s16 + $0x8] sm:$0xff] %vm82, %v919
  %v922 = vmax.f32 %v918, 0.0
  %v923 = vmax.f32 %v919, 0.0
  %924 = vst.msk [vmem:[%s17] sm:$0xff] %vm82, %v922
  %925 = vst.msk [vmem:[%s17 + $0x8] sm:$0xff] %vm82, %v923
  // Predicated region
  $region66: #{run.7} parent=0 // pred_check
    _
  $region67: #{run.7} parent=0 // pred_check_branch
    %927 = sbr.rel (0) target = $region69
  $region68: #{run.7} parent=0 // pred_region
    _
  $region69: #{run.7} parent=0 // pred_fallthru
    _
  // Predicated region
  $region70: #{run.7} parent=0 // pred_check
    _
  $region71: #{run.7} parent=0 // pred_check_branch
    %929 = sbr.rel (0) target = $region73
  $region72: #{run.7} parent=0 // pred_region
    _
  $region73: #{run.7} parent=0 // pred_fallthru
    _
  // Predicated region
  $region74: #{run.7} parent=0 // pred_check
    _
  $region75: #{run.7} parent=0 // pred_check_branch
    %931 = sbr.rel (0) target = $region77
  $region76: #{run.7} parent=0 // pred_region
    _
  $region77: #{run.7} parent=0 // pred_fallthru
    _
  // Predicated region
  $region78: #{run.7} parent=0 // pred_check
    _
  $region79: #{run.7} parent=0 // pred_check_branch
    %933 = sbr.rel (0) target = $region81
  $region80: #{run.7} parent=0 // pred_region
    _
  $region81: #{run.7} parent=0 // pred_fallthru
    _
  // Predicated region
  $region82: #{run.7} parent=0 // pred_check
    _
  $region83: #{run.7} parent=0 // pred_check_branch
    %935 = sbr.rel (0) target = $region85
  $region84: #{run.7} parent=0 // pred_region
    _
  $region85: #{run.7} parent=0 // pred_fallthru
    _
  // Predicated region
  $region86: #{run.7} parent=0 // pred_check
    _
  $region87: #{run.7} parent=0 // pred_check_branch
    %937 = sbr.rel (0) target = $region89
  $region88: #{run.7} parent=0 // pred_region
    _
  $region89: #{run.7} parent=0 // pred_fallthru
    _

// kernel: run.10
$region0: #{run.10}
  #allocation0 [shape = 'u32[]', space=smem, size = 0x4, offset = 0x4, fixed_abs, tag = 'smem constant byte address 0x4 - core index']
  #allocation1 [shape = 'u32[72,128]{1,0:T(1,128)}', space=vmem, size = 0x9000, scoped, tag = 'internal scratch']
  #allocation2 [shape = 'f32[1,1]{1,0:T(1,128)S(1)}', space=vmem, size = 0x200, scoped, tag = 'scoped memory for run.10']
  %s0 = inlined_call_operand.vmem [shape: f32[2,32], index: 0, kind: input, shape index: {}]
  %s1 = inlined_call_operand.vmem [shape: f32[2,8,32], index: 1, kind: input, shape index: {}]
  %s2 = inlined_call_operand.vmem [shape: f32[2,8], index: 2, kind: input, shape index: {}]
  %s3 = inlined_call_operand.vmem [shape: f32[2,8], index: 3, kind: input, shape index: {}]
  %s4 = inlined_call_operand.vmem [shape: f32[2,32], index: 4, kind: input, shape index: {}]
  %s5 = inlined_call_operand.vmem [shape: f32[1,32], index: 5, kind: input, shape index: {}]
  %s6 = inlined_call_operand.vmem [shape: f32[1,32], index: 6, kind: input, shape index: {}]
  %s7 = inlined_call_operand.<no memory space> [shape: f32[1,1], index: 7, kind: input, shape index: {}]
  %s8 = inlined_call_operand.vmem [shape: f32[32,32], index: 8, kind: input, shape index: {}]
  %s9 = inlined_call_operand.vmem [shape: f32[1,32], index: 9, kind: input, shape index: {}]
  %s10 = inlined_call_operand.vmem [shape: f32[1,32], index: 10, kind: input, shape index: {}]
  %s11 = inlined_call_operand.vmem [shape: f32[1,32], index: 11, kind: input, shape index: {}]
  %s12 = inlined_call_operand.vmem [shape: f32[3,32,32], index: 12, kind: input, shape index: {}]
  %s13 = inlined_call_operand.vmem [shape: f32[3,32,32], index: 13, kind: input, shape index: {}]
  %s14 = inlined_call_operand.vmem [shape: f32[3,1,32], index: 14, kind: input, shape index: {}]
  %s15 = inlined_call_operand.vmem [shape: f32[3,1,32], index: 15, kind: input, shape index: {}]
  %s16 = inlined_call_operand.vmem [shape: f32[2,32], index: 16, kind: output, shape index: {0}]
  %s17 = inlined_call_operand.hbm [shape: f32[2,32], index: 17, kind: output, shape index: {1}]
  %s18 = inlined_call_operand.hbm [shape: f32[2,8], index: 18, kind: output, shape index: {2}]
  %19 = xla_tuple %s16, %s17, %s18
  %s20 = sld [smem:[#allocation0]]
  $region90: #{run.10} parent=0
    _
  %s22 = ssub.s32 1, %s20
  %s23 = scalar_select 0, %s22, %s20
  %v24 = vstv %s7
  %25 = vst [vmem:[#allocation2] sm:$0x1] %v24
  $region1: #{run.10} parent=0
    #allocation3 [shape = 'u8[1024]{0}', space=vmem, size = 0x400, scoped, tag = 'output window, operand 1, single buffered']
    #allocation4 [shape = 's32[1]{0}', space=sflag, size = 0x4, scoped, tag = 'scoped memory for run.10']
    #allocation5 [shape = 'u8[1024]{0}', space=vmem, size = 0x400, scoped, tag = 'output window, operand 2, single buffered']
    #allocation6 [shape = 's32[1]{0}', space=sflag, size = 0x4, scoped, tag = 'scoped memory for run.10']
    %26 = vsyncpa [#allocation4], 0
    %27 = vsyncpa [#allocation6], 0
    // Predicated region
    $region2: #{run.10} parent=1 // pred_check
      _
    $region3: #{run.10} parent=1 // pred_check_branch
      %29 = sbr.rel (0) target = $region5
    $region4: #{run.10} parent=1 // pred_region
      _
    $region5: #{run.10} parent=1 // pred_fallthru
      _
    // Predicated region
    $region6: #{run.10} parent=1 // pred_check
      _
    $region7: #{run.10} parent=1 // pred_check_branch
      %31 = sbr.rel (0) target = $region9
    $region8: #{run.10} parent=1 // pred_region
      _
    $region9: #{run.10} parent=1 // pred_fallthru
      _
    // Predicated region
    $region10: #{run.10} parent=1 // pred_check
      _
    $region11: #{run.10} parent=1 // pred_check_branch
      %33 = sbr.rel (0) target = $region13
    $region12: #{run.10} parent=1 // pred_region
      _
    $region13: #{run.10} parent=1 // pred_fallthru
      _
    // Predicated region
    $region14: #{run.10} parent=1 // pred_check
      _
    $region15: #{run.10} parent=1 // pred_check_branch
      %35 = sbr.rel (0) target = $region17
    $region16: #{run.10} parent=1 // pred_region
      _
    $region17: #{run.10} parent=1 // pred_fallthru
      _
    // Predicated region
    $region18: #{run.10} parent=1 // pred_check
      _
    $region19: #{run.10} parent=1 // pred_check_branch
      %37 = sbr.rel (0) target = $region21
    $region20: #{run.10} parent=1 // pred_region
      _
    $region21: #{run.10} parent=1 // pred_fallthru
      _
    // Predicated region
    $region22: #{run.10} parent=1 // pred_check
      _
    $region23: #{run.10} parent=1 // pred_check_branch
      %39 = sbr.rel (0) target = $region25
    $region24: #{run.10} parent=1 // pred_region
      _
    $region25: #{run.10} parent=1 // pred_fallthru
      _
    // Predicated region
    $region26: #{run.10} parent=1 // pred_check
      _
    $region27: #{run.10} parent=1 // pred_check_branch
      %41 = sbr.rel (0) target = $region29
    $region28: #{run.10} parent=1 // pred_region
      _
    $region29: #{run.10} parent=1 // pred_fallthru
      _
    // Predicated region
    $region30: #{run.10} parent=1 // pred_check
      _
    $region31: #{run.10} parent=1 // pred_check_branch
      %43 = sbr.rel (0) target = $region33
    $region32: #{run.10} parent=1 // pred_region
      _
    $region33: #{run.10} parent=1 // pred_fallthru
      _
    // Predicated region
    $region34: #{run.10} parent=1 // pred_check
      _
    $region35: #{run.10} parent=1 // pred_check_branch
      %45 = sbr.rel (0) target = $region37
    $region36: #{run.10} parent=1 // pred_region
      _
    $region37: #{run.10} parent=1 // pred_fallthru
      _
    // Predicated region
    $region38: #{run.10} parent=1 // pred_check
      _
    $region39: #{run.10} parent=1 // pred_check_branch
      %47 = sbr.rel (0) target = $region41
    $region40: #{run.10} parent=1 // pred_region
      _
    $region41: #{run.10} parent=1 // pred_fallthru
      _
    // Predicated region
    $region42: #{run.10} parent=1 // pred_check
      _
    $region43: #{run.10} parent=1 // pred_check_branch
      %49 = sbr.rel (0) target = $region45
    $region44: #{run.10} parent=1 // pred_region
      _
    $region45: #{run.10} parent=1 // pred_fallthru
      _
    // Predicated region
    $region46: #{run.10} parent=1 // pred_check
      _
    $region47: #{run.10} parent=1 // pred_check_branch
      %51 = sbr.rel (0) target = $region49
    $region48: #{run.10} parent=1 // pred_region
      _
    $region49: #{run.10} parent=1 // pred_fallthru
      _
    // Predicated region
    $region50: #{run.10} parent=1 // pred_check
      _
    $region51: #{run.10} parent=1 // pred_check_branch
      %53 = sbr.rel (0) target = $region53
    $region52: #{run.10} parent=1 // pred_region
      _
    $region53: #{run.10} parent=1 // pred_fallthru
      _
    // Predicated region
    $region54: #{run.10} parent=1 // pred_check
      _
    $region55: #{run.10} parent=1 // pred_check_branch
      %55 = sbr.rel (0) target = $region57
    $region56: #{run.10} parent=1 // pred_region
      _
    $region57: #{run.10} parent=1 // pred_fallthru
      _
    // Predicated region
    $region58: #{run.10} parent=1 // pred_check
      _
    $region59: #{run.10} parent=1 // pred_check_branch
      %57 = sbr.rel (0) target = $region61
    $region60: #{run.10} parent=1 // pred_region
      _
    $region61: #{run.10} parent=1 // pred_fallthru
      _
    // Predicated region
    $region62: #{run.10} parent=1 // pred_check
      _
    $region63: #{run.10} parent=1 // pred_check_branch
      %59 = sbr.rel (0) target = $region65
    $region64: #{run.10} parent=1 // pred_region
      _
    $region65: #{run.10} parent=1 // pred_fallthru
      _
    %v60 = vld [vmem:[%s0] sm:$0x3]
    %v61 = vld [vmem:[%s1] sm:$0xff]
    %v62 = vld [vmem:[%s1 + $0x8] sm:$0xff]
    %v63 = vld [vmem:[%s5] sm:$0x1]
    %v65 = vperm.slane %v63, 0
    %v67 = vmul.f32 %v60, %v65
    %vm68 = vcmask 254976
    %v69 = vsel %vm68, %v67, 0.0
    %70 = vadd.xlane.f32.xlu0 %v69
    %v71 = vpop.xlane.xlu0 %70
    %v72 = vld [vmem:[%s6] sm:$0x1]
    %v74 = vperm.slane %v72, 0
    %v76 = vmul.f32 %v61, %v74
    %v77 = vmul.f32 %v62, %v74
    %vm78 = vcmask 261120
    %v79 = vsel %vm78, %v76, 0.0
    %80 = vadd.xlane.f32.xlu0 %v79
    %v81 = vpop.xlane.xlu0 %80
    %v82 = vsel %vm78, %v77, 0.0
    %83 = vadd.xlane.f32.xlu0 %v82
    %v84 = vpop.xlane.xlu0 %83
    %v87 = vlaneseq
    %v88 = vand.u32 %v87, 127
    %v89 = vperm.slane %v81, %v88
    %v90 = vperm.slane %v84, %v88
    %vm91 = vcmask 1041409
    %v92 = vsel %vm91, %v90, %v89
    %v94 = vadd.f32 %v71, %v92
    %v95 = vld [vmem:[#allocation2] sm:$0x1]
    %v97 = vperm.slane %v95, 0
    %98 = vset.pattern.permute.xlu0 0
    %99 = vperm.xlu0 %98, %v97
    %v100 = vpop.permute.xlu0 %99
    %v102 = vadd.f32 %v94, %v100
    %vm103 = vcmp.ge.f32.partialorder %v102, 0.0
    %v104 = vmul.f32 %v102, 0.01
    %v105 = vsel %vm103, %v102, %v104
    %v106 = vld [vmem:[%s2] sm:$0x3]
    %v107 = vadd.f32 %v105, %v106
    %vm108 = vcmask 58368
    %v109 = vsel %vm108, %v107, -inf
    %110 = vmax.xlane.f32.xlu0 %v109
    %v111 = vpop.xlane.xlu0 %110
    %v112 = vsub.f32 %v107, %v111
    %v113 = vmul.f32 %v112, 1.442695
    %v114 = vpow.pop %v113
    %v115 = vsel %vm108, %v114, 0.0
    %116 = vadd.xlane.f32.xlu0 %v115
    %v117 = vpop.xlane.xlu0 %116
    %v118 = vrcp.pop %v117
    %v119 = vmul.f32 %v117, %v118
    %v120 = vsub.f32 1.0, %v119
    %v121 = vmul.f32 %v118, %v120
    %v122 = vadd.f32 %v118, %v121
    %vm123 = vweird.f32 %v117
    %vm124 = vweird.f32 %v118
    %vm125 = vmor %vm123, %vm124
    %v126 = vsel %vm125, %v118, %v122
    %v127 = vand.u32 2147483647, %v117
    %vm128 = vcmp.eq.f32.partialorder %v127, 8.507059e+37
    %v129 = vand.u32 %v117, 2147483648
    %v130 = vor.u32 1.1754944e-38, %v129
    %v131 = vsel %vm128, %v130, %v126
    %v132 = vmul.f32 %v114, %v131
    %v133 = vld [vmem:[%s3] sm:$0x3]
    %v134 = vmul.f32 %v132, %v133
    %135 = vst.msk [vmem:[#allocation5] sm:$0x3] %vm108, %v134
    %v136 = vperm.slane %v134, 0
    %v137 = vlaneseq
    %v138 = vshrl.u32 %v137, 7
    %140 = vset.pattern.permute.xlu0 %v138
    %141 = vperm.xlu0 %140, %v136
    %v142 = vpop.permute.xlu0 %141
    %v143 = vperm.slane %v134, 1
    %v144 = vlaneseq
    %v145 = vshrl.u32 %v144, 7
    %147 = vset.pattern.permute.xlu0 %v145
    %148 = vperm.xlu0 %147, %v143
    %v149 = vpop.permute.xlu0 %148
    %v150 = vmul.f32 %v142, %v61
    %v151 = vmul.f32 %v149, %v62
    %v152 = vsel %vm78, %v150, 0.0
    %v153 = vrot.slane %v152, 4
    %v154 = vadd.f32 %v152, %v153
    %v155 = vrot.slane %v154, 2
    %v156 = vadd.f32 %v154, %v155
    %v157 = vrot.slane %v156, 1
    %v158 = vadd.f32 %v156, %v157
    %v159 = vsel %vm78, %v151, 0.0
    %v160 = vrot.slane %v159, 4
    %v161 = vadd.f32 %v159, %v160
    %v162 = vrot.slane %v161, 2
    %v163 = vadd.f32 %v161, %v162
    %v164 = vrot.slane %v163, 1
    %v165 = vadd.f32 %v163, %v164
    %v166 = vsel %vm108, %v134, 0.0
    %167 = vadd.xlane.f32.xlu0 %v166
    %v168 = vpop.xlane.xlu0 %167
    %v169 = vld [vmem:[%s8] sm:$0xff]
    %v170 = vld [vmem:[%s8 + $0x8] sm:$0xff]
    %v171 = vld [vmem:[%s8 + $0x10] sm:$0xff]
    %v172 = vld [vmem:[%s8 + $0x18] sm:$0xff]
    %v173 = vld [vmem:[%s9] sm:$0x1]
    %v175 = vperm.slane %v173, 0
    %v177 = vmul.f32 %v168, %v175
    %v180 = vsel %vm91, %v165, %v158
    %v181 = vsel %vm78, %v180, 0
    %183 = vmatpush.msra.mxu0 0.0
    %184 = vmatpush.msra.mxu0 0.0
    %185 = vmatpush.msra.mxu0 0.0
    %186 = vmatpush.msra.mxu0 0.0
    %187 = vmatpush.msra.mxu0 0.0
    %188 = vmatpush.msra.mxu0 0.0
    %189 = vmatpush.msra.mxu0 0.0
    %190 = vmatpush.msra.mxu0 0.0
    %191 = vmatpush.msra.mxu0 0.0
    %192 = vmatpush.msra.mxu0 0.0
    %193 = vmatpush.msra.mxu0 0.0
    %194 = vmatpush.msra.mxu0 0.0
    %195 = vmatpush.msra.mxu0 %v172
    %196 = vmatpush.msra.mxu0 %v171
    %197 = vmatpush.msra.mxu0 %v170
    %198 = vmatpush.msra.mxu0 %v169
    %199 = vmatmul.f32.gmra.mxu0 %v181
    %v200 = vpop.f32.mrf.mxu0
    %v201 = vadd.f32 %v177, %v200
    %202 = vdwg.mxu0
    %vm203 = vcmp.gt.f32.partialorder %v201, 0.0
    %v204 = vmul.f32 %v201, 1.442695
    %v205 = vpow.pop %v204
    %v206 = vsub.f32 %v205, 1.0
    %v207 = vsel %vm203, %v201, %v206
    %v208 = vld [vmem:[%s10] sm:$0x1]
    %v210 = vperm.slane %v208, 0
    %v212 = vmul.f32 %v207, %v210
    %v213 = vld [vmem:[%s11] sm:$0x1]
    %v215 = vperm.slane %v213, 0
    %v217 = vadd.f32 %v212, %v215
    %v218 = vld [vmem:[%s4] sm:$0x3]
    %v219 = vld [vmem:[%s12] sm:$0xff]
    %v220 = vld [vmem:[%s12 + $0x8] sm:$0xff]
    %v221 = vld [vmem:[%s12 + $0x10] sm:$0xff]
    %v222 = vld [vmem:[%s12 + $0x18] sm:$0xff]
    %v223 = vld [vmem:[%s12 + $0x20] sm:$0xff]
    %v224 = vld [vmem:[%s12 + $0x28] sm:$0xff]
    %v225 = vld [vmem:[%s12 + $0x30] sm:$0xff]
    %v226 = vld [vmem:[%s12 + $0x38] sm:$0xff]
    %v227 = vld [vmem:[%s12 + $0x40] sm:$0xff]
    %v228 = vld [vmem:[%s12 + $0x48] sm:$0xff]
    %v229 = vld [vmem:[%s12 + $0x50] sm:$0xff]
    %v230 = vld [vmem:[%s12 + $0x58] sm:$0xff]
    %v231 = vld [vmem:[%s13] sm:$0xff]
    %v232 = vld [vmem:[%s13 + $0x8] sm:$0xff]
    %v233 = vld [vmem:[%s13 + $0x10] sm:$0xff]
    %v234 = vld [vmem:[%s13 + $0x18] sm:$0xff]
    %v235 = vld [vmem:[%s13 + $0x20] sm:$0xff]
    %v236 = vld [vmem:[%s13 + $0x28] sm:$0xff]
    %v237 = vld [vmem:[%s13 + $0x30] sm:$0xff]
    %v238 = vld [vmem:[%s13 + $0x38] sm:$0xff]
    %v239 = vld [vmem:[%s13 + $0x40] sm:$0xff]
    %v240 = vld [vmem:[%s13 + $0x48] sm:$0xff]
    %v241 = vld [vmem:[%s13 + $0x50] sm:$0xff]
    %v242 = vld [vmem:[%s13 + $0x58] sm:$0xff]
    %v243 = vld [vmem:[%s14] sm:$0x1]
    %v244 = vld [vmem:[%s14 + $0x1] sm:$0x1]
    %v245 = vld [vmem:[%s14 + $0x2] sm:$0x1]
    %v246 = vld [vmem:[%s15] sm:$0x1]
    %v247 = vld [vmem:[%s15 + $0x1] sm:$0x1]
    %v248 = vld [vmem:[%s15 + $0x2] sm:$0x1]
    %v250 = vperm.slane %v243, 0
    %v253 = vsel %vm78, %v217, 0
    %255 = vmatpush.msra.mxu0 0.0
    %256 = vmatpush.msra.mxu0 0.0
    %257 = vmatpush.msra.mxu0 0.0
    %258 = vmatpush.msra.mxu0 0.0
    %259 = vmatpush.msra.mxu0 0.0
    %260 = vmatpush.msra.mxu0 0.0
    %261 = vmatpush.msra.mxu0 0.0
    %262 = vmatpush.msra.mxu0 0.0
    %263 = vmatpush.msra.mxu0 0.0
    %264 = vmatpush.msra.mxu0 0.0
    %265 = vmatpush.msra.mxu0 0.0
    %266 = vmatpush.msra.mxu0 0.0
    %267 = vmatpush.msra.mxu0 %v222
    %268 = vmatpush.msra.mxu0 %v221
    %269 = vmatpush.msra.mxu0 %v220
    %270 = vmatpush.msra.mxu0 %v219
    %271 = vmatmul.f32.gmra.mxu0 %v253
    %v272 = vpop.f32.mrf.mxu0
    %v273 = vadd.f32 %v250, %v272
    %274 = vdwg.mxu0
    %v276 = vperm.slane %v246, 0
    %v279 = vsel %vm78, %v218, 0
    %281 = vmatpush.msra.mxu0 0.0
    %282 = vmatpush.msra.mxu0 0.0
    %283 = vmatpush.msra.mxu0 0.0
    %284 = vmatpush.msra.mxu0 0.0
    %285 = vmatpush.msra.mxu0 0.0
    %286 = vmatpush.msra.mxu0 0.0
    %287 = vmatpush.msra.mxu0 0.0
    %288 = vmatpush.msra.mxu0 0.0
    %289 = vmatpush.msra.mxu0 0.0
    %290 = vmatpush.msra.mxu0 0.0
    %291 = vmatpush.msra.mxu0 0.0
    %292 = vmatpush.msra.mxu0 0.0
    %293 = vmatpush.msra.mxu0 %v234
    %294 = vmatpush.msra.mxu0 %v233
    %295 = vmatpush.msra.mxu0 %v232
    %296 = vmatpush.msra.mxu0 %v231
    %297 = vmatmul.f32.gmra.mxu0 %v279
    %v298 = vpop.f32.mrf.mxu0
    %v299 = vadd.f32 %v276, %v298
    %300 = vdwg.mxu0
    %v302 = vperm.slane %v244, 0
    %304 = vmatpush.msra.mxu0 0.0
    %305 = vmatpush.msra.mxu0 0.0
    %306 = vmatpush.msra.mxu0 0.0
    %307 = vmatpush.msra.mxu0 0.0
    %308 = vmatpush.msra.mxu0 0.0
    %309 = vmatpush.msra.mxu0 0.0
    %310 = vmatpush.msra.mxu0 0.0
    %311 = vmatpush.msra.mxu0 0.0
    %312 = vmatpush.msra.mxu0 0.0
    %313 = vmatpush.msra.mxu0 0.0
    %314 = vmatpush.msra.mxu0 0.0
    %315 = vmatpush.msra.mxu0 0.0
    %316 = vmatpush.msra.mxu0 %v226
    %317 = vmatpush.msra.mxu0 %v225
    %318 = vmatpush.msra.mxu0 %v224
    %319 = vmatpush.msra.mxu0 %v223
    %320 = vmatmul.f32.gmra.mxu0 %v253
    %v321 = vpop.f32.mrf.mxu0
    %v322 = vadd.f32 %v302, %v321
    %323 = vdwg.mxu0
    %v325 = vperm.slane %v247, 0
    %327 = vmatpush.msra.mxu0 0.0
    %328 = vmatpush.msra.mxu0 0.0
    %329 = vmatpush.msra.mxu0 0.0
    %330 = vmatpush.msra.mxu0 0.0
    %331 = vmatpush.msra.mxu0 0.0
    %332 = vmatpush.msra.mxu0 0.0
    %333 = vmatpush.msra.mxu0 0.0
    %334 = vmatpush.msra.mxu0 0.0
    %335 = vmatpush.msra.mxu0 0.0
    %336 = vmatpush.msra.mxu0 0.0
    %337 = vmatpush.msra.mxu0 0.0
    %338 = vmatpush.msra.mxu0 0.0
    %339 = vmatpush.msra.mxu0 %v238
    %340 = vmatpush.msra.mxu0 %v237
    %341 = vmatpush.msra.mxu0 %v236
    %342 = vmatpush.msra.mxu0 %v235
    %343 = vmatmul.f32.gmra.mxu0 %v279
    %v344 = vpop.f32.mrf.mxu0
    %v345 = vadd.f32 %v325, %v344
    %346 = vdwg.mxu0
    %v348 = vperm.slane %v245, 0
    %350 = vmatpush.msra.mxu0 0.0
    %351 = vmatpush.msra.mxu0 0.0
    %352 = vmatpush.msra.mxu0 0.0
    %353 = vmatpush.msra.mxu0 0.0
    %354 = vmatpush.msra.mxu0 0.0
    %355 = vmatpush.msra.mxu0 0.0
    %356 = vmatpush.msra.mxu0 0.0
    %357 = vmatpush.msra.mxu0 0.0
    %358 = vmatpush.msra.mxu0 0.0
    %359 = vmatpush.msra.mxu0 0.0
    %360 = vmatpush.msra.mxu0 0.0
    %361 = vmatpush.msra.mxu0 0.0
    %362 = vmatpush.msra.mxu0 %v230
    %363 = vmatpush.msra.mxu0 %v229
    %364 = vmatpush.msra.mxu0 %v228
    %365 = vmatpush.msra.mxu0 %v227
    %366 = vmatmul.f32.gmra.mxu0 %v253
    %v367 = vpop.f32.mrf.mxu0
    %v368 = vadd.f32 %v348, %v367
    %369 = vdwg.mxu0
    %v371 = vperm.slane %v248, 0
    %373 = vmatpush.msra.mxu0 0.0
    %374 = vmatpush.msra.mxu0 0.0
    %375 = vmatpush.msra.mxu0 0.0
    %376 = vmatpush.msra.mxu0 0.0
    %377 = vmatpush.msra.mxu0 0.0
    %378 = vmatpush.msra.mxu0 0.0
    %379 = vmatpush.msra.mxu0 0.0
    %380 = vmatpush.msra.mxu0 0.0
    %381 = vmatpush.msra.mxu0 0.0
    %382 = vmatpush.msra.mxu0 0.0
    %383 = vmatpush.msra.mxu0 0.0
    %384 = vmatpush.msra.mxu0 0.0
    %385 = vmatpush.msra.mxu0 %v242
    %386 = vmatpush.msra.mxu0 %v241
    %387 = vmatpush.msra.mxu0 %v240
    %388 = vmatpush.msra.mxu0 %v239
    %389 = vmatmul.f32.gmra.mxu0 %v279
    %v390 = vpop.f32.mrf.mxu0
    %v391 = vadd.f32 %v371, %v390
    %392 = vdwg.mxu0
    %v393 = vadd.f32 %v273, %v299
    %v394 = vxor.u32 %v393, 2147483648
    %v395 = vmul.f32 %v394, 1.442695
    %v396 = vpow.pop %v395
    %v397 = vadd.f32 %v396, 1.0
    %v398 = vrcp.pop %v397
    %v399 = vmul.f32 %v397, %v398
    %v400 = vsub.f32 1.0, %v399
    %v401 = vmul.f32 %v398, %v400
    %v402 = vadd.f32 %v398, %v401
    %vm403 = vweird.f32 %v397
    %vm404 = vweird.f32 %v398
    %vm405 = vmor %vm403, %vm404
    %v406 = vsel %vm405, %v398, %v402
    %v407 = vand.u32 2147483647, %v397
    %vm408 = vcmp.eq.f32.partialorder %v407, 8.507059e+37
    %v409 = vand.u32 %v397, 2147483648
    %v410 = vor.u32 1.1754944e-38, %v409
    %v411 = vsel %vm408, %v410, %v406
    %v412 = vmul.f32 1.0, %v411
    %v413 = vadd.f32 %v322, %v345
    %v414 = vxor.u32 %v413, 2147483648
    %v415 = vmul.f32 %v414, 1.442695
    %v416 = vpow.pop %v415
    %v417 = vadd.f32 %v416, 1.0
    %v418 = vrcp.pop %v417
    %v419 = vmul.f32 %v417, %v418
    %v420 = vsub.f32 1.0, %v419
    %v421 = vmul.f32 %v418, %v420
    %v422 = vadd.f32 %v418, %v421
    %vm423 = vweird.f32 %v417
    %vm424 = vweird.f32 %v418
    %vm425 = vmor %vm423, %vm424
    %v426 = vsel %vm425, %v418, %v422
    %v427 = vand.u32 2147483647, %v417
    %vm428 = vcmp.eq.f32.partialorder %v427, 8.507059e+37
    %v429 = vand.u32 %v417, 2147483648
    %v430 = vor.u32 1.1754944e-38, %v429
    %v431 = vsel %vm428, %v430, %v426
    %v432 = vmul.f32 1.0, %v431
    %v433 = vmul.f32 %v412, %v391
    %v434 = vadd.f32 %v368, %v433
    %v435 = vtanh.pop %v434
    %v436 = vsub.f32 1.0, %v432
    %v437 = vmul.f32 %v436, %v435
    %v438 = vmul.f32 %v432, %v218
    %v439 = vadd.f32 %v437, %v438
    %440 = vst.msk [vmem:[%s16] sm:$0x3] %vm68, %v439
    %v441 = vmax.f32 %v439, 0.0
    %442 = vst.msk [vmem:[#allocation3] sm:$0x3] %vm68, %v441
    // Predicated region
    $region66: #{run.10} parent=1 // pred_check
      _
    $region67: #{run.10} parent=1 // pred_check_branch
      %444 = sbr.rel (0) target = $region69
    $region68: #{run.10} parent=1 // pred_region
      _
    $region69: #{run.10} parent=1 // pred_fallthru
      _
    // Predicated region
    $region70: #{run.10} parent=1 // pred_check
      _
    $region71: #{run.10} parent=1 // pred_check_branch
      %446 = sbr.rel (0) target = $region73
    $region72: #{run.10} parent=1 // pred_region
      %448 = vsyncadd [#allocation4], 0
      %s450 = sshll.u32 [#allocation3], 4
      %s451 = int_to_ptr.vmem [resolvable:$true] %s450
      %s452 = sshll.u32 %s17, 4
      %s453 = int_to_ptr.hbm [resolvable:$true] %s452
      %455 = dma.vmem_to_hbm [thread:$0]  %s451, 32, %s453, [#allocation4]
    $region73: #{run.10} parent=1 // pred_fallthru
      _
    // Predicated region
    $region74: #{run.10} parent=1 // pred_check
      _
    $region75: #{run.10} parent=1 // pred_check_branch
      %457 = sbr.rel (0) target = $region77
    $region76: #{run.10} parent=1 // pred_region
      %459 = vsyncadd [#allocation6], 0
      %s461 = sshll.u32 [#allocation5], 4
      %s462 = int_to_ptr.vmem [resolvable:$true] %s461
      %s463 = sshll.u32 %s18, 4
      %s464 = int_to_ptr.hbm [resolvable:$true] %s463
      %466 = dma.vmem_to_hbm [thread:$0]  %s462, 32, %s464, [#allocation6]
    $region77: #{run.10} parent=1 // pred_fallthru
      _
    // Predicated region
    $region78: #{run.10} parent=1 // pred_check
      _
    $region79: #{run.10} parent=1 // pred_check_branch
      %468 = sbr.rel (0) target = $region81
    $region80: #{run.10} parent=1 // pred_region
      _
    $region81: #{run.10} parent=1 // pred_fallthru
      _
    // Predicated region
    $region82: #{run.10} parent=1 // pred_check
      _
    $region83: #{run.10} parent=1 // pred_check_branch
      %470 = sbr.rel (0) target = $region85
    $region84: #{run.10} parent=1 // pred_region
      %472 = dma.done [#allocation4], 32
    $region85: #{run.10} parent=1 // pred_fallthru
      _
    // Predicated region
    $region86: #{run.10} parent=1 // pred_check
      _
    $region87: #{run.10} parent=1 // pred_check_branch
      %474 = sbr.rel (0) target = $region89
    $region88: #{run.10} parent=1 // pred_region
      %476 = dma.done [#allocation6], 32
    $region89: #{run.10} parent=1 // pred_fallthru
      _
    %477 = vsyncpa [#allocation4], 1
    %478 = vsyncpa [#allocation6], 1

// kernel: run.9
$region0: #{run.9}
  #allocation0 [shape = 'u32[]', space=smem, size = 0x4, offset = 0x4, fixed_abs, tag = 'smem constant byte address 0x4 - core index']
  #allocation1 [shape = 'u32[72,128]{1,0:T(1,128)}', space=vmem, size = 0x9000, scoped, tag = 'internal scratch']
  #allocation2 [shape = 'f32[1,1]{1,0:T(1,128)S(1)}', space=vmem, size = 0x200, scoped, tag = 'scoped memory for run.9']
  %s0 = inlined_call_operand.vmem [shape: f32[2,32], index: 0, kind: input, shape index: {}]
  %s1 = inlined_call_operand.vmem [shape: f32[2,8,32], index: 1, kind: input, shape index: {}]
  %s2 = inlined_call_operand.vmem [shape: f32[2,8], index: 2, kind: input, shape index: {}]
  %s3 = inlined_call_operand.vmem [shape: f32[2,8], index: 3, kind: input, shape index: {}]
  %s4 = inlined_call_operand.vmem [shape: f32[2,32], index: 4, kind: input, shape index: {}]
  %s5 = inlined_call_operand.vmem [shape: f32[1,32], index: 5, kind: input, shape index: {}]
  %s6 = inlined_call_operand.vmem [shape: f32[1,32], index: 6, kind: input, shape index: {}]
  %s7 = inlined_call_operand.<no memory space> [shape: f32[1,1], index: 7, kind: input, shape index: {}]
  %s8 = inlined_call_operand.vmem [shape: f32[32,32], index: 8, kind: input, shape index: {}]
  %s9 = inlined_call_operand.vmem [shape: f32[1,32], index: 9, kind: input, shape index: {}]
  %s10 = inlined_call_operand.vmem [shape: f32[1,32], index: 10, kind: input, shape index: {}]
  %s11 = inlined_call_operand.vmem [shape: f32[1,32], index: 11, kind: input, shape index: {}]
  %s12 = inlined_call_operand.vmem [shape: f32[3,32,32], index: 12, kind: input, shape index: {}]
  %s13 = inlined_call_operand.vmem [shape: f32[3,32,32], index: 13, kind: input, shape index: {}]
  %s14 = inlined_call_operand.vmem [shape: f32[3,1,32], index: 14, kind: input, shape index: {}]
  %s15 = inlined_call_operand.vmem [shape: f32[3,1,32], index: 15, kind: input, shape index: {}]
  %s16 = inlined_call_operand.vmem [shape: f32[2,32], index: 16, kind: output, shape index: {0}]
  %s17 = inlined_call_operand.vmem [shape: f32[2,32], index: 17, kind: output, shape index: {1}]
  %s18 = inlined_call_operand.hbm [shape: f32[2,8], index: 18, kind: output, shape index: {2}]
  %19 = xla_tuple %s16, %s17, %s18
  %s20 = sld [smem:[#allocation0]]
  $region90: #{run.9} parent=0
    _
  %s22 = ssub.s32 1, %s20
  %s23 = scalar_select 0, %s22, %s20
  %v24 = vstv %s7
  %25 = vst [vmem:[#allocation2] sm:$0x1] %v24
  $region1: #{run.9} parent=0
    #allocation3 [shape = 'u8[1024]{0}', space=vmem, size = 0x400, scoped, tag = 'output window, operand 2, single buffered']
    #allocation4 [shape = 's32[1]{0}', space=sflag, size = 0x4, scoped, tag = 'scoped memory for run.9']
    %26 = vsyncpa [#allocation4], 0
    // Predicated region
    $region2: #{run.9} parent=1 // pred_check
      _
    $region3: #{run.9} parent=1 // pred_check_branch
      %28 = sbr.rel (0) target = $region5
    $region4: #{run.9} parent=1 // pred_region
      _
    $region5: #{run.9} parent=1 // pred_fallthru
      _
    // Predicated region
    $region6: #{run.9} parent=1 // pred_check
      _
    $region7: #{run.9} parent=1 // pred_check_branch
      %30 = sbr.rel (0) target = $region9
    $region8: #{run.9} parent=1 // pred_region
      _
    $region9: #{run.9} parent=1 // pred_fallthru
      _
    // Predicated region
    $region10: #{run.9} parent=1 // pred_check
      _
    $region11: #{run.9} parent=1 // pred_check_branch
      %32 = sbr.rel (0) target = $region13
    $region12: #{run.9} parent=1 // pred_region
      _
    $region13: #{run.9} parent=1 // pred_fallthru
      _
    // Predicated region
    $region14: #{run.9} parent=1 // pred_check
      _
    $region15: #{run.9} parent=1 // pred_check_branch
      %34 = sbr.rel (0) target = $region17
    $region16: #{run.9} parent=1 // pred_region
      _
    $region17: #{run.9} parent=1 // pred_fallthru
      _
    // Predicated region
    $region18: #{run.9} parent=1 // pred_check
      _
    $region19: #{run.9} parent=1 // pred_check_branch
      %36 = sbr.rel (0) target = $region21
    $region20: #{run.9} parent=1 // pred_region
      _
    $region21: #{run.9} parent=1 // pred_fallthru
      _
    // Predicated region
    $region22: #{run.9} parent=1 // pred_check
      _
    $region23: #{run.9} parent=1 // pred_check_branch
      %38 = sbr.rel (0) target = $region25
    $region24: #{run.9} parent=1 // pred_region
      _
    $region25: #{run.9} parent=1 // pred_fallthru
      _
    // Predicated region
    $region26: #{run.9} parent=1 // pred_check
      _
    $region27: #{run.9} parent=1 // pred_check_branch
      %40 = sbr.rel (0) target = $region29
    $region28: #{run.9} parent=1 // pred_region
      _
    $region29: #{run.9} parent=1 // pred_fallthru
      _
    // Predicated region
    $region30: #{run.9} parent=1 // pred_check
      _
    $region31: #{run.9} parent=1 // pred_check_branch
      %42 = sbr.rel (0) target = $region33
    $region32: #{run.9} parent=1 // pred_region
      _
    $region33: #{run.9} parent=1 // pred_fallthru
      _
    // Predicated region
    $region34: #{run.9} parent=1 // pred_check
      _
    $region35: #{run.9} parent=1 // pred_check_branch
      %44 = sbr.rel (0) target = $region37
    $region36: #{run.9} parent=1 // pred_region
      _
    $region37: #{run.9} parent=1 // pred_fallthru
      _
    // Predicated region
    $region38: #{run.9} parent=1 // pred_check
      _
    $region39: #{run.9} parent=1 // pred_check_branch
      %46 = sbr.rel (0) target = $region41
    $region40: #{run.9} parent=1 // pred_region
      _
    $region41: #{run.9} parent=1 // pred_fallthru
      _
    // Predicated region
    $region42: #{run.9} parent=1 // pred_check
      _
    $region43: #{run.9} parent=1 // pred_check_branch
      %48 = sbr.rel (0) target = $region45
    $region44: #{run.9} parent=1 // pred_region
      _
    $region45: #{run.9} parent=1 // pred_fallthru
      _
    // Predicated region
    $region46: #{run.9} parent=1 // pred_check
      _
    $region47: #{run.9} parent=1 // pred_check_branch
      %50 = sbr.rel (0) target = $region49
    $region48: #{run.9} parent=1 // pred_region
      _
    $region49: #{run.9} parent=1 // pred_fallthru
      _
    // Predicated region
    $region50: #{run.9} parent=1 // pred_check
      _
    $region51: #{run.9} parent=1 // pred_check_branch
      %52 = sbr.rel (0) target = $region53
    $region52: #{run.9} parent=1 // pred_region
      _
    $region53: #{run.9} parent=1 // pred_fallthru
      _
    // Predicated region
    $region54: #{run.9} parent=1 // pred_check
      _
    $region55: #{run.9} parent=1 // pred_check_branch
      %54 = sbr.rel (0) target = $region57
    $region56: #{run.9} parent=1 // pred_region
      _
    $region57: #{run.9} parent=1 // pred_fallthru
      _
    // Predicated region
    $region58: #{run.9} parent=1 // pred_check
      _
    $region59: #{run.9} parent=1 // pred_check_branch
      %56 = sbr.rel (0) target = $region61
    $region60: #{run.9} parent=1 // pred_region
      _
    $region61: #{run.9} parent=1 // pred_fallthru
      _
    // Predicated region
    $region62: #{run.9} parent=1 // pred_check
      _
    $region63: #{run.9} parent=1 // pred_check_branch
      %58 = sbr.rel (0) target = $region65
    $region64: #{run.9} parent=1 // pred_region
      _
    $region65: #{run.9} parent=1 // pred_fallthru
      _
    %v59 = vld [vmem:[%s0] sm:$0x3]
    %v60 = vld [vmem:[%s1] sm:$0xff]
    %v61 = vld [vmem:[%s1 + $0x8] sm:$0xff]
    %v62 = vld [vmem:[%s5] sm:$0x1]
    %v64 = vperm.slane %v62, 0
    %v66 = vmul.f32 %v59, %v64
    %vm67 = vcmask 254976
    %v68 = vsel %vm67, %v66, 0.0
    %69 = vadd.xlane.f32.xlu0 %v68
    %v70 = vpop.xlane.xlu0 %69
    %v71 = vld [vmem:[%s6] sm:$0x1]
    %v73 = vperm.slane %v71, 0
    %v75 = vmul.f32 %v60, %v73
    %v76 = vmul.f32 %v61, %v73
    %vm77 = vcmask 261120
    %v78 = vsel %vm77, %v75, 0.0
    %79 = vadd.xlane.f32.xlu0 %v78
    %v80 = vpop.xlane.xlu0 %79
    %v81 = vsel %vm77, %v76, 0.0
    %82 = vadd.xlane.f32.xlu0 %v81
    %v83 = vpop.xlane.xlu0 %82
    %v86 = vlaneseq
    %v87 = vand.u32 %v86, 127
    %v88 = vperm.slane %v80, %v87
    %v89 = vperm.slane %v83, %v87
    %vm90 = vcmask 1041409
    %v91 = vsel %vm90, %v89, %v88
    %v93 = vadd.f32 %v70, %v91
    %v94 = vld [vmem:[#allocation2] sm:$0x1]
    %v96 = vperm.slane %v94, 0
    %97 = vset.pattern.permute.xlu0 0
    %98 = vperm.xlu0 %97, %v96
    %v99 = vpop.permute.xlu0 %98
    %v101 = vadd.f32 %v93, %v99
    %vm102 = vcmp.ge.f32.partialorder %v101, 0.0
    %v103 = vmul.f32 %v101, 0.01
    %v104 = vsel %vm102, %v101, %v103
    %v105 = vld [vmem:[%s2] sm:$0x3]
    %v106 = vadd.f32 %v104, %v105
    %vm107 = vcmask 58368
    %v108 = vsel %vm107, %v106, -inf
    %109 = vmax.xlane.f32.xlu0 %v108
    %v110 = vpop.xlane.xlu0 %109
    %v111 = vsub.f32 %v106, %v110
    %v112 = vmul.f32 %v111, 1.442695
    %v113 = vpow.pop %v112
    %v114 = vsel %vm107, %v113, 0.0
    %115 = vadd.xlane.f32.xlu0 %v114
    %v116 = vpop.xlane.xlu0 %115
    %v117 = vrcp.pop %v116
    %v118 = vmul.f32 %v116, %v117
    %v119 = vsub.f32 1.0, %v118
    %v120 = vmul.f32 %v117, %v119
    %v121 = vadd.f32 %v117, %v120
    %vm122 = vweird.f32 %v116
    %vm123 = vweird.f32 %v117
    %vm124 = vmor %vm122, %vm123
    %v125 = vsel %vm124, %v117, %v121
    %v126 = vand.u32 2147483647, %v116
    %vm127 = vcmp.eq.f32.partialorder %v126, 8.507059e+37
    %v128 = vand.u32 %v116, 2147483648
    %v129 = vor.u32 1.1754944e-38, %v128
    %v130 = vsel %vm127, %v129, %v125
    %v131 = vmul.f32 %v113, %v130
    %v132 = vld [vmem:[%s3] sm:$0x3]
    %v133 = vmul.f32 %v131, %v132
    %134 = vst.msk [vmem:[#allocation3] sm:$0x3] %vm107, %v133
    %v135 = vperm.slane %v133, 0
    %v136 = vlaneseq
    %v137 = vshrl.u32 %v136, 7
    %139 = vset.pattern.permute.xlu0 %v137
    %140 = vperm.xlu0 %139, %v135
    %v141 = vpop.permute.xlu0 %140
    %v142 = vperm.slane %v133, 1
    %v143 = vlaneseq
    %v144 = vshrl.u32 %v143, 7
    %146 = vset.pattern.permute.xlu0 %v144
    %147 = vperm.xlu0 %146, %v142
    %v148 = vpop.permute.xlu0 %147
    %v149 = vmul.f32 %v141, %v60
    %v150 = vmul.f32 %v148, %v61
    %v151 = vsel %vm77, %v149, 0.0
    %v152 = vrot.slane %v151, 4
    %v153 = vadd.f32 %v151, %v152
    %v154 = vrot.slane %v153, 2
    %v155 = vadd.f32 %v153, %v154
    %v156 = vrot.slane %v155, 1
    %v157 = vadd.f32 %v155, %v156
    %v158 = vsel %vm77, %v150, 0.0
    %v159 = vrot.slane %v158, 4
    %v160 = vadd.f32 %v158, %v159
    %v161 = vrot.slane %v160, 2
    %v162 = vadd.f32 %v160, %v161
    %v163 = vrot.slane %v162, 1
    %v164 = vadd.f32 %v162, %v163
    %v165 = vsel %vm107, %v133, 0.0
    %166 = vadd.xlane.f32.xlu0 %v165
    %v167 = vpop.xlane.xlu0 %166
    %v168 = vld [vmem:[%s8] sm:$0xff]
    %v169 = vld [vmem:[%s8 + $0x8] sm:$0xff]
    %v170 = vld [vmem:[%s8 + $0x10] sm:$0xff]
    %v171 = vld [vmem:[%s8 + $0x18] sm:$0xff]
    %v172 = vld [vmem:[%s9] sm:$0x1]
    %v174 = vperm.slane %v172, 0
    %v176 = vmul.f32 %v167, %v174
    %v179 = vsel %vm90, %v164, %v157
    %v180 = vsel %vm77, %v179, 0
    %182 = vmatpush.msra.mxu0 0.0
    %183 = vmatpush.msra.mxu0 0.0
    %184 = vmatpush.msra.mxu0 0.0
    %185 = vmatpush.msra.mxu0 0.0
    %186 = vmatpush.msra.mxu0 0.0
    %187 = vmatpush.msra.mxu0 0.0
    %188 = vmatpush.msra.mxu0 0.0
    %189 = vmatpush.msra.mxu0 0.0
    %190 = vmatpush.msra.mxu0 0.0
    %191 = vmatpush.msra.mxu0 0.0
    %192 = vmatpush.msra.mxu0 0.0
    %193 = vmatpush.msra.mxu0 0.0
    %194 = vmatpush.msra.mxu0 %v171
    %195 = vmatpush.msra.mxu0 %v170
    %196 = vmatpush.msra.mxu0 %v169
    %197 = vmatpush.msra.mxu0 %v168
    %198 = vmatmul.f32.gmra.mxu0 %v180
    %v199 = vpop.f32.mrf.mxu0
    %v200 = vadd.f32 %v176, %v199
    %201 = vdwg.mxu0
    %vm202 = vcmp.gt.f32.partialorder %v200, 0.0
    %v203 = vmul.f32 %v200, 1.442695
    %v204 = vpow.pop %v203
    %v205 = vsub.f32 %v204, 1.0
    %v206 = vsel %vm202, %v200, %v205
    %v207 = vld [vmem:[%s10] sm:$0x1]
    %v209 = vperm.slane %v207, 0
    %v211 = vmul.f32 %v206, %v209
    %v212 = vld [vmem:[%s11] sm:$0x1]
    %v214 = vperm.slane %v212, 0
    %v216 = vadd.f32 %v211, %v214
    %v217 = vld [vmem:[%s4] sm:$0x3]
    %v218 = vld [vmem:[%s12] sm:$0xff]
    %v219 = vld [vmem:[%s12 + $0x8] sm:$0xff]
    %v220 = vld [vmem:[%s12 + $0x10] sm:$0xff]
    %v221 = vld [vmem:[%s12 + $0x18] sm:$0xff]
    %v222 = vld [vmem:[%s12 + $0x20] sm:$0xff]
    %v223 = vld [vmem:[%s12 + $0x28] sm:$0xff]
    %v224 = vld [vmem:[%s12 + $0x30] sm:$0xff]
    %v225 = vld [vmem:[%s12 + $0x38] sm:$0xff]
    %v226 = vld [vmem:[%s12 + $0x40] sm:$0xff]
    %v227 = vld [vmem:[%s12 + $0x48] sm:$0xff]
    %v228 = vld [vmem:[%s12 + $0x50] sm:$0xff]
    %v229 = vld [vmem:[%s12 + $0x58] sm:$0xff]
    %v230 = vld [vmem:[%s13] sm:$0xff]
    %v231 = vld [vmem:[%s13 + $0x8] sm:$0xff]
    %v232 = vld [vmem:[%s13 + $0x10] sm:$0xff]
    %v233 = vld [vmem:[%s13 + $0x18] sm:$0xff]
    %v234 = vld [vmem:[%s13 + $0x20] sm:$0xff]
    %v235 = vld [vmem:[%s13 + $0x28] sm:$0xff]
    %v236 = vld [vmem:[%s13 + $0x30] sm:$0xff]
    %v237 = vld [vmem:[%s13 + $0x38] sm:$0xff]
    %v238 = vld [vmem:[%s13 + $0x40] sm:$0xff]
    %v239 = vld [vmem:[%s13 + $0x48] sm:$0xff]
    %v240 = vld [vmem:[%s13 + $0x50] sm:$0xff]
    %v241 = vld [vmem:[%s13 + $0x58] sm:$0xff]
    %v242 = vld [vmem:[%s14] sm:$0x1]
    %v243 = vld [vmem:[%s14 + $0x1] sm:$0x1]
    %v244 = vld [vmem:[%s14 + $0x2] sm:$0x1]
    %v245 = vld [vmem:[%s15] sm:$0x1]
    %v246 = vld [vmem:[%s15 + $0x1] sm:$0x1]
    %v247 = vld [vmem:[%s15 + $0x2] sm:$0x1]
    %v249 = vperm.slane %v242, 0
    %v252 = vsel %vm77, %v216, 0
    %254 = vmatpush.msra.mxu0 0.0
    %255 = vmatpush.msra.mxu0 0.0
    %256 = vmatpush.msra.mxu0 0.0
    %257 = vmatpush.msra.mxu0 0.0
    %258 = vmatpush.msra.mxu0 0.0
    %259 = vmatpush.msra.mxu0 0.0
    %260 = vmatpush.msra.mxu0 0.0
    %261 = vmatpush.msra.mxu0 0.0
    %262 = vmatpush.msra.mxu0 0.0
    %263 = vmatpush.msra.mxu0 0.0
    %264 = vmatpush.msra.mxu0 0.0
    %265 = vmatpush.msra.mxu0 0.0
    %266 = vmatpush.msra.mxu0 %v221
    %267 = vmatpush.msra.mxu0 %v220
    %268 = vmatpush.msra.mxu0 %v219
    %269 = vmatpush.msra.mxu0 %v218
    %270 = vmatmul.f32.gmra.mxu0 %v252
    %v271 = vpop.f32.mrf.mxu0
    %v272 = vadd.f32 %v249, %v271
    %273 = vdwg.mxu0
    %v275 = vperm.slane %v245, 0
    %v278 = vsel %vm77, %v217, 0
    %280 = vmatpush.msra.mxu0 0.0
    %281 = vmatpush.msra.mxu0 0.0
    %282 = vmatpush.msra.mxu0 0.0
    %283 = vmatpush.msra.mxu0 0.0
    %284 = vmatpush.msra.mxu0 0.0
    %285 = vmatpush.msra.mxu0 0.0
    %286 = vmatpush.msra.mxu0 0.0
    %287 = vmatpush.msra.mxu0 0.0
    %288 = vmatpush.msra.mxu0 0.0
    %289 = vmatpush.msra.mxu0 0.0
    %290 = vmatpush.msra.mxu0 0.0
    %291 = vmatpush.msra.mxu0 0.0
    %292 = vmatpush.msra.mxu0 %v233
    %293 = vmatpush.msra.mxu0 %v232
    %294 = vmatpush.msra.mxu0 %v231
    %295 = vmatpush.msra.mxu0 %v230
    %296 = vmatmul.f32.gmra.mxu0 %v278
    %v297 = vpop.f32.mrf.mxu0
    %v298 = vadd.f32 %v275, %v297
    %299 = vdwg.mxu0
    %v301 = vperm.slane %v243, 0
    %303 = vmatpush.msra.mxu0 0.0
    %304 = vmatpush.msra.mxu0 0.0
    %305 = vmatpush.msra.mxu0 0.0
    %306 = vmatpush.msra.mxu0 0.0
    %307 = vmatpush.msra.mxu0 0.0
    %308 = vmatpush.msra.mxu0 0.0
    %309 = vmatpush.msra.mxu0 0.0
    %310 = vmatpush.msra.mxu0 0.0
    %311 = vmatpush.msra.mxu0 0.0
    %312 = vmatpush.msra.mxu0 0.0
    %313 = vmatpush.msra.mxu0 0.0
    %314 = vmatpush.msra.mxu0 0.0
    %315 = vmatpush.msra.mxu0 %v225
    %316 = vmatpush.msra.mxu0 %v224
    %317 = vmatpush.msra.mxu0 %v223
    %318 = vmatpush.msra.mxu0 %v222
    %319 = vmatmul.f32.gmra.mxu0 %v252
    %v320 = vpop.f32.mrf.mxu0
    %v321 = vadd.f32 %v301, %v320
    %322 = vdwg.mxu0
    %v324 = vperm.slane %v246, 0
    %326 = vmatpush.msra.mxu0 0.0
    %327 = vmatpush.msra.mxu0 0.0
    %328 = vmatpush.msra.mxu0 0.0
    %329 = vmatpush.msra.mxu0 0.0
    %330 = vmatpush.msra.mxu0 0.0
    %331 = vmatpush.msra.mxu0 0.0
    %332 = vmatpush.msra.mxu0 0.0
    %333 = vmatpush.msra.mxu0 0.0
    %334 = vmatpush.msra.mxu0 0.0
    %335 = vmatpush.msra.mxu0 0.0
    %336 = vmatpush.msra.mxu0 0.0
    %337 = vmatpush.msra.mxu0 0.0
    %338 = vmatpush.msra.mxu0 %v237
    %339 = vmatpush.msra.mxu0 %v236
    %340 = vmatpush.msra.mxu0 %v235
    %341 = vmatpush.msra.mxu0 %v234
    %342 = vmatmul.f32.gmra.mxu0 %v278
    %v343 = vpop.f32.mrf.mxu0
    %v344 = vadd.f32 %v324, %v343
    %345 = vdwg.mxu0
    %v347 = vperm.slane %v244, 0
    %349 = vmatpush.msra.mxu0 0.0
    %350 = vmatpush.msra.mxu0 0.0
    %351 = vmatpush.msra.mxu0 0.0
    %352 = vmatpush.msra.mxu0 0.0
    %353 = vmatpush.msra.mxu0 0.0
    %354 = vmatpush.msra.mxu0 0.0
    %355 = vmatpush.msra.mxu0 0.0
    %356 = vmatpush.msra.mxu0 0.0
    %357 = vmatpush.msra.mxu0 0.0
    %358 = vmatpush.msra.mxu0 0.0
    %359 = vmatpush.msra.mxu0 0.0
    %360 = vmatpush.msra.mxu0 0.0
    %361 = vmatpush.msra.mxu0 %v229
    %362 = vmatpush.msra.mxu0 %v228
    %363 = vmatpush.msra.mxu0 %v227
    %364 = vmatpush.msra.mxu0 %v226
    %365 = vmatmul.f32.gmra.mxu0 %v252
    %v366 = vpop.f32.mrf.mxu0
    %v367 = vadd.f32 %v347, %v366
    %368 = vdwg.mxu0
    %v370 = vperm.slane %v247, 0
    %372 = vmatpush.msra.mxu0 0.0
    %373 = vmatpush.msra.mxu0 0.0
    %374 = vmatpush.msra.mxu0 0.0
    %375 = vmatpush.msra.mxu0 0.0
    %376 = vmatpush.msra.mxu0 0.0
    %377 = vmatpush.msra.mxu0 0.0
    %378 = vmatpush.msra.mxu0 0.0
    %379 = vmatpush.msra.mxu0 0.0
    %380 = vmatpush.msra.mxu0 0.0
    %381 = vmatpush.msra.mxu0 0.0
    %382 = vmatpush.msra.mxu0 0.0
    %383 = vmatpush.msra.mxu0 0.0
    %384 = vmatpush.msra.mxu0 %v241
    %385 = vmatpush.msra.mxu0 %v240
    %386 = vmatpush.msra.mxu0 %v239
    %387 = vmatpush.msra.mxu0 %v238
    %388 = vmatmul.f32.gmra.mxu0 %v278
    %v389 = vpop.f32.mrf.mxu0
    %v390 = vadd.f32 %v370, %v389
    %391 = vdwg.mxu0
    %v392 = vadd.f32 %v272, %v298
    %v393 = vxor.u32 %v392, 2147483648
    %v394 = vmul.f32 %v393, 1.442695
    %v395 = vpow.pop %v394
    %v396 = vadd.f32 %v395, 1.0
    %v397 = vrcp.pop %v396
    %v398 = vmul.f32 %v396, %v397
    %v399 = vsub.f32 1.0, %v398
    %v400 = vmul.f32 %v397, %v399
    %v401 = vadd.f32 %v397, %v400
    %vm402 = vweird.f32 %v396
    %vm403 = vweird.f32 %v397
    %vm404 = vmor %vm402, %vm403
    %v405 = vsel %vm404, %v397, %v401
    %v406 = vand.u32 2147483647, %v396
    %vm407 = vcmp.eq.f32.partialorder %v406, 8.507059e+37
    %v408 = vand.u32 %v396, 2147483648
    %v409 = vor.u32 1.1754944e-38, %v408
    %v410 = vsel %vm407, %v409, %v405
    %v411 = vmul.f32 1.0, %v410
    %v412 = vadd.f32 %v321, %v344
    %v413 = vxor.u32 %v412, 2147483648
    %v414 = vmul.f32 %v413, 1.442695
    %v415 = vpow.pop %v414
    %v416 = vadd.f32 %v415, 1.0
    %v417 = vrcp.pop %v416
    %v418 = vmul.f32 %v416, %v417
    %v419 = vsub.f32 1.0, %v418
    %v420 = vmul.f32 %v417, %v419
    %v421 = vadd.f32 %v417, %v420
    %vm422 = vweird.f32 %v416
    %vm423 = vweird.f32 %v417
    %vm424 = vmor %vm422, %vm423
    %v425 = vsel %vm424, %v417, %v421
    %v426 = vand.u32 2147483647, %v416
    %vm427 = vcmp.eq.f32.partialorder %v426, 8.507059e+37
    %v428 = vand.u32 %v416, 2147483648
    %v429 = vor.u32 1.1754944e-38, %v428
    %v430 = vsel %vm427, %v429, %v425
    %v431 = vmul.f32 1.0, %v430
    %v432 = vmul.f32 %v411, %v390
    %v433 = vadd.f32 %v367, %v432
    %v434 = vtanh.pop %v433
    %v435 = vsub.f32 1.0, %v431
    %v436 = vmul.f32 %v435, %v434
    %v437 = vmul.f32 %v431, %v217
    %v438 = vadd.f32 %v436, %v437
    %439 = vst.msk [vmem:[%s16] sm:$0x3] %vm67, %v438
    %v440 = vmax.f32 %v438, 0.0
    %441 = vst.msk [vmem:[%s17] sm:$0x3] %vm67, %v440
    // Predicated region
    $region66: #{run.9} parent=1 // pred_check
      _
    $region67: #{run.9} parent=1 // pred_check_branch
      %443 = sbr.rel (0) target = $region69
    $region68: #{run.9} parent=1 // pred_region
      _
    $region69: #{run.9} parent=1 // pred_fallthru
      _
    // Predicated region
    $region70: #{run.9} parent=1 // pred_check
      _
    $region71: #{run.9} parent=1 // pred_check_branch
      %445 = sbr.rel (0) target = $region73
    $region72: #{run.9} parent=1 // pred_region
      _
    $region73: #{run.9} parent=1 // pred_fallthru
      _
    // Predicated region
    $region74: #{run.9} parent=1 // pred_check
      _
    $region75: #{run.9} parent=1 // pred_check_branch
      %447 = sbr.rel (0) target = $region77
    $region76: #{run.9} parent=1 // pred_region
      %449 = vsyncadd [#allocation4], 0
      %s451 = sshll.u32 [#allocation3], 4
      %s452 = int_to_ptr.vmem [resolvable:$true] %s451
      %s453 = sshll.u32 %s18, 4
      %s454 = int_to_ptr.hbm [resolvable:$true] %s453
      %456 = dma.vmem_to_hbm [thread:$0]  %s452, 32, %s454, [#allocation4]
    $region77: #{run.9} parent=1 // pred_fallthru
      _
    // Predicated region
    $region78: #{run.9} parent=1 // pred_check
      _
    $region79: #{run.9} parent=1 // pred_check_branch
      %458 = sbr.rel (0) target = $region81
    $region80: #{run.9} parent=1 // pred_region
      _
    $region81: #{run.9} parent=1 // pred_fallthru
      _
    // Predicated region
    $region82: #{run.9} parent=1 // pred_check
      _
    $region83: #{run.9} parent=1 // pred_check_branch
      %460 = sbr.rel (0) target = $region85
    $region84: #{run.9} parent=1 // pred_region
      _
    $region85: #{run.9} parent=1 // pred_fallthru
      _
    // Predicated region
    $region86: #{run.9} parent=1 // pred_check
      _
    $region87: #{run.9} parent=1 // pred_check_branch
      %462 = sbr.rel (0) target = $region89
    $region88: #{run.9} parent=1 // pred_region
      %464 = dma.done [#allocation4], 32
    $region89: #{run.9} parent=1 // pred_fallthru
      _
    %465 = vsyncpa [#allocation4], 1

// kernel: run.11
$region0: #{run.11}
  #allocation0 [shape = 'u32[]', space=smem, size = 0x4, offset = 0x4, fixed_abs, tag = 'smem constant byte address 0x4 - core index']
  #allocation1 [shape = 'u32[72,128]{1,0:T(1,128)}', space=vmem, size = 0x9000, scoped, tag = 'internal scratch']
  %s0 = inlined_call_operand.vmem [shape: f32[2,10], index: 0, kind: input, shape index: {}]
  %s1 = inlined_call_operand.vmem [shape: f32[2,32], index: 1, kind: input, shape index: {}]
  %s2 = inlined_call_operand.vmem [shape: f32[10,50], index: 2, kind: input, shape index: {}]
  %s3 = inlined_call_operand.vmem [shape: f32[1,50], index: 3, kind: input, shape index: {}]
  %s4 = inlined_call_operand.vmem [shape: f32[50,40], index: 4, kind: input, shape index: {}]
  %s5 = inlined_call_operand.vmem [shape: f32[1,40], index: 5, kind: input, shape index: {}]
  %s6 = inlined_call_operand.vmem [shape: f32[40,32], index: 6, kind: input, shape index: {}]
  %s7 = inlined_call_operand.vmem [shape: f32[1,32], index: 7, kind: input, shape index: {}]
  %s8 = inlined_call_operand.vmem [shape: f32[32,20], index: 8, kind: input, shape index: {}]
  %s9 = inlined_call_operand.vmem [shape: f32[1,20], index: 9, kind: input, shape index: {}]
  %s10 = inlined_call_operand.vmem [shape: f32[20,8], index: 10, kind: input, shape index: {}]
  %s11 = inlined_call_operand.vmem [shape: f32[1,8], index: 11, kind: input, shape index: {}]
  %s12 = inlined_call_operand.vmem [shape: f32[32,16], index: 12, kind: input, shape index: {}]
  %s13 = inlined_call_operand.vmem [shape: f32[1,16], index: 13, kind: input, shape index: {}]
  %s14 = inlined_call_operand.vmem [shape: f32[16,2], index: 14, kind: input, shape index: {}]
  %s15 = inlined_call_operand.vmem [shape: f32[8,2], index: 15, kind: input, shape index: {}]
  %s16 = inlined_call_operand.vmem [shape: f32[1,2], index: 16, kind: input, shape index: {}]
  %s17 = inlined_call_operand.hbm [shape: f32[2,2], index: 17, kind: output, shape index: {0}]
  %s18 = inlined_call_operand.hbm [shape: f32[2,2], index: 18, kind: output, shape index: {1}]
  %19 = xla_tuple %s17, %s18
  %s20 = sld [smem:[#allocation0]]
  $region86: #{run.11} parent=0
    _
  %s22 = ssub.s32 1, %s20
  %s23 = scalar_select 0, %s22, %s20
  $region1: #{run.11} parent=0
    #allocation2 [shape = 'u8[1024]{0}', space=vmem, size = 0x400, scoped, tag = 'output window, operand 0, single buffered']
    #allocation3 [shape = 's32[1]{0}', space=sflag, size = 0x4, scoped, tag = 'scoped memory for run.11']
    #allocation4 [shape = 'u8[1024]{0}', space=vmem, size = 0x400, scoped, tag = 'output window, operand 1, single buffered']
    #allocation5 [shape = 's32[1]{0}', space=sflag, size = 0x4, scoped, tag = 'scoped memory for run.11']
    %24 = vsyncpa [#allocation3], 0
    %25 = vsyncpa [#allocation5], 0
    // Predicated region
    $region2: #{run.11} parent=1 // pred_check
      _
    $region3: #{run.11} parent=1 // pred_check_branch
      %27 = sbr.rel (0) target = $region5
    $region4: #{run.11} parent=1 // pred_region
      _
    $region5: #{run.11} parent=1 // pred_fallthru
      _
    // Predicated region
    $region6: #{run.11} parent=1 // pred_check
      _
    $region7: #{run.11} parent=1 // pred_check_branch
      %29 = sbr.rel (0) target = $region9
    $region8: #{run.11} parent=1 // pred_region
      _
    $region9: #{run.11} parent=1 // pred_fallthru
      _
    // Predicated region
    $region10: #{run.11} parent=1 // pred_check
      _
    $region11: #{run.11} parent=1 // pred_check_branch
      %31 = sbr.rel (0) target = $region13
    $region12: #{run.11} parent=1 // pred_region
      _
    $region13: #{run.11} parent=1 // pred_fallthru
      _
    // Predicated region
    $region14: #{run.11} parent=1 // pred_check
      _
    $region15: #{run.11} parent=1 // pred_check_branch
      %33 = sbr.rel (0) target = $region17
    $region16: #{run.11} parent=1 // pred_region
      _
    $region17: #{run.11} parent=1 // pred_fallthru
      _
    // Predicated region
    $region18: #{run.11} parent=1 // pred_check
      _
    $region19: #{run.11} parent=1 // pred_check_branch
      %35 = sbr.rel (0) target = $region21
    $region20: #{run.11} parent=1 // pred_region
      _
    $region21: #{run.11} parent=1 // pred_fallthru
      _
    // Predicated region
    $region22: #{run.11} parent=1 // pred_check
      _
    $region23: #{run.11} parent=1 // pred_check_branch
      %37 = sbr.rel (0) target = $region25
    $region24: #{run.11} parent=1 // pred_region
      _
    $region25: #{run.11} parent=1 // pred_fallthru
      _
    // Predicated region
    $region26: #{run.11} parent=1 // pred_check
      _
    $region27: #{run.11} parent=1 // pred_check_branch
      %39 = sbr.rel (0) target = $region29
    $region28: #{run.11} parent=1 // pred_region
      _
    $region29: #{run.11} parent=1 // pred_fallthru
      _
    // Predicated region
    $region30: #{run.11} parent=1 // pred_check
      _
    $region31: #{run.11} parent=1 // pred_check_branch
      %41 = sbr.rel (0) target = $region33
    $region32: #{run.11} parent=1 // pred_region
      _
    $region33: #{run.11} parent=1 // pred_fallthru
      _
    // Predicated region
    $region34: #{run.11} parent=1 // pred_check
      _
    $region35: #{run.11} parent=1 // pred_check_branch
      %43 = sbr.rel (0) target = $region37
    $region36: #{run.11} parent=1 // pred_region
      _
    $region37: #{run.11} parent=1 // pred_fallthru
      _
    // Predicated region
    $region38: #{run.11} parent=1 // pred_check
      _
    $region39: #{run.11} parent=1 // pred_check_branch
      %45 = sbr.rel (0) target = $region41
    $region40: #{run.11} parent=1 // pred_region
      _
    $region41: #{run.11} parent=1 // pred_fallthru
      _
    // Predicated region
    $region42: #{run.11} parent=1 // pred_check
      _
    $region43: #{run.11} parent=1 // pred_check_branch
      %47 = sbr.rel (0) target = $region45
    $region44: #{run.11} parent=1 // pred_region
      _
    $region45: #{run.11} parent=1 // pred_fallthru
      _
    // Predicated region
    $region46: #{run.11} parent=1 // pred_check
      _
    $region47: #{run.11} parent=1 // pred_check_branch
      %49 = sbr.rel (0) target = $region49
    $region48: #{run.11} parent=1 // pred_region
      _
    $region49: #{run.11} parent=1 // pred_fallthru
      _
    // Predicated region
    $region50: #{run.11} parent=1 // pred_check
      _
    $region51: #{run.11} parent=1 // pred_check_branch
      %51 = sbr.rel (0) target = $region53
    $region52: #{run.11} parent=1 // pred_region
      _
    $region53: #{run.11} parent=1 // pred_fallthru
      _
    // Predicated region
    $region54: #{run.11} parent=1 // pred_check
      _
    $region55: #{run.11} parent=1 // pred_check_branch
      %53 = sbr.rel (0) target = $region57
    $region56: #{run.11} parent=1 // pred_region
      _
    $region57: #{run.11} parent=1 // pred_fallthru
      _
    // Predicated region
    $region58: #{run.11} parent=1 // pred_check
      _
    $region59: #{run.11} parent=1 // pred_check_branch
      %55 = sbr.rel (0) target = $region61
    $region60: #{run.11} parent=1 // pred_region
      _
    $region61: #{run.11} parent=1 // pred_fallthru
      _
    // Predicated region
    $region62: #{run.11} parent=1 // pred_check
      _
    $region63: #{run.11} parent=1 // pred_check_branch
      %57 = sbr.rel (0) target = $region65
    $region64: #{run.11} parent=1 // pred_region
      _
    $region65: #{run.11} parent=1 // pred_fallthru
      _
    // Predicated region
    $region66: #{run.11} parent=1 // pred_check
      _
    $region67: #{run.11} parent=1 // pred_check_branch
      %59 = sbr.rel (0) target = $region69
    $region68: #{run.11} parent=1 // pred_region
      _
    $region69: #{run.11} parent=1 // pred_fallthru
      _
    %v60 = vld [vmem:[%s0] sm:$0x3]
    %v61 = vld [vmem:[%s2] sm:$0xff]
    %v62 = vld [vmem:[%s2 + $0x8] sm:$0x3]
    %v63 = vld [vmem:[%s3] sm:$0x1]
    %v65 = vperm.slane %v63, 0
    %vm67 = vcmask 80896
    %v69 = vsel %vm67, %v60, 0
    %vm71 = vcmask 1041408
    %v73 = vsel %vm71, %v62, 0
    %75 = vmatpush.msra.mxu0 0.0
    %76 = vmatpush.msra.mxu0 0.0
    %77 = vmatpush.msra.mxu0 0.0
    %78 = vmatpush.msra.mxu0 0.0
    %79 = vmatpush.msra.mxu0 0.0
    %80 = vmatpush.msra.mxu0 0.0
    %81 = vmatpush.msra.mxu0 0.0
    %82 = vmatpush.msra.mxu0 0.0
    %83 = vmatpush.msra.mxu0 0.0
    %84 = vmatpush.msra.mxu0 0.0
    %85 = vmatpush.msra.mxu0 0.0
    %86 = vmatpush.msra.mxu0 0.0
    %87 = vmatpush.msra.mxu0 0.0
    %88 = vmatpush.msra.mxu0 0.0
    %89 = vmatpush.msra.mxu0 %v73
    %90 = vmatpush.msra.mxu0 %v61
    %91 = vmatmul.f32.gmra.mxu0 %v69
    %v92 = vpop.f32.mrf.mxu0
    %v93 = vadd.f32 %v65, %v92
    %94 = vdwg.mxu0
    %v95 = vmax.f32 %v93, 0.0
    %v96 = vld [vmem:[%s4] sm:$0xff]
    %v97 = vld [vmem:[%s4 + $0x8] sm:$0xff]
    %v98 = vld [vmem:[%s4 + $0x10] sm:$0xff]
    %v99 = vld [vmem:[%s4 + $0x18] sm:$0xff]
    %v100 = vld [vmem:[%s4 + $0x20] sm:$0xff]
    %v101 = vld [vmem:[%s4 + $0x28] sm:$0xff]
    %v102 = vld [vmem:[%s4 + $0x30] sm:$0x3]
    %v103 = vld [vmem:[%s5] sm:$0x1]
    %v105 = vperm.slane %v103, 0
    %vm107 = vcmask 408576
    %v109 = vsel %vm107, %v95, 0
    %v112 = vsel %vm71, %v102, 0
    %114 = vmatpush.msra.mxu0 0.0
    %115 = vmatpush.msra.mxu0 0.0
    %116 = vmatpush.msra.mxu0 0.0
    %117 = vmatpush.msra.mxu0 0.0
    %118 = vmatpush.msra.mxu0 0.0
    %119 = vmatpush.msra.mxu0 0.0
    %120 = vmatpush.msra.mxu0 0.0
    %121 = vmatpush.msra.mxu0 0.0
    %122 = vmatpush.msra.mxu0 0.0
    %123 = vmatpush.msra.mxu0 %v112
    %124 = vmatpush.msra.mxu0 %v101
    %125 = vmatpush.msra.mxu0 %v100
    %126 = vmatpush.msra.mxu0 %v99
    %127 = vmatpush.msra.mxu0 %v98
    %128 = vmatpush.msra.mxu0 %v97
    %129 = vmatpush.msra.mxu0 %v96
    %130 = vmatmul.f32.gmra.mxu0 %v109
    %v131 = vpop.f32.mrf.mxu0
    %v132 = vadd.f32 %v105, %v131
    %133 = vdwg.mxu0
    %v134 = vmax.f32 %v132, 0.0
    %v135 = vld [vmem:[%s6] sm:$0xff]
    %v136 = vld [vmem:[%s6 + $0x8] sm:$0xff]
    %v137 = vld [vmem:[%s6 + $0x10] sm:$0xff]
    %v138 = vld [vmem:[%s6 + $0x18] sm:$0xff]
    %v139 = vld [vmem:[%s6 + $0x20] sm:$0xff]
    %v140 = vld [vmem:[%s7] sm:$0x1]
    %v142 = vperm.slane %v140, 0
    %vm144 = vcmask 326656
    %v146 = vsel %vm144, %v134, 0
    %148 = vmatpush.msra.mxu0 0.0
    %149 = vmatpush.msra.mxu0 0.0
    %150 = vmatpush.msra.mxu0 0.0
    %151 = vmatpush.msra.mxu0 0.0
    %152 = vmatpush.msra.mxu0 0.0
    %153 = vmatpush.msra.mxu0 0.0
    %154 = vmatpush.msra.mxu0 0.0
    %155 = vmatpush.msra.mxu0 0.0
    %156 = vmatpush.msra.mxu0 0.0
    %157 = vmatpush.msra.mxu0 0.0
    %158 = vmatpush.msra.mxu0 0.0
    %159 = vmatpush.msra.mxu0 %v139
    %160 = vmatpush.msra.mxu0 %v138
    %161 = vmatpush.msra.mxu0 %v137
    %162 = vmatpush.msra.mxu0 %v136
    %163 = vmatpush.msra.mxu0 %v135
    %164 = vmatmul.f32.gmra.mxu0 %v146
    %v165 = vpop.f32.mrf.mxu0
    %v166 = vadd.f32 %v142, %v165
    %167 = vdwg.mxu0
    %v168 = vmax.f32 %v166, 0.0
    %v169 = vld [vmem:[%s8] sm:$0xff]
    %v170 = vld [vmem:[%s8 + $0x8] sm:$0xff]
    %v171 = vld [vmem:[%s8 + $0x10] sm:$0xff]
    %v172 = vld [vmem:[%s8 + $0x18] sm:$0xff]
    %v173 = vld [vmem:[%s9] sm:$0x1]
    %v175 = vperm.slane %v173, 0
    %vm177 = vcmask 261120
    %v179 = vsel %vm177, %v168, 0
    %181 = vmatpush.msra.mxu0 0.0
    %182 = vmatpush.msra.mxu0 0.0
    %183 = vmatpush.msra.mxu0 0.0
    %184 = vmatpush.msra.mxu0 0.0
    %185 = vmatpush.msra.mxu0 0.0
    %186 = vmatpush.msra.mxu0 0.0
    %187 = vmatpush.msra.mxu0 0.0
    %188 = vmatpush.msra.mxu0 0.0
    %189 = vmatpush.msra.mxu0 0.0
    %190 = vmatpush.msra.mxu0 0.0
    %191 = vmatpush.msra.mxu0 0.0
    %192 = vmatpush.msra.mxu0 0.0
    %193 = vmatpush.msra.mxu0 %v172
    %194 = vmatpush.msra.mxu0 %v171
    %195 = vmatpush.msra.mxu0 %v170
    %196 = vmatpush.msra.mxu0 %v169
    %197 = vmatmul.f32.gmra.mxu0 %v179
    %v198 = vpop.f32.mrf.mxu0
    %v199 = vadd.f32 %v175, %v198
    %200 = vdwg.mxu0
    %v201 = vmax.f32 %v199, 0.0
    %v202 = vld [vmem:[%s10] sm:$0xff]
    %v203 = vld [vmem:[%s10 + $0x8] sm:$0xff]
    %v204 = vld [vmem:[%s10 + $0x10] sm:$0xf]
    %v205 = vld [vmem:[%s11] sm:$0x1]
    %v207 = vperm.slane %v205, 0
    %vm209 = vcmask 162816
    %v211 = vsel %vm209, %v201, 0
    %vm213 = vcmask 1043456
    %v215 = vsel %vm213, %v204, 0
    %217 = vmatpush.msra.mxu0 0.0
    %218 = vmatpush.msra.mxu0 0.0
    %219 = vmatpush.msra.mxu0 0.0
    %220 = vmatpush.msra.mxu0 0.0
    %221 = vmatpush.msra.mxu0 0.0
    %222 = vmatpush.msra.mxu0 0.0
    %223 = vmatpush.msra.mxu0 0.0
    %224 = vmatpush.msra.mxu0 0.0
    %225 = vmatpush.msra.mxu0 0.0
    %226 = vmatpush.msra.mxu0 0.0
    %227 = vmatpush.msra.mxu0 0.0
    %228 = vmatpush.msra.mxu0 0.0
    %229 = vmatpush.msra.mxu0 0.0
    %230 = vmatpush.msra.mxu0 %v215
    %231 = vmatpush.msra.mxu0 %v203
    %232 = vmatpush.msra.mxu0 %v202
    %233 = vmatmul.f32.gmra.mxu0 %v211
    %v234 = vpop.f32.mrf.mxu0
    %v235 = vadd.f32 %v207, %v234
    %236 = vdwg.mxu0
    %v237 = vld [vmem:[%s1] sm:$0x3]
    %v238 = vld [vmem:[%s12] sm:$0xff]
    %v239 = vld [vmem:[%s12 + $0x8] sm:$0xff]
    %v240 = vld [vmem:[%s12 + $0x10] sm:$0xff]
    %v241 = vld [vmem:[%s12 + $0x18] sm:$0xff]
    %v242 = vld [vmem:[%s13] sm:$0x1]
    %v244 = vperm.slane %v242, 0
    %v247 = vsel %vm177, %v237, 0
    %249 = vmatpush.msra.mxu0 0.0
    %250 = vmatpush.msra.mxu0 0.0
    %251 = vmatpush.msra.mxu0 0.0
    %252 = vmatpush.msra.mxu0 0.0
    %253 = vmatpush.msra.mxu0 0.0
    %254 = vmatpush.msra.mxu0 0.0
    %255 = vmatpush.msra.mxu0 0.0
    %256 = vmatpush.msra.mxu0 0.0
    %257 = vmatpush.msra.mxu0 0.0
    %258 = vmatpush.msra.mxu0 0.0
    %259 = vmatpush.msra.mxu0 0.0
    %260 = vmatpush.msra.mxu0 0.0
    %261 = vmatpush.msra.mxu0 %v241
    %262 = vmatpush.msra.mxu0 %v240
    %263 = vmatpush.msra.mxu0 %v239
    %264 = vmatpush.msra.mxu0 %v238
    %265 = vmatmul.f32.gmra.mxu0 %v247
    %v266 = vpop.f32.mrf.mxu0
    %v267 = vadd.f32 %v244, %v266
    %268 = vdwg.mxu0
    %v269 = vld [vmem:[%s14] sm:$0xff]
    %v270 = vld [vmem:[%s14 + $0x8] sm:$0xff]
    %v271 = vld [vmem:[%s15] sm:$0xff]
    %vm272 = vcmask 64512
    %v274 = vsel %vm272, %v235, 0
    %276 = vmatpush.msra.mxu0 0.0
    %277 = vmatpush.msra.mxu0 0.0
    %278 = vmatpush.msra.mxu0 0.0
    %279 = vmatpush.msra.mxu0 0.0
    %280 = vmatpush.msra.mxu0 0.0
    %281 = vmatpush.msra.mxu0 0.0
    %282 = vmatpush.msra.mxu0 0.0
    %283 = vmatpush.msra.mxu0 0.0
    %284 = vmatpush.msra.mxu0 0.0
    %285 = vmatpush.msra.mxu0 0.0
    %286 = vmatpush.msra.mxu0 0.0
    %287 = vmatpush.msra.mxu0 0.0
    %288 = vmatpush.msra.mxu0 0.0
    %289 = vmatpush.msra.mxu0 0.0
    %290 = vmatpush.msra.mxu0 0.0
    %291 = vmatpush.msra.mxu0 %v271
    %292 = vmatmul.f32.gmra.mxu0 %v274
    %v293 = vpop.f32.mrf.mxu0
    %v294 = vadd.f32 0.0, %v293
    %295 = vdwg.mxu0
    %vm296 = vcmask 130048
    %v298 = vsel %vm296, %v267, 0
    %300 = vmatpush.msra.mxu0 0.0
    %301 = vmatpush.msra.mxu0 0.0
    %302 = vmatpush.msra.mxu0 0.0
    %303 = vmatpush.msra.mxu0 0.0
    %304 = vmatpush.msra.mxu0 0.0
    %305 = vmatpush.msra.mxu0 0.0
    %306 = vmatpush.msra.mxu0 0.0
    %307 = vmatpush.msra.mxu0 0.0
    %308 = vmatpush.msra.mxu0 0.0
    %309 = vmatpush.msra.mxu0 0.0
    %310 = vmatpush.msra.mxu0 0.0
    %311 = vmatpush.msra.mxu0 0.0
    %312 = vmatpush.msra.mxu0 0.0
    %313 = vmatpush.msra.mxu0 0.0
    %314 = vmatpush.msra.mxu0 %v270
    %315 = vmatpush.msra.mxu0 %v269
    %316 = vmatmul.f32.gmra.mxu0 %v298
    %v317 = vpop.f32.mrf.mxu0
    %v318 = vadd.f32 %v294, %v317
    %319 = vdwg.mxu0
    %v320 = vld [vmem:[%s16] sm:$0x1]
    %v322 = vperm.slane %v320, 0
    %v324 = vadd.f32 %v318, %v322
    %vm325 = vcmask 9216
    %326 = vst.msk [vmem:[#allocation2] sm:$0x3] %vm325, %v324
    %v327 = vxor.u32 %v324, 2147483648
    %v328 = vmul.f32 %v327, 1.442695
    %v329 = vpow.pop %v328
    %v330 = vadd.f32 %v329, 1.0
    %v331 = vrcp.pop %v330
    %v332 = vmul.f32 %v330, %v331
    %v333 = vsub.f32 1.0, %v332
    %v334 = vmul.f32 %v331, %v333
    %v335 = vadd.f32 %v331, %v334
    %vm336 = vweird.f32 %v330
    %vm337 = vweird.f32 %v331
    %vm338 = vmor %vm336, %vm337
    %v339 = vsel %vm338, %v331, %v335
    %v340 = vand.u32 2147483647, %v330
    %vm341 = vcmp.eq.f32.partialorder %v340, 8.507059e+37
    %v342 = vand.u32 %v330, 2147483648
    %v343 = vor.u32 1.1754944e-38, %v342
    %v344 = vsel %vm341, %v343, %v339
    %v345 = vmul.f32 1.0, %v344
    %346 = vst.msk [vmem:[#allocation4] sm:$0x3] %vm325, %v345
    // Predicated region
    $region70: #{run.11} parent=1 // pred_check
      _
    $region71: #{run.11} parent=1 // pred_check_branch
      %348 = sbr.rel (0) target = $region73
    $region72: #{run.11} parent=1 // pred_region
      %350 = vsyncadd [#allocation3], 0
      %s352 = sshll.u32 [#allocation2], 4
      %s353 = int_to_ptr.vmem [resolvable:$true] %s352
      %s354 = sshll.u32 %s17, 4
      %s355 = int_to_ptr.hbm [resolvable:$true] %s354
      %357 = dma.vmem_to_hbm [thread:$0]  %s353, 32, %s355, [#allocation3]
    $region73: #{run.11} parent=1 // pred_fallthru
      _
    // Predicated region
    $region74: #{run.11} parent=1 // pred_check
      _
    $region75: #{run.11} parent=1 // pred_check_branch
      %359 = sbr.rel (0) target = $region77
    $region76: #{run.11} parent=1 // pred_region
      %361 = vsyncadd [#allocation5], 0
      %s363 = sshll.u32 [#allocation4], 4
      %s364 = int_to_ptr.vmem [resolvable:$true] %s363
      %s365 = sshll.u32 %s18, 4
      %s366 = int_to_ptr.hbm [resolvable:$true] %s365
      %368 = dma.vmem_to_hbm [thread:$0]  %s364, 32, %s366, [#allocation5]
    $region77: #{run.11} parent=1 // pred_fallthru
      _
    // Predicated region
    $region78: #{run.11} parent=1 // pred_check
      _
    $region79: #{run.11} parent=1 // pred_check_branch
      %370 = sbr.rel (0) target = $region81
    $region80: #{run.11} parent=1 // pred_region
      %372 = dma.done [#allocation3], 32
    $region81: #{run.11} parent=1 // pred_fallthru
      _
    // Predicated region
    $region82: #{run.11} parent=1 // pred_check
      _
    $region83: #{run.11} parent=1 // pred_check_branch
      %374 = sbr.rel (0) target = $region85
    $region84: #{run.11} parent=1 // pred_region
      %376 = dma.done [#allocation5], 32
    $region85: #{run.11} parent=1 // pred_fallthru
      _
    %377 = vsyncpa [#allocation3], 1
    %378 = vsyncpa [#allocation5], 1

</llo_original>
